<compile_context>
chip_gen: v7x
topology: tpu7x:2x2x1
jax: 0.10.0
libtpu: 0.0.40
codegen_flags: <defaults>
</compile_context>

<pallas_src>
import functools
import math

import jax
import jax.numpy as jnp
from jax import lax
from jax.experimental import pallas as pl
from jax.experimental.pallas import tpu as pltpu

_NEG_INF = -1e9
_LANE = 128


# ----------------------------------------------------------------------------
# helpers usable both inside kernels and in the pure-JAX reference
# ----------------------------------------------------------------------------
def _gelu_new(x):
    # HuggingFace "gelu_new"
    return 0.5 * x * (1.0 + jnp.tanh(
        math.sqrt(2.0 / math.pi) * (x + 0.044715 * (x ** 3))))


def _layer_norm(x, gamma, beta, eps=1e-12):
    mu = jnp.mean(x, axis=-1, keepdims=True)
    var = jnp.mean((x - mu) ** 2, axis=-1, keepdims=True)
    return (x - mu) * lax.rsqrt(var + eps) * gamma + beta


_ENC_FIELDS = ("map_w", "map_b", "wqkv", "bqkv", "wd", "bd",
               "ln1_g", "ln1_b", "wffn", "bffn", "wffo", "bffo",
               "ln2_g", "ln2_b")


# ----------------------------------------------------------------------------
# the fused kernel: full Bruno forward for one batch element per grid step
# ----------------------------------------------------------------------------
def _bruno_kernel(*refs, num_encoders, num_hidden_layers, num_heads):
    o_ref = refs[-1]
    it = iter(refs[:-1])
    x_ref, mask_ref = next(it), next(it)
    emb_w, emb_b = next(it), next(it)
    encs = [{f: next(it) for f in _ENC_FIELDS} for _ in range(num_encoders)]
    dec0_w, dec0_b, dec1_w, dec1_b = next(it), next(it), next(it), next(it)

    def mxu(a, w):
        # MXU operands in the weights' (low-precision) dtype, f32 accumulation.
        return jnp.dot(a.astype(w.dtype), w, preferred_element_type=jnp.float32)

    x = x_ref[0]                                       # (S, F) rows of this batch
    mask_row = mask_ref[0]                             # (1, S)
    # additive key bias built in-kernel -- no (N,N) HBM tensor:
    bias = jnp.where(mask_row > 0.5, 0.0, _NEG_INF)    # (1, S), broadcasts over q

    # embedder + tanh
    h = jnp.tanh(mxu(x, emb_w[...]) + emb_b[...])      # (S, E) f32

    for e in encs:
        wqkv, bqkv = e["wqkv"][...], e["bqkv"][...]
        wd, bd = e["wd"][...], e["bd"][...]
        g1, b1 = e["ln1_g"][...], e["ln1_b"][...]
        wffn, bffn = e["wffn"][...], e["bffn"][...]
        wffo, bffo = e["wffo"][...], e["bffo"][...]
        g2, b2 = e["ln2_g"][...], e["ln2_b"][...]

        d_model = wd.shape[0]
        dh = d_model // num_heads
        scale = 1.0 / math.sqrt(dh)
        mm_dt = wqkv.dtype

        # embedding_hidden_mapping_in
        h = mxu(h, e["map_w"][...]) + e["map_b"][...]  # (S, D) f32

        def papu_layer(hh):
            # fused QKV: one (S,D)x(D,3D) MXU matmul, no H-fold activation
            # broadcast.  Head hd occupies columns [hd*dh, (hd+1)*dh) of each
            # of the q / k / v column groups (transpose_for_scores order).
            qkv = mxu(hh, wqkv) + bqkv                 # (S, 3D) f32
            proj = bd                                  # (1, D), broadcasts below
            for hd in range(num_heads):
                lo = hd * dh
                q = qkv[:, lo:lo + dh]
                k = qkv[:, d_model + lo:d_model + lo + dh]
                v = qkv[:, 2 * d_model + lo:2 * d_model + lo + dh]
                # scores: contract dh with K transposed inside the MXU
                s = lax.dot_general(q.astype(mm_dt), k.astype(mm_dt),
                                    (((1,), (1,)), ((), ())),
                                    preferred_element_type=jnp.float32) * scale
                s = s + bias
                s = s - jnp.max(s, axis=-1, keepdims=True)
                p = jnp.exp(s)
                p = p * pl.reciprocal(jnp.sum(p, axis=-1, keepdims=True),
                                      approx=True)
                ctx = jnp.dot(p.astype(mm_dt), v.astype(mm_dt),
                              preferred_element_type=jnp.float32)   # (S, dh)
                # head-output projection: contract dh on the MXU against the
                # matching sublane slice of the (D,D) dense weight and
                # accumulate -- never materializes an (H,S,D) partial slab.
                proj = proj + mxu(ctx, wd[lo:lo + dh, :])
            attn_out = _layer_norm(hh + proj, g1, b1)
            f = _gelu_new(mxu(attn_out, wffn) + bffn)
            f = mxu(f, wffo) + bffo
            return _layer_norm(f + attn_out, g2, b2)

        # ALBERT weight sharing: identical weights reused num_hidden_layers
        # times.  Small depths are unrolled; deep configs use fori_loop to
        # bound live ranges and code size.
        if num_hidden_layers <= 4:
            for _ in range(num_hidden_layers):
                h = papu_layer(h)
        else:
            h = lax.fori_loop(0, num_hidden_layers,
                              lambda _, hh: papu_layer(hh), h)

    # decoders: relu(Linear) -> Linear (label dim pre-padded to 128 lanes)
    h = jnp.maximum(mxu(h, dec0_w[...]) + dec0_b[...], 0.0)
    out = mxu(h, dec1_w[...]) + dec1_b[...]
    o_ref[0] = out.astype(o_ref.dtype)


# ----------------------------------------------------------------------------
# one-time parameter prep: fuse QKV, cast matmul weights to bf16, pad dec1
# ----------------------------------------------------------------------------
def prepare_params(params, cfg, matmul_dtype=jnp.bfloat16):
    D, H, L = cfg["hidden"], cfg["heads"], cfg["label"]
    assert D % H == 0
    LP = ((L + _LANE - 1) // _LANE) * _LANE

    def cast_w(w):
        return w.astype(matmul_dtype)

    prep = {
        "emb_w": cast_w(params["emb_w"]), "emb_b": params["emb_b"],
        "dec0_w": cast_w(params["dec0_w"]), "dec0_b": params["dec0_b"],
        # lane-dense padded decoder head, padded ONCE here (not per forward)
        "dec1_w": cast_w(jnp.zeros((D, LP), jnp.float32)
                         .at[:, :L].set(params["dec1_w"])),
        "dec1_b": jnp.zeros((1, LP), jnp.float32).at[:, :L].set(params["dec1_b"]),
        "encoders": [],
    }
    for enc in params["encoders"]:
        prep["encoders"].append({
            "map_w": cast_w(enc["map_w"]), "map_b": enc["map_b"],
            "wqkv": cast_w(jnp.concatenate([enc["wq"], enc["wk"], enc["wv"]],
                                           axis=1)),
            "bqkv": jnp.concatenate([enc["bq"], enc["bk"], enc["bv"]], axis=1),
            "wd": cast_w(enc["wd"]), "bd": enc["bd"],
            "ln1_g": enc["ln1_g"], "ln1_b": enc["ln1_b"],
            "wffn": cast_w(enc["wffn"]), "bffn": enc["bffn"],
            "wffo": cast_w(enc["wffo"]), "bffo": enc["bffo"],
            "ln2_g": enc["ln2_g"], "ln2_b": enc["ln2_b"],
        })
    return prep


def _pick_vmem_limit():
    """~100 MiB on 128-MiB chips (v5e/v6e), ~48 MiB on 64-MiB chips (v7x)."""
    try:
        cap = int(pltpu.get_tpu_info().vmem_capacity_bytes)
    except Exception:
        return 64 * 1024 * 1024
    if cap >= 128 * 1024 * 1024:
        return 100 * 1024 * 1024
    return 48 * 1024 * 1024


# ----------------------------------------------------------------------------
# wrapper: one pallas_call, grid over batch, weights resident in VMEM
# ----------------------------------------------------------------------------
def bruno_forward(prep, x, mask, cfg):
    B, S, F = x.shape
    D, H, E, I = cfg["hidden"], cfg["heads"], cfg["embed"], cfg["inter"]
    L = cfg["label"]
    nlayers = cfg["num_hidden_layers"]
    nenc = len(prep["encoders"])
    LP = prep["dec1_w"].shape[-1]
    N = B * S

    x32 = x.astype(jnp.float32)
    mask3 = mask.reshape(B, 1, S).astype(jnp.float32)

    def res_spec(a):
        # whole-array operand, resident in VMEM, same block every grid step
        return pl.BlockSpec(a.shape, lambda b: (0,) * a.ndim)

    args = [x32, mask3]
    in_specs = [pl.BlockSpec((1, S, F), lambda b: (b, 0, 0)),
                pl.BlockSpec((1, 1, S), lambda b: (b, 0, 0))]
    for a in (prep["emb_w"], prep["emb_b"]):
        args.append(a)
        in_specs.append(res_spec(a))
    for enc in prep["encoders"]:
        for f in _ENC_FIELDS:
            args.append(enc[f])
            in_specs.append(res_spec(enc[f]))
    for nm in ("dec0_w", "dec0_b", "dec1_w", "dec1_b"):
        args.append(prep[nm])
        in_specs.append(res_spec(prep[nm]))

    # advisory cost estimate so XLA schedules the custom call sensibly
    dh = D // H
    flops_layer = (2 * N * D * 3 * D            # fused QKV
                   + 2 * 2 * B * H * S * S * dh  # scores + ctx
                   + 2 * N * D * D               # head-output projection
                   + 4 * N * D * I)              # FFN
    flops = (2 * N * F * E
             + nenc * (2 * N * E * D + nlayers * flops_layer)
             + 2 * N * D * D + 2 * N * D * LP)
    trans = N * E + nenc * nlayers * (B * H * S * S + B * H * S + N * I)
    bytes_accessed = sum(int(a.size) * a.dtype.itemsize for a in args) + N * LP * 4

    out = pl.pallas_call(
        functools.partial(_bruno_kernel, num_encoders=nenc,
                          num_hidden_layers=nlayers, num_heads=H),
        grid=(B,),
        in_specs=in_specs,
        out_specs=pl.BlockSpec((1, S, LP), lambda b: (b, 0, 0)),
        out_shape=jax.ShapeDtypeStruct((B, S, LP), jnp.float32),
        compiler_params=pltpu.CompilerParams(
            dimension_semantics=("parallel",),
            vmem_limit_bytes=_pick_vmem_limit()),
        cost_estimate=pl.CostEstimate(flops=int(flops),
                                      transcendentals=int(trans),
                                      bytes_accessed=int(bytes_accessed)),
    )(*args)
    return out[:, :, :L]


# ----------------------------------------------------------------------------
# parameters (mirroring Bruno._init_weights: W ~ N(0, 0.02), biases 0,
# LayerNorm gamma=1 beta=0).  Master weights stored f32 as [in, out].
# ----------------------------------------------------------------------------
def init_params(key, cfg):
    n_keys = 4 + 7 * cfg["num_encoders"]
    keys = iter(jax.random.split(key, n_keys))

    def w(shape):
        return jax.random.normal(next(keys), shape, jnp.float32) * 0.02

    def zb(n):
        return jnp.zeros((1, n), jnp.float32)

    F, E, D = cfg["feature"], cfg["embed"], cfg["hidden"]
    I, L = cfg["inter"], cfg["label"]

    params = {
        "emb_w": w((F, E)), "emb_b": zb(E),
        "encoders": [],
        "dec0_w": w((D, D)), "dec0_b": zb(D),
        "dec1_w": w((D, L)), "dec1_b": zb(L),
    }
    for _ in range(cfg["num_encoders"]):
        params["encoders"].append({
            "map_w": w((E, D)), "map_b": zb(D),
            "wq": w((D, D)), "bq": zb(D),
            "wk": w((D, D)), "bk": zb(D),
            "wv": w((D, D)), "bv": zb(D),
            "wd": w((D, D)), "bd": zb(D),
            "ln1_g": jnp.ones((1, D), jnp.float32), "ln1_b": zb(D),
            "wffn": w((D, I)), "bffn": zb(I),
            "wffo": w((I, D)), "bffo": zb(D),
            "ln2_g": jnp.ones((1, D), jnp.float32), "ln2_b": zb(D),
        })
    return params


# ----------------------------------------------------------------------------
# pure-JAX reference (model semantics; matmul_dtype lets us emulate the bf16
# MXU-input policy for a dtype-matched comparison).  For validation only.
# ----------------------------------------------------------------------------
def bruno_reference(params, x, mask, cfg, matmul_dtype=jnp.float32):
    B, S, _ = x.shape
    H = cfg["heads"]
    hp = jax.lax.Precision.HIGHEST

    def mm(a, b):
        return jnp.dot(a.astype(matmul_dtype), b.astype(matmul_dtype),
                       preferred_element_type=jnp.float32, precision=hp)

    def lin(z, w, b):
        return mm(z, w) + b

    mb = ((1.0 - mask) * _NEG_INF)[:, None, :]            # (B, 1, S)
    h = jnp.tanh(lin(x, params["emb_w"], params["emb_b"]))

    for enc in params["encoders"]:
        h = lin(h, enc["map_w"], enc["map_b"])
        D = h.shape[-1]
        dh = D // H
        for _ in range(cfg["num_hidden_layers"]):
            q = lin(h, enc["wq"], enc["bq"]).reshape(B, S, H, dh).transpose(0, 2, 1, 3)
            k = lin(h, enc["wk"], enc["bk"]).reshape(B, S, H, dh).transpose(0, 2, 1, 3)
            v = lin(h, enc["wv"], enc["bv"]).reshape(B, S, H, dh).transpose(0, 2, 1, 3)
            s = jnp.einsum("bhqd,bhkd->bhqk", q.astype(matmul_dtype),
                           k.astype(matmul_dtype), precision=hp,
                           preferred_element_type=jnp.float32) / math.sqrt(dh)
            s = s + mb[:, None, :, :]
            p = jax.nn.softmax(s, axis=-1)
            ctx = jnp.einsum("bhqk,bhkd->bhqd", p.astype(matmul_dtype),
                             v.astype(matmul_dtype), precision=hp,
                             preferred_element_type=jnp.float32)
            ctx = ctx.transpose(0, 2, 1, 3).reshape(B, S, D)
            proj = lin(ctx, enc["wd"], enc["bd"])
            attn_out = _layer_norm(h + proj, enc["ln1_g"], enc["ln1_b"])
            f = _gelu_new(lin(attn_out, enc["wffn"], enc["bffn"]))
            f = lin(f, enc["wffo"], enc["bffo"])
            h = _layer_norm(f + attn_out, enc["ln2_g"], enc["ln2_b"])

    h = jax.nn.relu(lin(h, params["dec0_w"], params["dec0_b"]))
    return lin(h, params["dec1_w"], params["dec1_b"])


# ----------------------------------------------------------------------------
if __name__ == "__main__":
    cfg = dict(
        feature=16,        # config.feature_size
        embed=24,          # config.embedding_size
        hidden=32,         # config.hidden_size
        inter=64,          # config.intermediate_size
        label=4,           # config.label_size
        heads=4,           # config.num_attention_heads
        num_encoders=1,    # config.num_encoders
        num_hidden_layers=2,
        batch=2,
        seq=8,
    )

    key = jax.random.PRNGKey(0)
    kp, kx = jax.random.split(key)
    params = init_params(kp, cfg)

    x = jax.random.normal(kx, (cfg["batch"], cfg["seq"], cfg["feature"]),
                          jnp.float32)
    mask = jnp.ones((cfg["batch"], cfg["seq"]), jnp.float32)

    prep = prepare_params(params, cfg, matmul_dtype=jnp.bfloat16)
    fwd = jax.jit(functools.partial(bruno_forward, cfg=cfg))
    out = jax.block_until_ready(fwd(prep, x, mask))

    assert out.shape == (cfg["batch"], cfg["seq"], cfg["label"]), out.shape
    assert bool(jnp.all(jnp.isfinite(out)))

    # tight check vs a dtype-matched (bf16 MXU-input) reference,
    # sanity check vs the exact f32 reference
    ref_bf16 = bruno_reference(params, x, mask, cfg, matmul_dtype=jnp.bfloat16)
    ref_f32 = bruno_reference(params, x, mask, cfg, matmul_dtype=jnp.float32)
    err_bf16 = float(jnp.max(jnp.abs(out - ref_bf16)))
    err_f32 = float(jnp.max(jnp.abs(out - ref_f32)))
    assert err_bf16 < 2e-3, f"kernel vs dtype-matched reference: {err_bf16}"
    assert err_f32 < 5e-2, f"kernel vs f32 reference: {err_f32}"

    print("KERNEL_OK")
</pallas_src>

<mosaic_0001>
module attributes {stable_mosaic.version = 11 : i64} {
  func.func @_bruno_kernel(%arg0: i32, %arg1: memref<1x8x16xf32, #tpu.memory_space<vmem>>, %arg2: memref<1x1x8xf32, #tpu.memory_space<vmem>>, %arg3: memref<16x24xbf16, #tpu.memory_space<vmem>>, %arg4: memref<1x24xf32, #tpu.memory_space<vmem>>, %arg5: memref<24x32xbf16, #tpu.memory_space<vmem>>, %arg6: memref<1x32xf32, #tpu.memory_space<vmem>>, %arg7: memref<32x96xbf16, #tpu.memory_space<vmem>>, %arg8: memref<1x96xf32, #tpu.memory_space<vmem>>, %arg9: memref<32x32xbf16, #tpu.memory_space<vmem>>, %arg10: memref<1x32xf32, #tpu.memory_space<vmem>>, %arg11: memref<1x32xf32, #tpu.memory_space<vmem>>, %arg12: memref<1x32xf32, #tpu.memory_space<vmem>>, %arg13: memref<32x64xbf16, #tpu.memory_space<vmem>>, %arg14: memref<1x64xf32, #tpu.memory_space<vmem>>, %arg15: memref<64x32xbf16, #tpu.memory_space<vmem>>, %arg16: memref<1x32xf32, #tpu.memory_space<vmem>>, %arg17: memref<1x32xf32, #tpu.memory_space<vmem>>, %arg18: memref<1x32xf32, #tpu.memory_space<vmem>>, %arg19: memref<32x32xbf16, #tpu.memory_space<vmem>>, %arg20: memref<1x32xf32, #tpu.memory_space<vmem>>, %arg21: memref<32x128xbf16, #tpu.memory_space<vmem>>, %arg22: memref<1x128xf32, #tpu.memory_space<vmem>>, %arg23: memref<1x8x128xf32, #tpu.memory_space<vmem>>) attributes {dimension_semantics = [#tpu.dimension_semantics<parallel>], iteration_bounds = array<i64: 2>, scalar_prefetch = 0 : i64, scratch_operands = 0 : i64, tpu.core_type = #tpu.core_type<tc>, window_params = [{transform_indices = @transform_0, window_bounds = array<i64: 1, 8, 16>}, {transform_indices = @transform_1, window_bounds = array<i64: 1, 1, 8>}, {pipeline_mode = #tpu.pipeline_mode<synchronous>, transform_indices = @transform_2, window_bounds = array<i64: 16, 24>}, {pipeline_mode = #tpu.pipeline_mode<synchronous>, transform_indices = @transform_3, window_bounds = array<i64: 1, 24>}, {pipeline_mode = #tpu.pipeline_mode<synchronous>, transform_indices = @transform_4, window_bounds = array<i64: 24, 32>}, {pipeline_mode = #tpu.pipeline_mode<synchronous>, transform_indices = @transform_5, window_bounds = array<i64: 1, 32>}, {pipeline_mode = #tpu.pipeline_mode<synchronous>, transform_indices = @transform_6, window_bounds = array<i64: 32, 96>}, {pipeline_mode = #tpu.pipeline_mode<synchronous>, transform_indices = @transform_7, window_bounds = array<i64: 1, 96>}, {pipeline_mode = #tpu.pipeline_mode<synchronous>, transform_indices = @transform_8, window_bounds = array<i64: 32, 32>}, {pipeline_mode = #tpu.pipeline_mode<synchronous>, transform_indices = @transform_9, window_bounds = array<i64: 1, 32>}, {pipeline_mode = #tpu.pipeline_mode<synchronous>, transform_indices = @transform_10, window_bounds = array<i64: 1, 32>}, {pipeline_mode = #tpu.pipeline_mode<synchronous>, transform_indices = @transform_11, window_bounds = array<i64: 1, 32>}, {pipeline_mode = #tpu.pipeline_mode<synchronous>, transform_indices = @transform_12, window_bounds = array<i64: 32, 64>}, {pipeline_mode = #tpu.pipeline_mode<synchronous>, transform_indices = @transform_13, window_bounds = array<i64: 1, 64>}, {pipeline_mode = #tpu.pipeline_mode<synchronous>, transform_indices = @transform_14, window_bounds = array<i64: 64, 32>}, {pipeline_mode = #tpu.pipeline_mode<synchronous>, transform_indices = @transform_15, window_bounds = array<i64: 1, 32>}, {pipeline_mode = #tpu.pipeline_mode<synchronous>, transform_indices = @transform_16, window_bounds = array<i64: 1, 32>}, {pipeline_mode = #tpu.pipeline_mode<synchronous>, transform_indices = @transform_17, window_bounds = array<i64: 1, 32>}, {pipeline_mode = #tpu.pipeline_mode<synchronous>, transform_indices = @transform_18, window_bounds = array<i64: 32, 32>}, {pipeline_mode = #tpu.pipeline_mode<synchronous>, transform_indices = @transform_19, window_bounds = array<i64: 1, 32>}, {pipeline_mode = #tpu.pipeline_mode<synchronous>, transform_indices = @transform_20, window_bounds = array<i64: 32, 128>}, {pipeline_mode = #tpu.pipeline_mode<synchronous>, transform_indices = @transform_21, window_bounds = array<i64: 1, 128>}, {transform_indices = @transform_22, window_bounds = array<i64: 1, 8, 128>}]} {
    %c0 = arith.constant 0 : index
    %c0_0 = arith.constant 0 : index
    %c0_1 = arith.constant 0 : index
    %0 = vector.load %arg1[%c0, %c0_0, %c0_1] : memref<1x8x16xf32, #tpu.memory_space<vmem>>, vector<1x8x16xf32>
    %1 = vector.shape_cast %0 : vector<1x8x16xf32> to vector<8x16xf32>
    %c0_2 = arith.constant 0 : index
    %c0_3 = arith.constant 0 : index
    %c0_4 = arith.constant 0 : index
    %2 = vector.load %arg2[%c0_2, %c0_3, %c0_4] : memref<1x1x8xf32, #tpu.memory_space<vmem>>, vector<1x1x8xf32>
    %3 = vector.shape_cast %2 : vector<1x1x8xf32> to vector<1x8xf32>
    %cst = arith.constant 5.000000e-01 : f32
    %4 = vector.broadcast %cst : f32 to vector<1x8xf32>
    %5 = arith.cmpf ogt, %3, %4 : vector<1x8xf32>
    %cst_5 = arith.constant 0.000000e+00 : f32
    %cst_6 = arith.constant -1.000000e+09 : f32
    %6 = vector.broadcast %cst_5 : f32 to vector<1x8xf32>
    %7 = vector.broadcast %cst_6 : f32 to vector<1x8xf32>
    %8 = arith.select %5, %6, %7 : vector<1x8xi1>, vector<1x8xf32>
    %c0_7 = arith.constant 0 : index
    %c0_8 = arith.constant 0 : index
    %9 = vector.load %arg3[%c0_7, %c0_8] : memref<16x24xbf16, #tpu.memory_space<vmem>>, vector<16x24xbf16>
    %10 = arith.truncf %1 : vector<8x16xf32> to vector<8x16xbf16>
    %cst_9 = arith.constant dense<0.000000e+00> : vector<8x24xf32>
    %11 = tpu.matmul %10, %9, %cst_9 {dimension_numbers = #tpu.dot_dimension_numbers<[1], [0], [0], [1], [0, 0, 1, 1], [], []>} : vector<8x16xbf16>, vector<16x24xbf16>, vector<8x24xf32> -> vector<8x24xf32>
    %c0_10 = arith.constant 0 : index
    %c0_11 = arith.constant 0 : index
    %12 = vector.load %arg4[%c0_10, %c0_11] : memref<1x24xf32, #tpu.memory_space<vmem>>, vector<1x24xf32>
    %13 = vector.broadcast %12 : vector<1x24xf32> to vector<8x24xf32>
    %14 = arith.addf %11, %13 : vector<8x24xf32>
    %15 = math.tanh %14 : vector<8x24xf32>
    %c0_12 = arith.constant 0 : index
    %c0_13 = arith.constant 0 : index
    %16 = vector.load %arg7[%c0_12, %c0_13] : memref<32x96xbf16, #tpu.memory_space<vmem>>, vector<32x96xbf16>
    %c0_14 = arith.constant 0 : index
    %c0_15 = arith.constant 0 : index
    %17 = vector.load %arg8[%c0_14, %c0_15] : memref<1x96xf32, #tpu.memory_space<vmem>>, vector<1x96xf32>
    %c0_16 = arith.constant 0 : index
    %c0_17 = arith.constant 0 : index
    %18 = vector.load %arg9[%c0_16, %c0_17] : memref<32x32xbf16, #tpu.memory_space<vmem>>, vector<32x32xbf16>
    %c0_18 = arith.constant 0 : index
    %c0_19 = arith.constant 0 : index
    %19 = vector.load %arg10[%c0_18, %c0_19] : memref<1x32xf32, #tpu.memory_space<vmem>>, vector<1x32xf32>
    %c0_20 = arith.constant 0 : index
    %c0_21 = arith.constant 0 : index
    %20 = vector.load %arg11[%c0_20, %c0_21] : memref<1x32xf32, #tpu.memory_space<vmem>>, vector<1x32xf32>
    %c0_22 = arith.constant 0 : index
    %c0_23 = arith.constant 0 : index
    %21 = vector.load %arg12[%c0_22, %c0_23] : memref<1x32xf32, #tpu.memory_space<vmem>>, vector<1x32xf32>
    %c0_24 = arith.constant 0 : index
    %c0_25 = arith.constant 0 : index
    %22 = vector.load %arg13[%c0_24, %c0_25] : memref<32x64xbf16, #tpu.memory_space<vmem>>, vector<32x64xbf16>
    %c0_26 = arith.constant 0 : index
    %c0_27 = arith.constant 0 : index
    %23 = vector.load %arg14[%c0_26, %c0_27] : memref<1x64xf32, #tpu.memory_space<vmem>>, vector<1x64xf32>
    %c0_28 = arith.constant 0 : index
    %c0_29 = arith.constant 0 : index
    %24 = vector.load %arg15[%c0_28, %c0_29] : memref<64x32xbf16, #tpu.memory_space<vmem>>, vector<64x32xbf16>
    %c0_30 = arith.constant 0 : index
    %c0_31 = arith.constant 0 : index
    %25 = vector.load %arg16[%c0_30, %c0_31] : memref<1x32xf32, #tpu.memory_space<vmem>>, vector<1x32xf32>
    %c0_32 = arith.constant 0 : index
    %c0_33 = arith.constant 0 : index
    %26 = vector.load %arg17[%c0_32, %c0_33] : memref<1x32xf32, #tpu.memory_space<vmem>>, vector<1x32xf32>
    %c0_34 = arith.constant 0 : index
    %c0_35 = arith.constant 0 : index
    %27 = vector.load %arg18[%c0_34, %c0_35] : memref<1x32xf32, #tpu.memory_space<vmem>>, vector<1x32xf32>
    %c0_36 = arith.constant 0 : index
    %c0_37 = arith.constant 0 : index
    %28 = vector.load %arg5[%c0_36, %c0_37] : memref<24x32xbf16, #tpu.memory_space<vmem>>, vector<24x32xbf16>
    %29 = arith.truncf %15 : vector<8x24xf32> to vector<8x24xbf16>
    %cst_38 = arith.constant dense<0.000000e+00> : vector<8x32xf32>
    %30 = tpu.matmul %29, %28, %cst_38 {dimension_numbers = #tpu.dot_dimension_numbers<[1], [0], [0], [1], [0, 0, 1, 1], [], []>} : vector<8x24xbf16>, vector<24x32xbf16>, vector<8x32xf32> -> vector<8x32xf32>
    %c0_39 = arith.constant 0 : index
    %c0_40 = arith.constant 0 : index
    %31 = vector.load %arg6[%c0_39, %c0_40] : memref<1x32xf32, #tpu.memory_space<vmem>>, vector<1x32xf32>
    %32 = vector.broadcast %31 : vector<1x32xf32> to vector<8x32xf32>
    %33 = arith.addf %30, %32 : vector<8x32xf32>
    %34 = arith.truncf %33 : vector<8x32xf32> to vector<8x32xbf16>
    %cst_41 = arith.constant dense<0.000000e+00> : vector<8x96xf32>
    %35 = tpu.matmul %34, %16, %cst_41 {dimension_numbers = #tpu.dot_dimension_numbers<[1], [0], [0], [1], [0, 0, 1, 1], [], []>} : vector<8x32xbf16>, vector<32x96xbf16>, vector<8x96xf32> -> vector<8x96xf32>
    %36 = vector.broadcast %17 : vector<1x96xf32> to vector<8x96xf32>
    %37 = arith.addf %35, %36 : vector<8x96xf32>
    %38 = vector.extract_strided_slice %37 {offsets = [0, 0], sizes = [8, 8], strides = [1, 1]} : vector<8x96xf32> to vector<8x8xf32>
    %39 = vector.extract_strided_slice %37 {offsets = [0, 32], sizes = [8, 8], strides = [1, 1]} : vector<8x96xf32> to vector<8x8xf32>
    %40 = vector.extract_strided_slice %37 {offsets = [0, 64], sizes = [8, 8], strides = [1, 1]} : vector<8x96xf32> to vector<8x8xf32>
    %41 = arith.truncf %38 : vector<8x8xf32> to vector<8x8xbf16>
    %42 = arith.truncf %39 : vector<8x8xf32> to vector<8x8xbf16>
    %cst_42 = arith.constant dense<0.000000e+00> : vector<8x8xf32>
    %43 = tpu.matmul %41, %42, %cst_42 {dimension_numbers = #tpu.dot_dimension_numbers<[1], [1], [0], [0], [0, 0, 1, 0], [], []>} : vector<8x8xbf16>, vector<8x8xbf16>, vector<8x8xf32> -> vector<8x8xf32>
    %cst_43 = arith.constant 0.353553385 : f32
    %44 = vector.broadcast %cst_43 : f32 to vector<8x8xf32>
    %45 = arith.mulf %43, %44 : vector<8x8xf32>
    %46 = vector.broadcast %8 : vector<1x8xf32> to vector<8x8xf32>
    %47 = arith.addf %45, %46 : vector<8x8xf32>
    %cst_44 = arith.constant dense<0xFF800000> : vector<8xf32>
    %48 = vector.multi_reduction <maximumf>, %47, %cst_44 [1] : vector<8x8xf32> to vector<8xf32>
    %49 = vector.shape_cast %48 : vector<8xf32> to vector<8x1xf32>
    %50 = vector.broadcast %49 : vector<8x1xf32> to vector<8x8xf32>
    %51 = arith.subf %47, %50 : vector<8x8xf32>
    %52 = math.exp %51 : vector<8x8xf32>
    %cst_45 = arith.constant dense<0.000000e+00> : vector<8xf32>
    %53 = vector.multi_reduction <add>, %52, %cst_45 [1] : vector<8x8xf32> to vector<8xf32>
    %54 = vector.shape_cast %53 : vector<8xf32> to vector<8x1xf32>
    %55 = tpu.reciprocal %54 {approx = true} : vector<8x1xf32> -> vector<8x1xf32>
    %56 = vector.broadcast %55 : vector<8x1xf32> to vector<8x8xf32>
    %57 = arith.mulf %52, %56 : vector<8x8xf32>
    %58 = arith.truncf %57 : vector<8x8xf32> to vector<8x8xbf16>
    %59 = arith.truncf %40 : vector<8x8xf32> to vector<8x8xbf16>
    %cst_46 = arith.constant dense<0.000000e+00> : vector<8x8xf32>
    %60 = tpu.matmul %58, %59, %cst_46 {dimension_numbers = #tpu.dot_dimension_numbers<[1], [0], [0], [1], [0, 0, 1, 1], [], []>} : vector<8x8xbf16>, vector<8x8xbf16>, vector<8x8xf32> -> vector<8x8xf32>
    %61 = vector.extract_strided_slice %18 {offsets = [0, 0], sizes = [8, 32], strides = [1, 1]} : vector<32x32xbf16> to vector<8x32xbf16>
    %62 = arith.truncf %60 : vector<8x8xf32> to vector<8x8xbf16>
    %cst_47 = arith.constant dense<0.000000e+00> : vector<8x32xf32>
    %63 = tpu.matmul %62, %61, %cst_47 {dimension_numbers = #tpu.dot_dimension_numbers<[1], [0], [0], [1], [0, 0, 1, 1], [], []>} : vector<8x8xbf16>, vector<8x32xbf16>, vector<8x32xf32> -> vector<8x32xf32>
    %64 = vector.broadcast %19 : vector<1x32xf32> to vector<8x32xf32>
    %65 = arith.addf %64, %63 : vector<8x32xf32>
    %66 = vector.extract_strided_slice %37 {offsets = [0, 8], sizes = [8, 8], strides = [1, 1]} : vector<8x96xf32> to vector<8x8xf32>
    %67 = vector.extract_strided_slice %37 {offsets = [0, 40], sizes = [8, 8], strides = [1, 1]} : vector<8x96xf32> to vector<8x8xf32>
    %68 = vector.extract_strided_slice %37 {offsets = [0, 72], sizes = [8, 8], strides = [1, 1]} : vector<8x96xf32> to vector<8x8xf32>
    %69 = arith.truncf %66 : vector<8x8xf32> to vector<8x8xbf16>
    %70 = arith.truncf %67 : vector<8x8xf32> to vector<8x8xbf16>
    %cst_48 = arith.constant dense<0.000000e+00> : vector<8x8xf32>
    %71 = tpu.matmul %69, %70, %cst_48 {dimension_numbers = #tpu.dot_dimension_numbers<[1], [1], [0], [0], [0, 0, 1, 0], [], []>} : vector<8x8xbf16>, vector<8x8xbf16>, vector<8x8xf32> -> vector<8x8xf32>
    %cst_49 = arith.constant 0.353553385 : f32
    %72 = vector.broadcast %cst_49 : f32 to vector<8x8xf32>
    %73 = arith.mulf %71, %72 : vector<8x8xf32>
    %74 = vector.broadcast %8 : vector<1x8xf32> to vector<8x8xf32>
    %75 = arith.addf %73, %74 : vector<8x8xf32>
    %cst_50 = arith.constant dense<0xFF800000> : vector<8xf32>
    %76 = vector.multi_reduction <maximumf>, %75, %cst_50 [1] : vector<8x8xf32> to vector<8xf32>
    %77 = vector.shape_cast %76 : vector<8xf32> to vector<8x1xf32>
    %78 = vector.broadcast %77 : vector<8x1xf32> to vector<8x8xf32>
    %79 = arith.subf %75, %78 : vector<8x8xf32>
    %80 = math.exp %79 : vector<8x8xf32>
    %cst_51 = arith.constant dense<0.000000e+00> : vector<8xf32>
    %81 = vector.multi_reduction <add>, %80, %cst_51 [1] : vector<8x8xf32> to vector<8xf32>
    %82 = vector.shape_cast %81 : vector<8xf32> to vector<8x1xf32>
    %83 = tpu.reciprocal %82 {approx = true} : vector<8x1xf32> -> vector<8x1xf32>
    %84 = vector.broadcast %83 : vector<8x1xf32> to vector<8x8xf32>
    %85 = arith.mulf %80, %84 : vector<8x8xf32>
    %86 = arith.truncf %85 : vector<8x8xf32> to vector<8x8xbf16>
    %87 = arith.truncf %68 : vector<8x8xf32> to vector<8x8xbf16>
    %cst_52 = arith.constant dense<0.000000e+00> : vector<8x8xf32>
    %88 = tpu.matmul %86, %87, %cst_52 {dimension_numbers = #tpu.dot_dimension_numbers<[1], [0], [0], [1], [0, 0, 1, 1], [], []>} : vector<8x8xbf16>, vector<8x8xbf16>, vector<8x8xf32> -> vector<8x8xf32>
    %89 = vector.extract_strided_slice %18 {offsets = [8, 0], sizes = [8, 32], strides = [1, 1]} : vector<32x32xbf16> to vector<8x32xbf16>
    %90 = arith.truncf %88 : vector<8x8xf32> to vector<8x8xbf16>
    %cst_53 = arith.constant dense<0.000000e+00> : vector<8x32xf32>
    %91 = tpu.matmul %90, %89, %cst_53 {dimension_numbers = #tpu.dot_dimension_numbers<[1], [0], [0], [1], [0, 0, 1, 1], [], []>} : vector<8x8xbf16>, vector<8x32xbf16>, vector<8x32xf32> -> vector<8x32xf32>
    %92 = arith.addf %65, %91 : vector<8x32xf32>
    %93 = vector.extract_strided_slice %37 {offsets = [0, 16], sizes = [8, 8], strides = [1, 1]} : vector<8x96xf32> to vector<8x8xf32>
    %94 = vector.extract_strided_slice %37 {offsets = [0, 48], sizes = [8, 8], strides = [1, 1]} : vector<8x96xf32> to vector<8x8xf32>
    %95 = vector.extract_strided_slice %37 {offsets = [0, 80], sizes = [8, 8], strides = [1, 1]} : vector<8x96xf32> to vector<8x8xf32>
    %96 = arith.truncf %93 : vector<8x8xf32> to vector<8x8xbf16>
    %97 = arith.truncf %94 : vector<8x8xf32> to vector<8x8xbf16>
    %cst_54 = arith.constant dense<0.000000e+00> : vector<8x8xf32>
    %98 = tpu.matmul %96, %97, %cst_54 {dimension_numbers = #tpu.dot_dimension_numbers<[1], [1], [0], [0], [0, 0, 1, 0], [], []>} : vector<8x8xbf16>, vector<8x8xbf16>, vector<8x8xf32> -> vector<8x8xf32>
    %cst_55 = arith.constant 0.353553385 : f32
    %99 = vector.broadcast %cst_55 : f32 to vector<8x8xf32>
    %100 = arith.mulf %98, %99 : vector<8x8xf32>
    %101 = vector.broadcast %8 : vector<1x8xf32> to vector<8x8xf32>
    %102 = arith.addf %100, %101 : vector<8x8xf32>
    %cst_56 = arith.constant dense<0xFF800000> : vector<8xf32>
    %103 = vector.multi_reduction <maximumf>, %102, %cst_56 [1] : vector<8x8xf32> to vector<8xf32>
    %104 = vector.shape_cast %103 : vector<8xf32> to vector<8x1xf32>
    %105 = vector.broadcast %104 : vector<8x1xf32> to vector<8x8xf32>
    %106 = arith.subf %102, %105 : vector<8x8xf32>
    %107 = math.exp %106 : vector<8x8xf32>
    %cst_57 = arith.constant dense<0.000000e+00> : vector<8xf32>
    %108 = vector.multi_reduction <add>, %107, %cst_57 [1] : vector<8x8xf32> to vector<8xf32>
    %109 = vector.shape_cast %108 : vector<8xf32> to vector<8x1xf32>
    %110 = tpu.reciprocal %109 {approx = true} : vector<8x1xf32> -> vector<8x1xf32>
    %111 = vector.broadcast %110 : vector<8x1xf32> to vector<8x8xf32>
    %112 = arith.mulf %107, %111 : vector<8x8xf32>
    %113 = arith.truncf %112 : vector<8x8xf32> to vector<8x8xbf16>
    %114 = arith.truncf %95 : vector<8x8xf32> to vector<8x8xbf16>
    %cst_58 = arith.constant dense<0.000000e+00> : vector<8x8xf32>
    %115 = tpu.matmul %113, %114, %cst_58 {dimension_numbers = #tpu.dot_dimension_numbers<[1], [0], [0], [1], [0, 0, 1, 1], [], []>} : vector<8x8xbf16>, vector<8x8xbf16>, vector<8x8xf32> -> vector<8x8xf32>
    %116 = vector.extract_strided_slice %18 {offsets = [16, 0], sizes = [8, 32], strides = [1, 1]} : vector<32x32xbf16> to vector<8x32xbf16>
    %117 = arith.truncf %115 : vector<8x8xf32> to vector<8x8xbf16>
    %cst_59 = arith.constant dense<0.000000e+00> : vector<8x32xf32>
    %118 = tpu.matmul %117, %116, %cst_59 {dimension_numbers = #tpu.dot_dimension_numbers<[1], [0], [0], [1], [0, 0, 1, 1], [], []>} : vector<8x8xbf16>, vector<8x32xbf16>, vector<8x32xf32> -> vector<8x32xf32>
    %119 = arith.addf %92, %118 : vector<8x32xf32>
    %120 = vector.extract_strided_slice %37 {offsets = [0, 24], sizes = [8, 8], strides = [1, 1]} : vector<8x96xf32> to vector<8x8xf32>
    %121 = vector.extract_strided_slice %37 {offsets = [0, 56], sizes = [8, 8], strides = [1, 1]} : vector<8x96xf32> to vector<8x8xf32>
    %122 = vector.extract_strided_slice %37 {offsets = [0, 88], sizes = [8, 8], strides = [1, 1]} : vector<8x96xf32> to vector<8x8xf32>
    %123 = arith.truncf %120 : vector<8x8xf32> to vector<8x8xbf16>
    %124 = arith.truncf %121 : vector<8x8xf32> to vector<8x8xbf16>
    %cst_60 = arith.constant dense<0.000000e+00> : vector<8x8xf32>
    %125 = tpu.matmul %123, %124, %cst_60 {dimension_numbers = #tpu.dot_dimension_numbers<[1], [1], [0], [0], [0, 0, 1, 0], [], []>} : vector<8x8xbf16>, vector<8x8xbf16>, vector<8x8xf32> -> vector<8x8xf32>
    %cst_61 = arith.constant 0.353553385 : f32
    %126 = vector.broadcast %cst_61 : f32 to vector<8x8xf32>
    %127 = arith.mulf %125, %126 : vector<8x8xf32>
    %128 = vector.broadcast %8 : vector<1x8xf32> to vector<8x8xf32>
    %129 = arith.addf %127, %128 : vector<8x8xf32>
    %cst_62 = arith.constant dense<0xFF800000> : vector<8xf32>
    %130 = vector.multi_reduction <maximumf>, %129, %cst_62 [1] : vector<8x8xf32> to vector<8xf32>
    %131 = vector.shape_cast %130 : vector<8xf32> to vector<8x1xf32>
    %132 = vector.broadcast %131 : vector<8x1xf32> to vector<8x8xf32>
    %133 = arith.subf %129, %132 : vector<8x8xf32>
    %134 = math.exp %133 : vector<8x8xf32>
    %cst_63 = arith.constant dense<0.000000e+00> : vector<8xf32>
    %135 = vector.multi_reduction <add>, %134, %cst_63 [1] : vector<8x8xf32> to vector<8xf32>
    %136 = vector.shape_cast %135 : vector<8xf32> to vector<8x1xf32>
    %137 = tpu.reciprocal %136 {approx = true} : vector<8x1xf32> -> vector<8x1xf32>
    %138 = vector.broadcast %137 : vector<8x1xf32> to vector<8x8xf32>
    %139 = arith.mulf %134, %138 : vector<8x8xf32>
    %140 = arith.truncf %139 : vector<8x8xf32> to vector<8x8xbf16>
    %141 = arith.truncf %122 : vector<8x8xf32> to vector<8x8xbf16>
    %cst_64 = arith.constant dense<0.000000e+00> : vector<8x8xf32>
    %142 = tpu.matmul %140, %141, %cst_64 {dimension_numbers = #tpu.dot_dimension_numbers<[1], [0], [0], [1], [0, 0, 1, 1], [], []>} : vector<8x8xbf16>, vector<8x8xbf16>, vector<8x8xf32> -> vector<8x8xf32>
    %143 = vector.extract_strided_slice %18 {offsets = [24, 0], sizes = [8, 32], strides = [1, 1]} : vector<32x32xbf16> to vector<8x32xbf16>
    %144 = arith.truncf %142 : vector<8x8xf32> to vector<8x8xbf16>
    %cst_65 = arith.constant dense<0.000000e+00> : vector<8x32xf32>
    %145 = tpu.matmul %144, %143, %cst_65 {dimension_numbers = #tpu.dot_dimension_numbers<[1], [0], [0], [1], [0, 0, 1, 1], [], []>} : vector<8x8xbf16>, vector<8x32xbf16>, vector<8x32xf32> -> vector<8x32xf32>
    %146 = arith.addf %119, %145 : vector<8x32xf32>
    %147 = arith.addf %33, %146 : vector<8x32xf32>
    %cst_66 = arith.constant dense<0.000000e+00> : vector<8xf32>
    %148 = vector.multi_reduction <add>, %147, %cst_66 [1] : vector<8x32xf32> to vector<8xf32>
    %149 = vector.shape_cast %148 : vector<8xf32> to vector<8x1xf32>
    %cst_67 = arith.constant 3.200000e+01 : f32
    %150 = vector.broadcast %cst_67 : f32 to vector<8x1xf32>
    %151 = arith.divf %149, %150 : vector<8x1xf32>
    %152 = vector.broadcast %151 : vector<8x1xf32> to vector<8x32xf32>
    %153 = arith.subf %147, %152 : vector<8x32xf32>
    %154 = arith.mulf %153, %153 : vector<8x32xf32>
    %cst_68 = arith.constant dense<0.000000e+00> : vector<8xf32>
    %155 = vector.multi_reduction <add>, %154, %cst_68 [1] : vector<8x32xf32> to vector<8xf32>
    %156 = vector.shape_cast %155 : vector<8xf32> to vector<8x1xf32>
    %cst_69 = arith.constant 3.200000e+01 : f32
    %157 = vector.broadcast %cst_69 : f32 to vector<8x1xf32>
    %158 = arith.divf %156, %157 : vector<8x1xf32>
    %159 = vector.broadcast %151 : vector<8x1xf32> to vector<8x32xf32>
    %160 = arith.subf %147, %159 : vector<8x32xf32>
    %cst_70 = arith.constant 9.99999996E-13 : f32
    %161 = vector.broadcast %cst_70 : f32 to vector<8x1xf32>
    %162 = arith.addf %158, %161 : vector<8x1xf32>
    %163 = math.rsqrt %162 : vector<8x1xf32>
    %164 = vector.broadcast %163 : vector<8x1xf32> to vector<8x32xf32>
    %165 = arith.mulf %160, %164 : vector<8x32xf32>
    %166 = vector.broadcast %20 : vector<1x32xf32> to vector<8x32xf32>
    %167 = arith.mulf %165, %166 : vector<8x32xf32>
    %168 = vector.broadcast %21 : vector<1x32xf32> to vector<8x32xf32>
    %169 = arith.addf %167, %168 : vector<8x32xf32>
    %170 = arith.truncf %169 : vector<8x32xf32> to vector<8x32xbf16>
    %cst_71 = arith.constant dense<0.000000e+00> : vector<8x64xf32>
    %171 = tpu.matmul %170, %22, %cst_71 {dimension_numbers = #tpu.dot_dimension_numbers<[1], [0], [0], [1], [0, 0, 1, 1], [], []>} : vector<8x32xbf16>, vector<32x64xbf16>, vector<8x64xf32> -> vector<8x64xf32>
    %172 = vector.broadcast %23 : vector<1x64xf32> to vector<8x64xf32>
    %173 = arith.addf %171, %172 : vector<8x64xf32>
    %cst_72 = arith.constant 5.000000e-01 : f32
    %174 = vector.broadcast %cst_72 : f32 to vector<8x64xf32>
    %175 = arith.mulf %174, %173 : vector<8x64xf32>
    %176 = arith.mulf %173, %173 : vector<8x64xf32>
    %177 = arith.mulf %173, %176 : vector<8x64xf32>
    %cst_73 = arith.constant 4.471500e-02 : f32
    %178 = vector.broadcast %cst_73 : f32 to vector<8x64xf32>
    %179 = arith.mulf %178, %177 : vector<8x64xf32>
    %180 = arith.addf %173, %179 : vector<8x64xf32>
    %cst_74 = arith.constant 0.797884583 : f32
    %181 = vector.broadcast %cst_74 : f32 to vector<8x64xf32>
    %182 = arith.mulf %181, %180 : vector<8x64xf32>
    %183 = math.tanh %182 : vector<8x64xf32>
    %cst_75 = arith.constant 1.000000e+00 : f32
    %184 = vector.broadcast %cst_75 : f32 to vector<8x64xf32>
    %185 = arith.addf %184, %183 : vector<8x64xf32>
    %186 = arith.mulf %175, %185 : vector<8x64xf32>
    %187 = arith.truncf %186 : vector<8x64xf32> to vector<8x64xbf16>
    %cst_76 = arith.constant dense<0.000000e+00> : vector<8x32xf32>
    %188 = tpu.matmul %187, %24, %cst_76 {dimension_numbers = #tpu.dot_dimension_numbers<[1], [0], [0], [1], [0, 0, 1, 1], [], []>} : vector<8x64xbf16>, vector<64x32xbf16>, vector<8x32xf32> -> vector<8x32xf32>
    %189 = vector.broadcast %25 : vector<1x32xf32> to vector<8x32xf32>
    %190 = arith.addf %188, %189 : vector<8x32xf32>
    %191 = arith.addf %190, %169 : vector<8x32xf32>
    %cst_77 = arith.constant dense<0.000000e+00> : vector<8xf32>
    %192 = vector.multi_reduction <add>, %191, %cst_77 [1] : vector<8x32xf32> to vector<8xf32>
    %193 = vector.shape_cast %192 : vector<8xf32> to vector<8x1xf32>
    %cst_78 = arith.constant 3.200000e+01 : f32
    %194 = vector.broadcast %cst_78 : f32 to vector<8x1xf32>
    %195 = arith.divf %193, %194 : vector<8x1xf32>
    %196 = vector.broadcast %195 : vector<8x1xf32> to vector<8x32xf32>
    %197 = arith.subf %191, %196 : vector<8x32xf32>
    %198 = arith.mulf %197, %197 : vector<8x32xf32>
    %cst_79 = arith.constant dense<0.000000e+00> : vector<8xf32>
    %199 = vector.multi_reduction <add>, %198, %cst_79 [1] : vector<8x32xf32> to vector<8xf32>
    %200 = vector.shape_cast %199 : vector<8xf32> to vector<8x1xf32>
    %cst_80 = arith.constant 3.200000e+01 : f32
    %201 = vector.broadcast %cst_80 : f32 to vector<8x1xf32>
    %202 = arith.divf %200, %201 : vector<8x1xf32>
    %203 = vector.broadcast %195 : vector<8x1xf32> to vector<8x32xf32>
    %204 = arith.subf %191, %203 : vector<8x32xf32>
    %cst_81 = arith.constant 9.99999996E-13 : f32
    %205 = vector.broadcast %cst_81 : f32 to vector<8x1xf32>
    %206 = arith.addf %202, %205 : vector<8x1xf32>
    %207 = math.rsqrt %206 : vector<8x1xf32>
    %208 = vector.broadcast %207 : vector<8x1xf32> to vector<8x32xf32>
    %209 = arith.mulf %204, %208 : vector<8x32xf32>
    %210 = vector.broadcast %26 : vector<1x32xf32> to vector<8x32xf32>
    %211 = arith.mulf %209, %210 : vector<8x32xf32>
    %212 = vector.broadcast %27 : vector<1x32xf32> to vector<8x32xf32>
    %213 = arith.addf %211, %212 : vector<8x32xf32>
    %214 = arith.truncf %213 : vector<8x32xf32> to vector<8x32xbf16>
    %cst_82 = arith.constant dense<0.000000e+00> : vector<8x96xf32>
    %215 = tpu.matmul %214, %16, %cst_82 {dimension_numbers = #tpu.dot_dimension_numbers<[1], [0], [0], [1], [0, 0, 1, 1], [], []>} : vector<8x32xbf16>, vector<32x96xbf16>, vector<8x96xf32> -> vector<8x96xf32>
    %216 = vector.broadcast %17 : vector<1x96xf32> to vector<8x96xf32>
    %217 = arith.addf %215, %216 : vector<8x96xf32>
    %218 = vector.extract_strided_slice %217 {offsets = [0, 0], sizes = [8, 8], strides = [1, 1]} : vector<8x96xf32> to vector<8x8xf32>
    %219 = vector.extract_strided_slice %217 {offsets = [0, 32], sizes = [8, 8], strides = [1, 1]} : vector<8x96xf32> to vector<8x8xf32>
    %220 = vector.extract_strided_slice %217 {offsets = [0, 64], sizes = [8, 8], strides = [1, 1]} : vector<8x96xf32> to vector<8x8xf32>
    %221 = arith.truncf %218 : vector<8x8xf32> to vector<8x8xbf16>
    %222 = arith.truncf %219 : vector<8x8xf32> to vector<8x8xbf16>
    %cst_83 = arith.constant dense<0.000000e+00> : vector<8x8xf32>
    %223 = tpu.matmul %221, %222, %cst_83 {dimension_numbers = #tpu.dot_dimension_numbers<[1], [1], [0], [0], [0, 0, 1, 0], [], []>} : vector<8x8xbf16>, vector<8x8xbf16>, vector<8x8xf32> -> vector<8x8xf32>
    %cst_84 = arith.constant 0.353553385 : f32
    %224 = vector.broadcast %cst_84 : f32 to vector<8x8xf32>
    %225 = arith.mulf %223, %224 : vector<8x8xf32>
    %226 = vector.broadcast %8 : vector<1x8xf32> to vector<8x8xf32>
    %227 = arith.addf %225, %226 : vector<8x8xf32>
    %cst_85 = arith.constant dense<0xFF800000> : vector<8xf32>
    %228 = vector.multi_reduction <maximumf>, %227, %cst_85 [1] : vector<8x8xf32> to vector<8xf32>
    %229 = vector.shape_cast %228 : vector<8xf32> to vector<8x1xf32>
    %230 = vector.broadcast %229 : vector<8x1xf32> to vector<8x8xf32>
    %231 = arith.subf %227, %230 : vector<8x8xf32>
    %232 = math.exp %231 : vector<8x8xf32>
    %cst_86 = arith.constant dense<0.000000e+00> : vector<8xf32>
    %233 = vector.multi_reduction <add>, %232, %cst_86 [1] : vector<8x8xf32> to vector<8xf32>
    %234 = vector.shape_cast %233 : vector<8xf32> to vector<8x1xf32>
    %235 = tpu.reciprocal %234 {approx = true} : vector<8x1xf32> -> vector<8x1xf32>
    %236 = vector.broadcast %235 : vector<8x1xf32> to vector<8x8xf32>
    %237 = arith.mulf %232, %236 : vector<8x8xf32>
    %238 = arith.truncf %237 : vector<8x8xf32> to vector<8x8xbf16>
    %239 = arith.truncf %220 : vector<8x8xf32> to vector<8x8xbf16>
    %cst_87 = arith.constant dense<0.000000e+00> : vector<8x8xf32>
    %240 = tpu.matmul %238, %239, %cst_87 {dimension_numbers = #tpu.dot_dimension_numbers<[1], [0], [0], [1], [0, 0, 1, 1], [], []>} : vector<8x8xbf16>, vector<8x8xbf16>, vector<8x8xf32> -> vector<8x8xf32>
    %241 = vector.extract_strided_slice %18 {offsets = [0, 0], sizes = [8, 32], strides = [1, 1]} : vector<32x32xbf16> to vector<8x32xbf16>
    %242 = arith.truncf %240 : vector<8x8xf32> to vector<8x8xbf16>
    %cst_88 = arith.constant dense<0.000000e+00> : vector<8x32xf32>
    %243 = tpu.matmul %242, %241, %cst_88 {dimension_numbers = #tpu.dot_dimension_numbers<[1], [0], [0], [1], [0, 0, 1, 1], [], []>} : vector<8x8xbf16>, vector<8x32xbf16>, vector<8x32xf32> -> vector<8x32xf32>
    %244 = vector.broadcast %19 : vector<1x32xf32> to vector<8x32xf32>
    %245 = arith.addf %244, %243 : vector<8x32xf32>
    %246 = vector.extract_strided_slice %217 {offsets = [0, 8], sizes = [8, 8], strides = [1, 1]} : vector<8x96xf32> to vector<8x8xf32>
    %247 = vector.extract_strided_slice %217 {offsets = [0, 40], sizes = [8, 8], strides = [1, 1]} : vector<8x96xf32> to vector<8x8xf32>
    %248 = vector.extract_strided_slice %217 {offsets = [0, 72], sizes = [8, 8], strides = [1, 1]} : vector<8x96xf32> to vector<8x8xf32>
    %249 = arith.truncf %246 : vector<8x8xf32> to vector<8x8xbf16>
    %250 = arith.truncf %247 : vector<8x8xf32> to vector<8x8xbf16>
    %cst_89 = arith.constant dense<0.000000e+00> : vector<8x8xf32>
    %251 = tpu.matmul %249, %250, %cst_89 {dimension_numbers = #tpu.dot_dimension_numbers<[1], [1], [0], [0], [0, 0, 1, 0], [], []>} : vector<8x8xbf16>, vector<8x8xbf16>, vector<8x8xf32> -> vector<8x8xf32>
    %cst_90 = arith.constant 0.353553385 : f32
    %252 = vector.broadcast %cst_90 : f32 to vector<8x8xf32>
    %253 = arith.mulf %251, %252 : vector<8x8xf32>
    %254 = vector.broadcast %8 : vector<1x8xf32> to vector<8x8xf32>
    %255 = arith.addf %253, %254 : vector<8x8xf32>
    %cst_91 = arith.constant dense<0xFF800000> : vector<8xf32>
    %256 = vector.multi_reduction <maximumf>, %255, %cst_91 [1] : vector<8x8xf32> to vector<8xf32>
    %257 = vector.shape_cast %256 : vector<8xf32> to vector<8x1xf32>
    %258 = vector.broadcast %257 : vector<8x1xf32> to vector<8x8xf32>
    %259 = arith.subf %255, %258 : vector<8x8xf32>
    %260 = math.exp %259 : vector<8x8xf32>
    %cst_92 = arith.constant dense<0.000000e+00> : vector<8xf32>
    %261 = vector.multi_reduction <add>, %260, %cst_92 [1] : vector<8x8xf32> to vector<8xf32>
    %262 = vector.shape_cast %261 : vector<8xf32> to vector<8x1xf32>
    %263 = tpu.reciprocal %262 {approx = true} : vector<8x1xf32> -> vector<8x1xf32>
    %264 = vector.broadcast %263 : vector<8x1xf32> to vector<8x8xf32>
    %265 = arith.mulf %260, %264 : vector<8x8xf32>
    %266 = arith.truncf %265 : vector<8x8xf32> to vector<8x8xbf16>
    %267 = arith.truncf %248 : vector<8x8xf32> to vector<8x8xbf16>
    %cst_93 = arith.constant dense<0.000000e+00> : vector<8x8xf32>
    %268 = tpu.matmul %266, %267, %cst_93 {dimension_numbers = #tpu.dot_dimension_numbers<[1], [0], [0], [1], [0, 0, 1, 1], [], []>} : vector<8x8xbf16>, vector<8x8xbf16>, vector<8x8xf32> -> vector<8x8xf32>
    %269 = vector.extract_strided_slice %18 {offsets = [8, 0], sizes = [8, 32], strides = [1, 1]} : vector<32x32xbf16> to vector<8x32xbf16>
    %270 = arith.truncf %268 : vector<8x8xf32> to vector<8x8xbf16>
    %cst_94 = arith.constant dense<0.000000e+00> : vector<8x32xf32>
    %271 = tpu.matmul %270, %269, %cst_94 {dimension_numbers = #tpu.dot_dimension_numbers<[1], [0], [0], [1], [0, 0, 1, 1], [], []>} : vector<8x8xbf16>, vector<8x32xbf16>, vector<8x32xf32> -> vector<8x32xf32>
    %272 = arith.addf %245, %271 : vector<8x32xf32>
    %273 = vector.extract_strided_slice %217 {offsets = [0, 16], sizes = [8, 8], strides = [1, 1]} : vector<8x96xf32> to vector<8x8xf32>
    %274 = vector.extract_strided_slice %217 {offsets = [0, 48], sizes = [8, 8], strides = [1, 1]} : vector<8x96xf32> to vector<8x8xf32>
    %275 = vector.extract_strided_slice %217 {offsets = [0, 80], sizes = [8, 8], strides = [1, 1]} : vector<8x96xf32> to vector<8x8xf32>
    %276 = arith.truncf %273 : vector<8x8xf32> to vector<8x8xbf16>
    %277 = arith.truncf %274 : vector<8x8xf32> to vector<8x8xbf16>
    %cst_95 = arith.constant dense<0.000000e+00> : vector<8x8xf32>
    %278 = tpu.matmul %276, %277, %cst_95 {dimension_numbers = #tpu.dot_dimension_numbers<[1], [1], [0], [0], [0, 0, 1, 0], [], []>} : vector<8x8xbf16>, vector<8x8xbf16>, vector<8x8xf32> -> vector<8x8xf32>
    %cst_96 = arith.constant 0.353553385 : f32
    %279 = vector.broadcast %cst_96 : f32 to vector<8x8xf32>
    %280 = arith.mulf %278, %279 : vector<8x8xf32>
    %281 = vector.broadcast %8 : vector<1x8xf32> to vector<8x8xf32>
    %282 = arith.addf %280, %281 : vector<8x8xf32>
    %cst_97 = arith.constant dense<0xFF800000> : vector<8xf32>
    %283 = vector.multi_reduction <maximumf>, %282, %cst_97 [1] : vector<8x8xf32> to vector<8xf32>
    %284 = vector.shape_cast %283 : vector<8xf32> to vector<8x1xf32>
    %285 = vector.broadcast %284 : vector<8x1xf32> to vector<8x8xf32>
    %286 = arith.subf %282, %285 : vector<8x8xf32>
    %287 = math.exp %286 : vector<8x8xf32>
    %cst_98 = arith.constant dense<0.000000e+00> : vector<8xf32>
    %288 = vector.multi_reduction <add>, %287, %cst_98 [1] : vector<8x8xf32> to vector<8xf32>
    %289 = vector.shape_cast %288 : vector<8xf32> to vector<8x1xf32>
    %290 = tpu.reciprocal %289 {approx = true} : vector<8x1xf32> -> vector<8x1xf32>
    %291 = vector.broadcast %290 : vector<8x1xf32> to vector<8x8xf32>
    %292 = arith.mulf %287, %291 : vector<8x8xf32>
    %293 = arith.truncf %292 : vector<8x8xf32> to vector<8x8xbf16>
    %294 = arith.truncf %275 : vector<8x8xf32> to vector<8x8xbf16>
    %cst_99 = arith.constant dense<0.000000e+00> : vector<8x8xf32>
    %295 = tpu.matmul %293, %294, %cst_99 {dimension_numbers = #tpu.dot_dimension_numbers<[1], [0], [0], [1], [0, 0, 1, 1], [], []>} : vector<8x8xbf16>, vector<8x8xbf16>, vector<8x8xf32> -> vector<8x8xf32>
    %296 = vector.extract_strided_slice %18 {offsets = [16, 0], sizes = [8, 32], strides = [1, 1]} : vector<32x32xbf16> to vector<8x32xbf16>
    %297 = arith.truncf %295 : vector<8x8xf32> to vector<8x8xbf16>
    %cst_100 = arith.constant dense<0.000000e+00> : vector<8x32xf32>
    %298 = tpu.matmul %297, %296, %cst_100 {dimension_numbers = #tpu.dot_dimension_numbers<[1], [0], [0], [1], [0, 0, 1, 1], [], []>} : vector<8x8xbf16>, vector<8x32xbf16>, vector<8x32xf32> -> vector<8x32xf32>
    %299 = arith.addf %272, %298 : vector<8x32xf32>
    %300 = vector.extract_strided_slice %217 {offsets = [0, 24], sizes = [8, 8], strides = [1, 1]} : vector<8x96xf32> to vector<8x8xf32>
    %301 = vector.extract_strided_slice %217 {offsets = [0, 56], sizes = [8, 8], strides = [1, 1]} : vector<8x96xf32> to vector<8x8xf32>
    %302 = vector.extract_strided_slice %217 {offsets = [0, 88], sizes = [8, 8], strides = [1, 1]} : vector<8x96xf32> to vector<8x8xf32>
    %303 = arith.truncf %300 : vector<8x8xf32> to vector<8x8xbf16>
    %304 = arith.truncf %301 : vector<8x8xf32> to vector<8x8xbf16>
    %cst_101 = arith.constant dense<0.000000e+00> : vector<8x8xf32>
    %305 = tpu.matmul %303, %304, %cst_101 {dimension_numbers = #tpu.dot_dimension_numbers<[1], [1], [0], [0], [0, 0, 1, 0], [], []>} : vector<8x8xbf16>, vector<8x8xbf16>, vector<8x8xf32> -> vector<8x8xf32>
    %cst_102 = arith.constant 0.353553385 : f32
    %306 = vector.broadcast %cst_102 : f32 to vector<8x8xf32>
    %307 = arith.mulf %305, %306 : vector<8x8xf32>
    %308 = vector.broadcast %8 : vector<1x8xf32> to vector<8x8xf32>
    %309 = arith.addf %307, %308 : vector<8x8xf32>
    %cst_103 = arith.constant dense<0xFF800000> : vector<8xf32>
    %310 = vector.multi_reduction <maximumf>, %309, %cst_103 [1] : vector<8x8xf32> to vector<8xf32>
    %311 = vector.shape_cast %310 : vector<8xf32> to vector<8x1xf32>
    %312 = vector.broadcast %311 : vector<8x1xf32> to vector<8x8xf32>
    %313 = arith.subf %309, %312 : vector<8x8xf32>
    %314 = math.exp %313 : vector<8x8xf32>
    %cst_104 = arith.constant dense<0.000000e+00> : vector<8xf32>
    %315 = vector.multi_reduction <add>, %314, %cst_104 [1] : vector<8x8xf32> to vector<8xf32>
    %316 = vector.shape_cast %315 : vector<8xf32> to vector<8x1xf32>
    %317 = tpu.reciprocal %316 {approx = true} : vector<8x1xf32> -> vector<8x1xf32>
    %318 = vector.broadcast %317 : vector<8x1xf32> to vector<8x8xf32>
    %319 = arith.mulf %314, %318 : vector<8x8xf32>
    %320 = arith.truncf %319 : vector<8x8xf32> to vector<8x8xbf16>
    %321 = arith.truncf %302 : vector<8x8xf32> to vector<8x8xbf16>
    %cst_105 = arith.constant dense<0.000000e+00> : vector<8x8xf32>
    %322 = tpu.matmul %320, %321, %cst_105 {dimension_numbers = #tpu.dot_dimension_numbers<[1], [0], [0], [1], [0, 0, 1, 1], [], []>} : vector<8x8xbf16>, vector<8x8xbf16>, vector<8x8xf32> -> vector<8x8xf32>
    %323 = vector.extract_strided_slice %18 {offsets = [24, 0], sizes = [8, 32], strides = [1, 1]} : vector<32x32xbf16> to vector<8x32xbf16>
    %324 = arith.truncf %322 : vector<8x8xf32> to vector<8x8xbf16>
    %cst_106 = arith.constant dense<0.000000e+00> : vector<8x32xf32>
    %325 = tpu.matmul %324, %323, %cst_106 {dimension_numbers = #tpu.dot_dimension_numbers<[1], [0], [0], [1], [0, 0, 1, 1], [], []>} : vector<8x8xbf16>, vector<8x32xbf16>, vector<8x32xf32> -> vector<8x32xf32>
    %326 = arith.addf %299, %325 : vector<8x32xf32>
    %327 = arith.addf %213, %326 : vector<8x32xf32>
    %cst_107 = arith.constant dense<0.000000e+00> : vector<8xf32>
    %328 = vector.multi_reduction <add>, %327, %cst_107 [1] : vector<8x32xf32> to vector<8xf32>
    %329 = vector.shape_cast %328 : vector<8xf32> to vector<8x1xf32>
    %cst_108 = arith.constant 3.200000e+01 : f32
    %330 = vector.broadcast %cst_108 : f32 to vector<8x1xf32>
    %331 = arith.divf %329, %330 : vector<8x1xf32>
    %332 = vector.broadcast %331 : vector<8x1xf32> to vector<8x32xf32>
    %333 = arith.subf %327, %332 : vector<8x32xf32>
    %334 = arith.mulf %333, %333 : vector<8x32xf32>
    %cst_109 = arith.constant dense<0.000000e+00> : vector<8xf32>
    %335 = vector.multi_reduction <add>, %334, %cst_109 [1] : vector<8x32xf32> to vector<8xf32>
    %336 = vector.shape_cast %335 : vector<8xf32> to vector<8x1xf32>
    %cst_110 = arith.constant 3.200000e+01 : f32
    %337 = vector.broadcast %cst_110 : f32 to vector<8x1xf32>
    %338 = arith.divf %336, %337 : vector<8x1xf32>
    %339 = vector.broadcast %331 : vector<8x1xf32> to vector<8x32xf32>
    %340 = arith.subf %327, %339 : vector<8x32xf32>
    %cst_111 = arith.constant 9.99999996E-13 : f32
    %341 = vector.broadcast %cst_111 : f32 to vector<8x1xf32>
    %342 = arith.addf %338, %341 : vector<8x1xf32>
    %343 = math.rsqrt %342 : vector<8x1xf32>
    %344 = vector.broadcast %343 : vector<8x1xf32> to vector<8x32xf32>
    %345 = arith.mulf %340, %344 : vector<8x32xf32>
    %346 = vector.broadcast %20 : vector<1x32xf32> to vector<8x32xf32>
    %347 = arith.mulf %345, %346 : vector<8x32xf32>
    %348 = vector.broadcast %21 : vector<1x32xf32> to vector<8x32xf32>
    %349 = arith.addf %347, %348 : vector<8x32xf32>
    %350 = arith.truncf %349 : vector<8x32xf32> to vector<8x32xbf16>
    %cst_112 = arith.constant dense<0.000000e+00> : vector<8x64xf32>
    %351 = tpu.matmul %350, %22, %cst_112 {dimension_numbers = #tpu.dot_dimension_numbers<[1], [0], [0], [1], [0, 0, 1, 1], [], []>} : vector<8x32xbf16>, vector<32x64xbf16>, vector<8x64xf32> -> vector<8x64xf32>
    %352 = vector.broadcast %23 : vector<1x64xf32> to vector<8x64xf32>
    %353 = arith.addf %351, %352 : vector<8x64xf32>
    %cst_113 = arith.constant 5.000000e-01 : f32
    %354 = vector.broadcast %cst_113 : f32 to vector<8x64xf32>
    %355 = arith.mulf %354, %353 : vector<8x64xf32>
    %356 = arith.mulf %353, %353 : vector<8x64xf32>
    %357 = arith.mulf %353, %356 : vector<8x64xf32>
    %cst_114 = arith.constant 4.471500e-02 : f32
    %358 = vector.broadcast %cst_114 : f32 to vector<8x64xf32>
    %359 = arith.mulf %358, %357 : vector<8x64xf32>
    %360 = arith.addf %353, %359 : vector<8x64xf32>
    %cst_115 = arith.constant 0.797884583 : f32
    %361 = vector.broadcast %cst_115 : f32 to vector<8x64xf32>
    %362 = arith.mulf %361, %360 : vector<8x64xf32>
    %363 = math.tanh %362 : vector<8x64xf32>
    %cst_116 = arith.constant 1.000000e+00 : f32
    %364 = vector.broadcast %cst_116 : f32 to vector<8x64xf32>
    %365 = arith.addf %364, %363 : vector<8x64xf32>
    %366 = arith.mulf %355, %365 : vector<8x64xf32>
    %367 = arith.truncf %366 : vector<8x64xf32> to vector<8x64xbf16>
    %cst_117 = arith.constant dense<0.000000e+00> : vector<8x32xf32>
    %368 = tpu.matmul %367, %24, %cst_117 {dimension_numbers = #tpu.dot_dimension_numbers<[1], [0], [0], [1], [0, 0, 1, 1], [], []>} : vector<8x64xbf16>, vector<64x32xbf16>, vector<8x32xf32> -> vector<8x32xf32>
    %369 = vector.broadcast %25 : vector<1x32xf32> to vector<8x32xf32>
    %370 = arith.addf %368, %369 : vector<8x32xf32>
    %371 = arith.addf %370, %349 : vector<8x32xf32>
    %cst_118 = arith.constant dense<0.000000e+00> : vector<8xf32>
    %372 = vector.multi_reduction <add>, %371, %cst_118 [1] : vector<8x32xf32> to vector<8xf32>
    %373 = vector.shape_cast %372 : vector<8xf32> to vector<8x1xf32>
    %cst_119 = arith.constant 3.200000e+01 : f32
    %374 = vector.broadcast %cst_119 : f32 to vector<8x1xf32>
    %375 = arith.divf %373, %374 : vector<8x1xf32>
    %376 = vector.broadcast %375 : vector<8x1xf32> to vector<8x32xf32>
    %377 = arith.subf %371, %376 : vector<8x32xf32>
    %378 = arith.mulf %377, %377 : vector<8x32xf32>
    %cst_120 = arith.constant dense<0.000000e+00> : vector<8xf32>
    %379 = vector.multi_reduction <add>, %378, %cst_120 [1] : vector<8x32xf32> to vector<8xf32>
    %380 = vector.shape_cast %379 : vector<8xf32> to vector<8x1xf32>
    %cst_121 = arith.constant 3.200000e+01 : f32
    %381 = vector.broadcast %cst_121 : f32 to vector<8x1xf32>
    %382 = arith.divf %380, %381 : vector<8x1xf32>
    %383 = vector.broadcast %375 : vector<8x1xf32> to vector<8x32xf32>
    %384 = arith.subf %371, %383 : vector<8x32xf32>
    %cst_122 = arith.constant 9.99999996E-13 : f32
    %385 = vector.broadcast %cst_122 : f32 to vector<8x1xf32>
    %386 = arith.addf %382, %385 : vector<8x1xf32>
    %387 = math.rsqrt %386 : vector<8x1xf32>
    %388 = vector.broadcast %387 : vector<8x1xf32> to vector<8x32xf32>
    %389 = arith.mulf %384, %388 : vector<8x32xf32>
    %390 = vector.broadcast %26 : vector<1x32xf32> to vector<8x32xf32>
    %391 = arith.mulf %389, %390 : vector<8x32xf32>
    %392 = vector.broadcast %27 : vector<1x32xf32> to vector<8x32xf32>
    %393 = arith.addf %391, %392 : vector<8x32xf32>
    %c0_123 = arith.constant 0 : index
    %c0_124 = arith.constant 0 : index
    %394 = vector.load %arg19[%c0_123, %c0_124] : memref<32x32xbf16, #tpu.memory_space<vmem>>, vector<32x32xbf16>
    %395 = arith.truncf %393 : vector<8x32xf32> to vector<8x32xbf16>
    %cst_125 = arith.constant dense<0.000000e+00> : vector<8x32xf32>
    %396 = tpu.matmul %395, %394, %cst_125 {dimension_numbers = #tpu.dot_dimension_numbers<[1], [0], [0], [1], [0, 0, 1, 1], [], []>} : vector<8x32xbf16>, vector<32x32xbf16>, vector<8x32xf32> -> vector<8x32xf32>
    %c0_126 = arith.constant 0 : index
    %c0_127 = arith.constant 0 : index
    %397 = vector.load %arg20[%c0_126, %c0_127] : memref<1x32xf32, #tpu.memory_space<vmem>>, vector<1x32xf32>
    %398 = vector.broadcast %397 : vector<1x32xf32> to vector<8x32xf32>
    %399 = arith.addf %396, %398 : vector<8x32xf32>
    %cst_128 = arith.constant 0.000000e+00 : f32
    %400 = vector.broadcast %cst_128 : f32 to vector<8x32xf32>
    %401 = arith.maximumf %399, %400 : vector<8x32xf32>
    %c0_129 = arith.constant 0 : index
    %c0_130 = arith.constant 0 : index
    %402 = vector.load %arg21[%c0_129, %c0_130] : memref<32x128xbf16, #tpu.memory_space<vmem>>, vector<32x128xbf16>
    %403 = arith.truncf %401 : vector<8x32xf32> to vector<8x32xbf16>
    %cst_131 = arith.constant dense<0.000000e+00> : vector<8x128xf32>
    %404 = tpu.matmul %403, %402, %cst_131 {dimension_numbers = #tpu.dot_dimension_numbers<[1], [0], [0], [1], [0, 0, 1, 1], [], []>} : vector<8x32xbf16>, vector<32x128xbf16>, vector<8x128xf32> -> vector<8x128xf32>
    %c0_132 = arith.constant 0 : index
    %c0_133 = arith.constant 0 : index
    %405 = vector.load %arg22[%c0_132, %c0_133] : memref<1x128xf32, #tpu.memory_space<vmem>>, vector<1x128xf32>
    %406 = vector.broadcast %405 : vector<1x128xf32> to vector<8x128xf32>
    %407 = arith.addf %404, %406 : vector<8x128xf32>
    %c0_134 = arith.constant 0 : index
    %c0_135 = arith.constant 0 : index
    %c0_136 = arith.constant 0 : index
    %408 = vector.load %arg23[%c0_134, %c0_135, %c0_136] : memref<1x8x128xf32, #tpu.memory_space<vmem>>, vector<1x8x128xf32>
    %409 = vector.shape_cast %408 : vector<1x8x128xf32> to vector<8x128xf32>
    %410 = vector.shape_cast %407 : vector<8x128xf32> to vector<1x8x128xf32>
    tpu.vector_store %arg23[%c0_134, %c0_135, %c0_136], %410 {strides = array<i32>} : memref<1x8x128xf32, #tpu.memory_space<vmem>>, vector<1x8x128xf32>,
    return
  }
  func.func @transform_0(%arg0: i32) -> (i32, i32, i32) {
    %c0_i32 = arith.constant 0 : i32
    %c0_i32_0 = arith.constant 0 : i32
    %c0_i32_1 = arith.constant 0 : i32
    return %arg0, %c0_i32, %c0_i32_0 : i32, i32, i32
  }
  func.func @transform_1(%arg0: i32) -> (i32, i32, i32) {
    %c0_i32 = arith.constant 0 : i32
    %c0_i32_0 = arith.constant 0 : i32
    %c0_i32_1 = arith.constant 0 : i32
    return %arg0, %c0_i32, %c0_i32_0 : i32, i32, i32
  }
  func.func @transform_2(%arg0: i32) -> (i32, i32) {
    %c0_i32 = arith.constant 0 : i32
    %c0_i32_0 = arith.constant 0 : i32
    %c0_i32_1 = arith.constant 0 : i32
    return %c0_i32, %c0_i32_0 : i32, i32
  }
  func.func @transform_3(%arg0: i32) -> (i32, i32) {
    %c0_i32 = arith.constant 0 : i32
    %c0_i32_0 = arith.constant 0 : i32
    %c0_i32_1 = arith.constant 0 : i32
    return %c0_i32, %c0_i32_0 : i32, i32
  }
  func.func @transform_4(%arg0: i32) -> (i32, i32) {
    %c0_i32 = arith.constant 0 : i32
    %c0_i32_0 = arith.constant 0 : i32
    %c0_i32_1 = arith.constant 0 : i32
    return %c0_i32, %c0_i32_0 : i32, i32
  }
  func.func @transform_5(%arg0: i32) -> (i32, i32) {
    %c0_i32 = arith.constant 0 : i32
    %c0_i32_0 = arith.constant 0 : i32
    %c0_i32_1 = arith.constant 0 : i32
    return %c0_i32, %c0_i32_0 : i32, i32
  }
  func.func @transform_6(%arg0: i32) -> (i32, i32) {
    %c0_i32 = arith.constant 0 : i32
    %c0_i32_0 = arith.constant 0 : i32
    %c0_i32_1 = arith.constant 0 : i32
    return %c0_i32, %c0_i32_0 : i32, i32
  }
  func.func @transform_7(%arg0: i32) -> (i32, i32) {
    %c0_i32 = arith.constant 0 : i32
    %c0_i32_0 = arith.constant 0 : i32
    %c0_i32_1 = arith.constant 0 : i32
    return %c0_i32, %c0_i32_0 : i32, i32
  }
  func.func @transform_8(%arg0: i32) -> (i32, i32) {
    %c0_i32 = arith.constant 0 : i32
    %c0_i32_0 = arith.constant 0 : i32
    %c0_i32_1 = arith.constant 0 : i32
    return %c0_i32, %c0_i32_0 : i32, i32
  }
  func.func @transform_9(%arg0: i32) -> (i32, i32) {
    %c0_i32 = arith.constant 0 : i32
    %c0_i32_0 = arith.constant 0 : i32
    %c0_i32_1 = arith.constant 0 : i32
    return %c0_i32, %c0_i32_0 : i32, i32
  }
  func.func @transform_10(%arg0: i32) -> (i32, i32) {
    %c0_i32 = arith.constant 0 : i32
    %c0_i32_0 = arith.constant 0 : i32
    %c0_i32_1 = arith.constant 0 : i32
    return %c0_i32, %c0_i32_0 : i32, i32
  }
  func.func @transform_11(%arg0: i32) -> (i32, i32) {
    %c0_i32 = arith.constant 0 : i32
    %c0_i32_0 = arith.constant 0 : i32
    %c0_i32_1 = arith.constant 0 : i32
    return %c0_i32, %c0_i32_0 : i32, i32
  }
  func.func @transform_12(%arg0: i32) -> (i32, i32) {
    %c0_i32 = arith.constant 0 : i32
    %c0_i32_0 = arith.constant 0 : i32
    %c0_i32_1 = arith.constant 0 : i32
    return %c0_i32, %c0_i32_0 : i32, i32
  }
  func.func @transform_13(%arg0: i32) -> (i32, i32) {
    %c0_i32 = arith.constant 0 : i32
    %c0_i32_0 = arith.constant 0 : i32
    %c0_i32_1 = arith.constant 0 : i32
    return %c0_i32, %c0_i32_0 : i32, i32
  }
  func.func @transform_14(%arg0: i32) -> (i32, i32) {
    %c0_i32 = arith.constant 0 : i32
    %c0_i32_0 = arith.constant 0 : i32
    %c0_i32_1 = arith.constant 0 : i32
    return %c0_i32, %c0_i32_0 : i32, i32
  }
  func.func @transform_15(%arg0: i32) -> (i32, i32) {
    %c0_i32 = arith.constant 0 : i32
    %c0_i32_0 = arith.constant 0 : i32
    %c0_i32_1 = arith.constant 0 : i32
    return %c0_i32, %c0_i32_0 : i32, i32
  }
  func.func @transform_16(%arg0: i32) -> (i32, i32) {
    %c0_i32 = arith.constant 0 : i32
    %c0_i32_0 = arith.constant 0 : i32
    %c0_i32_1 = arith.constant 0 : i32
    return %c0_i32, %c0_i32_0 : i32, i32
  }
  func.func @transform_17(%arg0: i32) -> (i32, i32) {
    %c0_i32 = arith.constant 0 : i32
    %c0_i32_0 = arith.constant 0 : i32
    %c0_i32_1 = arith.constant 0 : i32
    return %c0_i32, %c0_i32_0 : i32, i32
  }
  func.func @transform_18(%arg0: i32) -> (i32, i32) {
    %c0_i32 = arith.constant 0 : i32
    %c0_i32_0 = arith.constant 0 : i32
    %c0_i32_1 = arith.constant 0 : i32
    return %c0_i32, %c0_i32_0 : i32, i32
  }
  func.func @transform_19(%arg0: i32) -> (i32, i32) {
    %c0_i32 = arith.constant 0 : i32
    %c0_i32_0 = arith.constant 0 : i32
    %c0_i32_1 = arith.constant 0 : i32
    return %c0_i32, %c0_i32_0 : i32, i32
  }
  func.func @transform_20(%arg0: i32) -> (i32, i32) {
    %c0_i32 = arith.constant 0 : i32
    %c0_i32_0 = arith.constant 0 : i32
    %c0_i32_1 = arith.constant 0 : i32
    return %c0_i32, %c0_i32_0 : i32, i32
  }
  func.func @transform_21(%arg0: i32) -> (i32, i32) {
    %c0_i32 = arith.constant 0 : i32
    %c0_i32_0 = arith.constant 0 : i32
    %c0_i32_1 = arith.constant 0 : i32
    return %c0_i32, %c0_i32_0 : i32, i32
  }
  func.func @transform_22(%arg0: i32) -> (i32, i32, i32) {
    %c0_i32 = arith.constant 0 : i32
    %c0_i32_0 = arith.constant 0 : i32
    %c0_i32_1 = arith.constant 0 : i32
    return %arg0, %c0_i32, %c0_i32_0 : i32, i32, i32
  }
}

</mosaic_0001>

<llo_original>
// kernel: bruno_forward.1
$region0: #{bruno_forward.1}
  #allocation0 [shape = 'u32[]', space=smem, size = 0x4, offset = 0x4, fixed_abs, tag = 'smem constant byte address 0x4 - core index']
  #allocation1 [shape = 'u32[144,128]{1,0:T(1,128)}', space=vmem, size = 0x12000, scoped, tag = 'internal scratch']
  %s0 = inlined_call_operand.hbm [shape: f32[2,8,16], index: 0, kind: input, shape index: {}]
  %s1 = inlined_call_operand.hbm [shape: f32[2,1,8], index: 1, kind: input, shape index: {}]
  %s2 = inlined_call_operand.hbm [shape: bf16[16,24], index: 2, kind: input, shape index: {}]
  %s3 = inlined_call_operand.hbm [shape: f32[1,24], index: 3, kind: input, shape index: {}]
  %s4 = inlined_call_operand.hbm [shape: bf16[24,32], index: 4, kind: input, shape index: {}]
  %s5 = inlined_call_operand.hbm [shape: f32[1,32], index: 5, kind: input, shape index: {}]
  %s6 = inlined_call_operand.hbm [shape: bf16[32,96], index: 6, kind: input, shape index: {}]
  %s7 = inlined_call_operand.hbm [shape: f32[1,96], index: 7, kind: input, shape index: {}]
  %s8 = inlined_call_operand.hbm [shape: bf16[32,32], index: 8, kind: input, shape index: {}]
  %s9 = inlined_call_operand.hbm [shape: f32[1,32], index: 9, kind: input, shape index: {}]
  %s10 = inlined_call_operand.hbm [shape: f32[1,32], index: 10, kind: input, shape index: {}]
  %s11 = inlined_call_operand.hbm [shape: f32[1,32], index: 11, kind: input, shape index: {}]
  %s12 = inlined_call_operand.hbm [shape: bf16[32,64], index: 12, kind: input, shape index: {}]
  %s13 = inlined_call_operand.hbm [shape: f32[1,64], index: 13, kind: input, shape index: {}]
  %s14 = inlined_call_operand.hbm [shape: bf16[64,32], index: 14, kind: input, shape index: {}]
  %s15 = inlined_call_operand.hbm [shape: f32[1,32], index: 15, kind: input, shape index: {}]
  %s16 = inlined_call_operand.hbm [shape: f32[1,32], index: 16, kind: input, shape index: {}]
  %s17 = inlined_call_operand.hbm [shape: f32[1,32], index: 17, kind: input, shape index: {}]
  %s18 = inlined_call_operand.hbm [shape: bf16[32,32], index: 18, kind: input, shape index: {}]
  %s19 = inlined_call_operand.hbm [shape: f32[1,32], index: 19, kind: input, shape index: {}]
  %s20 = inlined_call_operand.hbm [shape: bf16[32,128], index: 20, kind: input, shape index: {}]
  %s21 = inlined_call_operand.hbm [shape: f32[1,128], index: 21, kind: input, shape index: {}]
  %s22 = inlined_call_operand.hbm [shape: f32[2,8,128], index: 22, kind: output, shape index: {}]
  %s23 = sld [smem:[#allocation0]]
  $region209: #{bruno_forward.1} parent=0
    _
  %s25 = ssub.s32 1, %s23
  %s26 = scalar_select 0, %s25, %s23
  $region1: #{bruno_forward.1} parent=0
    #allocation2 [shape = 'u8[8192]{0}', space=vmem, size = 0x2000, scoped, tag = 'input window, operand 0']
    #allocation3 [shape = 's32[2]{0}', space=sflag, size = 0x8, scoped, tag = 'scoped memory for bruno_forward.1']
    #allocation4 [shape = 's32[2]{0}', space=sflag, size = 0x8, scoped, tag = 'scoped memory for bruno_forward.1']
    #allocation5 [shape = 'u8[1024]{0}', space=vmem, size = 0x400, scoped, tag = 'input window, operand 1']
    #allocation6 [shape = 's32[2]{0}', space=sflag, size = 0x8, scoped, tag = 'scoped memory for bruno_forward.1']
    #allocation7 [shape = 'u8[4096]{0}', space=vmem, size = 0x1000, scoped, tag = 'input window, operand 2, single buffered']
    #allocation8 [shape = 'u8[512]{0}', space=vmem, size = 0x400, scoped, tag = 'input window, operand 3, single buffered']
    #allocation9 [shape = 's32[1]{0}', space=sflag, size = 0x4, scoped, tag = 'scoped memory for bruno_forward.1']
    #allocation10 [shape = 'u8[6144]{0}', space=vmem, size = 0x1800, scoped, tag = 'input window, operand 4, single buffered']
    #allocation11 [shape = 'u8[512]{0}', space=vmem, size = 0x400, scoped, tag = 'input window, operand 5, single buffered']
    #allocation12 [shape = 's32[1]{0}', space=sflag, size = 0x4, scoped, tag = 'scoped memory for bruno_forward.1']
    #allocation13 [shape = 'u8[8192]{0}', space=vmem, size = 0x2000, scoped, tag = 'input window, operand 6, single buffered']
    #allocation14 [shape = 'u8[512]{0}', space=vmem, size = 0x400, scoped, tag = 'input window, operand 7, single buffered']
    #allocation15 [shape = 's32[1]{0}', space=sflag, size = 0x4, scoped, tag = 'scoped memory for bruno_forward.1']
    #allocation16 [shape = 'u8[8192]{0}', space=vmem, size = 0x2000, scoped, tag = 'input window, operand 8, single buffered']
    #allocation17 [shape = 'u8[512]{0}', space=vmem, size = 0x400, scoped, tag = 'input window, operand 9, single buffered']
    #allocation18 [shape = 's32[1]{0}', space=sflag, size = 0x4, scoped, tag = 'scoped memory for bruno_forward.1']
    #allocation19 [shape = 'u8[512]{0}', space=vmem, size = 0x400, scoped, tag = 'input window, operand 10, single buffered']
    #allocation20 [shape = 'u8[512]{0}', space=vmem, size = 0x400, scoped, tag = 'input window, operand 11, single buffered']
    #allocation21 [shape = 's32[1]{0}', space=sflag, size = 0x4, scoped, tag = 'scoped memory for bruno_forward.1']
    #allocation22 [shape = 'u8[8192]{0}', space=vmem, size = 0x2000, scoped, tag = 'input window, operand 12, single buffered']
    #allocation23 [shape = 'u8[512]{0}', space=vmem, size = 0x400, scoped, tag = 'input window, operand 13, single buffered']
    #allocation24 [shape = 's32[1]{0}', space=sflag, size = 0x4, scoped, tag = 'scoped memory for bruno_forward.1']
    #allocation25 [shape = 'u8[16384]{0}', space=vmem, size = 0x4000, scoped, tag = 'input window, operand 14, single buffered']
    #allocation26 [shape = 'u8[512]{0}', space=vmem, size = 0x400, scoped, tag = 'input window, operand 15, single buffered']
    #allocation27 [shape = 's32[1]{0}', space=sflag, size = 0x4, scoped, tag = 'scoped memory for bruno_forward.1']
    #allocation28 [shape = 'u8[512]{0}', space=vmem, size = 0x400, scoped, tag = 'input window, operand 16, single buffered']
    #allocation29 [shape = 'u8[512]{0}', space=vmem, size = 0x400, scoped, tag = 'input window, operand 17, single buffered']
    #allocation30 [shape = 's32[1]{0}', space=sflag, size = 0x4, scoped, tag = 'scoped memory for bruno_forward.1']
    #allocation31 [shape = 'u8[8192]{0}', space=vmem, size = 0x2000, scoped, tag = 'input window, operand 18, single buffered']
    #allocation32 [shape = 'u8[512]{0}', space=vmem, size = 0x400, scoped, tag = 'input window, operand 19, single buffered']
    #allocation33 [shape = 's32[1]{0}', space=sflag, size = 0x4, scoped, tag = 'scoped memory for bruno_forward.1']
    #allocation34 [shape = 'u8[8192]{0}', space=vmem, size = 0x2000, scoped, tag = 'input window, operand 20, single buffered']
    #allocation35 [shape = 'u8[512]{0}', space=vmem, size = 0x400, scoped, tag = 'input window, operand 21, single buffered']
    #allocation36 [shape = 's32[1]{0}', space=sflag, size = 0x4, scoped, tag = 'scoped memory for bruno_forward.1']
    #allocation37 [shape = 'u8[8192]{0}', space=vmem, size = 0x2000, scoped, tag = 'output window, operand 0']
    %27 = vsyncpa [#allocation3], 0
    %s28 = scalar_lea.sflag [#allocation3], 1
    %29 = vsyncpa %s28, 0
    %30 = vsyncpa [#allocation6], 0
    %s31 = scalar_lea.sflag [#allocation6], 1
    %32 = vsyncpa %s31, 0
    %33 = vsyncpa [#allocation9], 0
    %34 = vsyncpa [#allocation12], 0
    %35 = vsyncpa [#allocation15], 0
    %36 = vsyncpa [#allocation18], 0
    %37 = vsyncpa [#allocation21], 0
    %38 = vsyncpa [#allocation24], 0
    %39 = vsyncpa [#allocation27], 0
    %40 = vsyncpa [#allocation30], 0
    %41 = vsyncpa [#allocation33], 0
    %42 = vsyncpa [#allocation36], 0
    %43 = vsyncpa [#allocation4], 0
    %s44 = scalar_lea.sflag [#allocation4], 1
    %45 = vsyncpa %s44, 0
    loop: start=0, step=1, limit=4
    $region2: #{bruno_forward.1} parent=1 // loop_pre_header
      _
    $region3: #{bruno_forward.1} parent=1 // loop_header
      %s47 = sphi 0, %s51
      %p48 = scmp.ge.s32.totalorder %s47, 4
      %s57 = sphi 0, %s59
      %s60 = sphi 0, %s57
      %s61 = sphi 0, %s60
      %s77 = sphi 0, %s61
      %s83 = sphi 0, %s85
      %s86 = sphi 0, %s83
      %s87 = sphi 0, %s86
      %s103 = sphi 0, %s87
      %s107 = sphi 0, %s107
      %s109 = sphi 0, %s107
      %s110 = sphi 0, %s109
      %s124 = sphi 0, %s110
      %s128 = sphi 0, %s128
      %s130 = sphi 0, %s128
      %s131 = sphi 0, %s130
      %s145 = sphi 0, %s131
      %s149 = sphi 0, %s149
      %s151 = sphi 0, %s149
      %s152 = sphi 0, %s151
      %s166 = sphi 0, %s152
      %s170 = sphi 0, %s170
      %s172 = sphi 0, %s170
      %s173 = sphi 0, %s172
      %s187 = sphi 0, %s173
      %s191 = sphi 0, %s191
      %s193 = sphi 0, %s191
      %s194 = sphi 0, %s193
      %s208 = sphi 0, %s194
      %s212 = sphi 0, %s212
      %s214 = sphi 0, %s212
      %s215 = sphi 0, %s214
      %s229 = sphi 0, %s215
      %s233 = sphi 0, %s233
      %s235 = sphi 0, %s233
      %s236 = sphi 0, %s235
      %s250 = sphi 0, %s236
      %s254 = sphi 0, %s254
      %s256 = sphi 0, %s254
      %s257 = sphi 0, %s256
      %s271 = sphi 0, %s257
      %s275 = sphi 0, %s275
      %s277 = sphi 0, %s275
      %s278 = sphi 0, %s277
      %s292 = sphi 0, %s278
      %s296 = sphi 0, %s296
      %s298 = sphi 0, %s296
      %s299 = sphi 0, %s298
      %s313 = sphi 0, %s299
      %s317 = sphi 0, %s317
      %s319 = sphi 0, %s317
      %s320 = sphi 0, %s319
      %s334 = sphi 0, %s320
      %s338 = sphi 0, %s338
      %s340 = sphi 0, %s338
      %s341 = sphi 0, %s340
      %s355 = sphi 0, %s341
      %s359 = sphi 0, %s359
      %s361 = sphi 0, %s359
      %s362 = sphi 0, %s361
      %s376 = sphi 0, %s362
      %s380 = sphi 0, %s380
      %s382 = sphi 0, %s380
      %s383 = sphi 0, %s382
      %s397 = sphi 0, %s383
      %s401 = sphi 0, %s401
      %s403 = sphi 0, %s401
      %s404 = sphi 0, %s403
      %s418 = sphi 0, %s404
      %s422 = sphi 0, %s422
      %s424 = sphi 0, %s422
      %s425 = sphi 0, %s424
      %s439 = sphi 0, %s425
      %s443 = sphi 0, %s443
      %s445 = sphi 0, %s443
      %s446 = sphi 0, %s445
      %s460 = sphi 0, %s446
      %s464 = sphi 0, %s464
      %s466 = sphi 0, %s464
      %s467 = sphi 0, %s466
      %s481 = sphi 0, %s467
      %s485 = sphi 0, %s485
      %s487 = sphi 0, %s485
      %s488 = sphi 0, %s487
      %s502 = sphi 0, %s488
      %s506 = sphi 0, %s506
      %s508 = sphi 0, %s506
      %s509 = sphi 0, %s508
      %s523 = sphi 0, %s509
      %s529 = sphi 0, %s531
      %s532 = sphi 0, %s529
      %s533 = sphi 0, %s532
      %s549 = sphi 0, %s533
    $region4: #{bruno_forward.1} parent=1 // loop_header_branch
      %50 = sbr.rel (%p48) target = $region8
    $region5: #{bruno_forward.1} parent=1 // loop_body
      %s52 = ssub.s32 %s47, 1
      %s53 = ssub.s32 %s47, 2
      %s54 = sadd.s32 %s47, 1
      %s55 = ssub.s32 %s47, %s54
      %p56 = scmp.eq.s32.totalorder %s55, 0
      %s58 = sadd.s32 %s57, 1
      %s59 = scalar_select %p56, %s57, %s58
      %p62 = pneg %p56
      %p63 = scmp.eq.s32.totalorder %s47, 1
      %p64 = por %p62, %p63
      %p65 = scmp.ne.s32.totalorder %s57, %s60
      %p66 = scmp.eq.s32.totalorder %s47, 0
      %p67 = por %p65, %p66
      %p68 = scmp.ne.s32.totalorder %s57, %s60
      %p69 = scmp.eq.s32.totalorder %s52, 1
      %p70 = por %p68, %p69
      %p71 = scmp.ne.s32.totalorder %s60, %s61
      %p72 = scmp.eq.s32.totalorder %s52, 0
      %p73 = por %p71, %p72
      %p74 = scmp.ne.s32.totalorder %s60, %s61
      %p75 = scmp.eq.s32.totalorder %s53, 1
      %p76 = por %p74, %p75
      %p78 = scmp.ne.s32.totalorder %s61, %s77
      %p79 = scmp.eq.s32.totalorder %s53, 0
      %p80 = por %p78, %p79
      %s81 = ssub.s32 %s47, %s54
      %p82 = scmp.eq.s32.totalorder %s81, 0
      %s84 = sadd.s32 %s83, 1
      %s85 = scalar_select %p82, %s83, %s84
      %p88 = pneg %p82
      %p89 = scmp.eq.s32.totalorder %s47, 1
      %p90 = por %p88, %p89
      %p91 = scmp.ne.s32.totalorder %s83, %s86
      %p92 = scmp.eq.s32.totalorder %s47, 0
      %p93 = por %p91, %p92
      %p94 = scmp.ne.s32.totalorder %s83, %s86
      %p95 = scmp.eq.s32.totalorder %s52, 1
      %p96 = por %p94, %p95
      %p97 = scmp.ne.s32.totalorder %s86, %s87
      %p98 = scmp.eq.s32.totalorder %s52, 0
      %p99 = por %p97, %p98
      %p100 = scmp.ne.s32.totalorder %s86, %s87
      %p101 = scmp.eq.s32.totalorder %s53, 1
      %p102 = por %p100, %p101
      %p104 = scmp.ne.s32.totalorder %s87, %s103
      %p105 = scmp.eq.s32.totalorder %s53, 0
      %p106 = por %p104, %p105
      %s108 = sadd.s32 %s107, 1
      %p111 = scmp.eq.s32.totalorder %s47, 1
      %p112 = scmp.ne.s32.totalorder %s107, %s109
      %p113 = scmp.eq.s32.totalorder %s47, 0
      %p114 = por %p112, %p113
      %p115 = scmp.ne.s32.totalorder %s107, %s109
      %p116 = scmp.eq.s32.totalorder %s52, 1
      %p117 = por %p115, %p116
      %p118 = scmp.ne.s32.totalorder %s109, %s110
      %p119 = scmp.eq.s32.totalorder %s52, 0
      %p120 = por %p118, %p119
      %p121 = scmp.ne.s32.totalorder %s109, %s110
      %p122 = scmp.eq.s32.totalorder %s53, 1
      %p123 = por %p121, %p122
      %p125 = scmp.ne.s32.totalorder %s110, %s124
      %p126 = scmp.eq.s32.totalorder %s53, 0
      %p127 = por %p125, %p126
      %s129 = sadd.s32 %s128, 1
      %p132 = scmp.eq.s32.totalorder %s47, 1
      %p133 = scmp.ne.s32.totalorder %s128, %s130
      %p134 = scmp.eq.s32.totalorder %s47, 0
      %p135 = por %p133, %p134
      %p136 = scmp.ne.s32.totalorder %s128, %s130
      %p137 = scmp.eq.s32.totalorder %s52, 1
      %p138 = por %p136, %p137
      %p139 = scmp.ne.s32.totalorder %s130, %s131
      %p140 = scmp.eq.s32.totalorder %s52, 0
      %p141 = por %p139, %p140
      %p142 = scmp.ne.s32.totalorder %s130, %s131
      %p143 = scmp.eq.s32.totalorder %s53, 1
      %p144 = por %p142, %p143
      %p146 = scmp.ne.s32.totalorder %s131, %s145
      %p147 = scmp.eq.s32.totalorder %s53, 0
      %p148 = por %p146, %p147
      %s150 = sadd.s32 %s149, 1
      %p153 = scmp.eq.s32.totalorder %s47, 1
      %p154 = scmp.ne.s32.totalorder %s149, %s151
      %p155 = scmp.eq.s32.totalorder %s47, 0
      %p156 = por %p154, %p155
      %p157 = scmp.ne.s32.totalorder %s149, %s151
      %p158 = scmp.eq.s32.totalorder %s52, 1
      %p159 = por %p157, %p158
      %p160 = scmp.ne.s32.totalorder %s151, %s152
      %p161 = scmp.eq.s32.totalorder %s52, 0
      %p162 = por %p160, %p161
      %p163 = scmp.ne.s32.totalorder %s151, %s152
      %p164 = scmp.eq.s32.totalorder %s53, 1
      %p165 = por %p163, %p164
      %p167 = scmp.ne.s32.totalorder %s152, %s166
      %p168 = scmp.eq.s32.totalorder %s53, 0
      %p169 = por %p167, %p168
      %s171 = sadd.s32 %s170, 1
      %p174 = scmp.eq.s32.totalorder %s47, 1
      %p175 = scmp.ne.s32.totalorder %s170, %s172
      %p176 = scmp.eq.s32.totalorder %s47, 0
      %p177 = por %p175, %p176
      %p178 = scmp.ne.s32.totalorder %s170, %s172
      %p179 = scmp.eq.s32.totalorder %s52, 1
      %p180 = por %p178, %p179
      %p181 = scmp.ne.s32.totalorder %s172, %s173
      %p182 = scmp.eq.s32.totalorder %s52, 0
      %p183 = por %p181, %p182
      %p184 = scmp.ne.s32.totalorder %s172, %s173
      %p185 = scmp.eq.s32.totalorder %s53, 1
      %p186 = por %p184, %p185
      %p188 = scmp.ne.s32.totalorder %s173, %s187
      %p189 = scmp.eq.s32.totalorder %s53, 0
      %p190 = por %p188, %p189
      %s192 = sadd.s32 %s191, 1
      %p195 = scmp.eq.s32.totalorder %s47, 1
      %p196 = scmp.ne.s32.totalorder %s191, %s193
      %p197 = scmp.eq.s32.totalorder %s47, 0
      %p198 = por %p196, %p197
      %p199 = scmp.ne.s32.totalorder %s191, %s193
      %p200 = scmp.eq.s32.totalorder %s52, 1
      %p201 = por %p199, %p200
      %p202 = scmp.ne.s32.totalorder %s193, %s194
      %p203 = scmp.eq.s32.totalorder %s52, 0
      %p204 = por %p202, %p203
      %p205 = scmp.ne.s32.totalorder %s193, %s194
      %p206 = scmp.eq.s32.totalorder %s53, 1
      %p207 = por %p205, %p206
      %p209 = scmp.ne.s32.totalorder %s194, %s208
      %p210 = scmp.eq.s32.totalorder %s53, 0
      %p211 = por %p209, %p210
      %s213 = sadd.s32 %s212, 1
      %p216 = scmp.eq.s32.totalorder %s47, 1
      %p217 = scmp.ne.s32.totalorder %s212, %s214
      %p218 = scmp.eq.s32.totalorder %s47, 0
      %p219 = por %p217, %p218
      %p220 = scmp.ne.s32.totalorder %s212, %s214
      %p221 = scmp.eq.s32.totalorder %s52, 1
      %p222 = por %p220, %p221
      %p223 = scmp.ne.s32.totalorder %s214, %s215
      %p224 = scmp.eq.s32.totalorder %s52, 0
      %p225 = por %p223, %p224
      %p226 = scmp.ne.s32.totalorder %s214, %s215
      %p227 = scmp.eq.s32.totalorder %s53, 1
      %p228 = por %p226, %p227
      %p230 = scmp.ne.s32.totalorder %s215, %s229
      %p231 = scmp.eq.s32.totalorder %s53, 0
      %p232 = por %p230, %p231
      %s234 = sadd.s32 %s233, 1
      %p237 = scmp.eq.s32.totalorder %s47, 1
      %p238 = scmp.ne.s32.totalorder %s233, %s235
      %p239 = scmp.eq.s32.totalorder %s47, 0
      %p240 = por %p238, %p239
      %p241 = scmp.ne.s32.totalorder %s233, %s235
      %p242 = scmp.eq.s32.totalorder %s52, 1
      %p243 = por %p241, %p242
      %p244 = scmp.ne.s32.totalorder %s235, %s236
      %p245 = scmp.eq.s32.totalorder %s52, 0
      %p246 = por %p244, %p245
      %p247 = scmp.ne.s32.totalorder %s235, %s236
      %p248 = scmp.eq.s32.totalorder %s53, 1
      %p249 = por %p247, %p248
      %p251 = scmp.ne.s32.totalorder %s236, %s250
      %p252 = scmp.eq.s32.totalorder %s53, 0
      %p253 = por %p251, %p252
      %s255 = sadd.s32 %s254, 1
      %p258 = scmp.eq.s32.totalorder %s47, 1
      %p259 = scmp.ne.s32.totalorder %s254, %s256
      %p260 = scmp.eq.s32.totalorder %s47, 0
      %p261 = por %p259, %p260
      %p262 = scmp.ne.s32.totalorder %s254, %s256
      %p263 = scmp.eq.s32.totalorder %s52, 1
      %p264 = por %p262, %p263
      %p265 = scmp.ne.s32.totalorder %s256, %s257
      %p266 = scmp.eq.s32.totalorder %s52, 0
      %p267 = por %p265, %p266
      %p268 = scmp.ne.s32.totalorder %s256, %s257
      %p269 = scmp.eq.s32.totalorder %s53, 1
      %p270 = por %p268, %p269
      %p272 = scmp.ne.s32.totalorder %s257, %s271
      %p273 = scmp.eq.s32.totalorder %s53, 0
      %p274 = por %p272, %p273
      %s276 = sadd.s32 %s275, 1
      %p279 = scmp.eq.s32.totalorder %s47, 1
      %p280 = scmp.ne.s32.totalorder %s275, %s277
      %p281 = scmp.eq.s32.totalorder %s47, 0
      %p282 = por %p280, %p281
      %p283 = scmp.ne.s32.totalorder %s275, %s277
      %p284 = scmp.eq.s32.totalorder %s52, 1
      %p285 = por %p283, %p284
      %p286 = scmp.ne.s32.totalorder %s277, %s278
      %p287 = scmp.eq.s32.totalorder %s52, 0
      %p288 = por %p286, %p287
      %p289 = scmp.ne.s32.totalorder %s277, %s278
      %p290 = scmp.eq.s32.totalorder %s53, 1
      %p291 = por %p289, %p290
      %p293 = scmp.ne.s32.totalorder %s278, %s292
      %p294 = scmp.eq.s32.totalorder %s53, 0
      %p295 = por %p293, %p294
      %s297 = sadd.s32 %s296, 1
      %p300 = scmp.eq.s32.totalorder %s47, 1
      %p301 = scmp.ne.s32.totalorder %s296, %s298
      %p302 = scmp.eq.s32.totalorder %s47, 0
      %p303 = por %p301, %p302
      %p304 = scmp.ne.s32.totalorder %s296, %s298
      %p305 = scmp.eq.s32.totalorder %s52, 1
      %p306 = por %p304, %p305
      %p307 = scmp.ne.s32.totalorder %s298, %s299
      %p308 = scmp.eq.s32.totalorder %s52, 0
      %p309 = por %p307, %p308
      %p310 = scmp.ne.s32.totalorder %s298, %s299
      %p311 = scmp.eq.s32.totalorder %s53, 1
      %p312 = por %p310, %p311
      %p314 = scmp.ne.s32.totalorder %s299, %s313
      %p315 = scmp.eq.s32.totalorder %s53, 0
      %p316 = por %p314, %p315
      %s318 = sadd.s32 %s317, 1
      %p321 = scmp.eq.s32.totalorder %s47, 1
      %p322 = scmp.ne.s32.totalorder %s317, %s319
      %p323 = scmp.eq.s32.totalorder %s47, 0
      %p324 = por %p322, %p323
      %p325 = scmp.ne.s32.totalorder %s317, %s319
      %p326 = scmp.eq.s32.totalorder %s52, 1
      %p327 = por %p325, %p326
      %p328 = scmp.ne.s32.totalorder %s319, %s320
      %p329 = scmp.eq.s32.totalorder %s52, 0
      %p330 = por %p328, %p329
      %p331 = scmp.ne.s32.totalorder %s319, %s320
      %p332 = scmp.eq.s32.totalorder %s53, 1
      %p333 = por %p331, %p332
      %p335 = scmp.ne.s32.totalorder %s320, %s334
      %p336 = scmp.eq.s32.totalorder %s53, 0
      %p337 = por %p335, %p336
      %s339 = sadd.s32 %s338, 1
      %p342 = scmp.eq.s32.totalorder %s47, 1
      %p343 = scmp.ne.s32.totalorder %s338, %s340
      %p344 = scmp.eq.s32.totalorder %s47, 0
      %p345 = por %p343, %p344
      %p346 = scmp.ne.s32.totalorder %s338, %s340
      %p347 = scmp.eq.s32.totalorder %s52, 1
      %p348 = por %p346, %p347
      %p349 = scmp.ne.s32.totalorder %s340, %s341
      %p350 = scmp.eq.s32.totalorder %s52, 0
      %p351 = por %p349, %p350
      %p352 = scmp.ne.s32.totalorder %s340, %s341
      %p353 = scmp.eq.s32.totalorder %s53, 1
      %p354 = por %p352, %p353
      %p356 = scmp.ne.s32.totalorder %s341, %s355
      %p357 = scmp.eq.s32.totalorder %s53, 0
      %p358 = por %p356, %p357
      %s360 = sadd.s32 %s359, 1
      %p363 = scmp.eq.s32.totalorder %s47, 1
      %p364 = scmp.ne.s32.totalorder %s359, %s361
      %p365 = scmp.eq.s32.totalorder %s47, 0
      %p366 = por %p364, %p365
      %p367 = scmp.ne.s32.totalorder %s359, %s361
      %p368 = scmp.eq.s32.totalorder %s52, 1
      %p369 = por %p367, %p368
      %p370 = scmp.ne.s32.totalorder %s361, %s362
      %p371 = scmp.eq.s32.totalorder %s52, 0
      %p372 = por %p370, %p371
      %p373 = scmp.ne.s32.totalorder %s361, %s362
      %p374 = scmp.eq.s32.totalorder %s53, 1
      %p375 = por %p373, %p374
      %p377 = scmp.ne.s32.totalorder %s362, %s376
      %p378 = scmp.eq.s32.totalorder %s53, 0
      %p379 = por %p377, %p378
      %s381 = sadd.s32 %s380, 1
      %p384 = scmp.eq.s32.totalorder %s47, 1
      %p385 = scmp.ne.s32.totalorder %s380, %s382
      %p386 = scmp.eq.s32.totalorder %s47, 0
      %p387 = por %p385, %p386
      %p388 = scmp.ne.s32.totalorder %s380, %s382
      %p389 = scmp.eq.s32.totalorder %s52, 1
      %p390 = por %p388, %p389
      %p391 = scmp.ne.s32.totalorder %s382, %s383
      %p392 = scmp.eq.s32.totalorder %s52, 0
      %p393 = por %p391, %p392
      %p394 = scmp.ne.s32.totalorder %s382, %s383
      %p395 = scmp.eq.s32.totalorder %s53, 1
      %p396 = por %p394, %p395
      %p398 = scmp.ne.s32.totalorder %s383, %s397
      %p399 = scmp.eq.s32.totalorder %s53, 0
      %p400 = por %p398, %p399
      %s402 = sadd.s32 %s401, 1
      %p405 = scmp.eq.s32.totalorder %s47, 1
      %p406 = scmp.ne.s32.totalorder %s401, %s403
      %p407 = scmp.eq.s32.totalorder %s47, 0
      %p408 = por %p406, %p407
      %p409 = scmp.ne.s32.totalorder %s401, %s403
      %p410 = scmp.eq.s32.totalorder %s52, 1
      %p411 = por %p409, %p410
      %p412 = scmp.ne.s32.totalorder %s403, %s404
      %p413 = scmp.eq.s32.totalorder %s52, 0
      %p414 = por %p412, %p413
      %p415 = scmp.ne.s32.totalorder %s403, %s404
      %p416 = scmp.eq.s32.totalorder %s53, 1
      %p417 = por %p415, %p416
      %p419 = scmp.ne.s32.totalorder %s404, %s418
      %p420 = scmp.eq.s32.totalorder %s53, 0
      %p421 = por %p419, %p420
      %s423 = sadd.s32 %s422, 1
      %p426 = scmp.eq.s32.totalorder %s47, 1
      %p427 = scmp.ne.s32.totalorder %s422, %s424
      %p428 = scmp.eq.s32.totalorder %s47, 0
      %p429 = por %p427, %p428
      %p430 = scmp.ne.s32.totalorder %s422, %s424
      %p431 = scmp.eq.s32.totalorder %s52, 1
      %p432 = por %p430, %p431
      %p433 = scmp.ne.s32.totalorder %s424, %s425
      %p434 = scmp.eq.s32.totalorder %s52, 0
      %p435 = por %p433, %p434
      %p436 = scmp.ne.s32.totalorder %s424, %s425
      %p437 = scmp.eq.s32.totalorder %s53, 1
      %p438 = por %p436, %p437
      %p440 = scmp.ne.s32.totalorder %s425, %s439
      %p441 = scmp.eq.s32.totalorder %s53, 0
      %p442 = por %p440, %p441
      %s444 = sadd.s32 %s443, 1
      %p447 = scmp.eq.s32.totalorder %s47, 1
      %p448 = scmp.ne.s32.totalorder %s443, %s445
      %p449 = scmp.eq.s32.totalorder %s47, 0
      %p450 = por %p448, %p449
      %p451 = scmp.ne.s32.totalorder %s443, %s445
      %p452 = scmp.eq.s32.totalorder %s52, 1
      %p453 = por %p451, %p452
      %p454 = scmp.ne.s32.totalorder %s445, %s446
      %p455 = scmp.eq.s32.totalorder %s52, 0
      %p456 = por %p454, %p455
      %p457 = scmp.ne.s32.totalorder %s445, %s446
      %p458 = scmp.eq.s32.totalorder %s53, 1
      %p459 = por %p457, %p458
      %p461 = scmp.ne.s32.totalorder %s446, %s460
      %p462 = scmp.eq.s32.totalorder %s53, 0
      %p463 = por %p461, %p462
      %s465 = sadd.s32 %s464, 1
      %p468 = scmp.eq.s32.totalorder %s47, 1
      %p469 = scmp.ne.s32.totalorder %s464, %s466
      %p470 = scmp.eq.s32.totalorder %s47, 0
      %p471 = por %p469, %p470
      %p472 = scmp.ne.s32.totalorder %s464, %s466
      %p473 = scmp.eq.s32.totalorder %s52, 1
      %p474 = por %p472, %p473
      %p475 = scmp.ne.s32.totalorder %s466, %s467
      %p476 = scmp.eq.s32.totalorder %s52, 0
      %p477 = por %p475, %p476
      %p478 = scmp.ne.s32.totalorder %s466, %s467
      %p479 = scmp.eq.s32.totalorder %s53, 1
      %p480 = por %p478, %p479
      %p482 = scmp.ne.s32.totalorder %s467, %s481
      %p483 = scmp.eq.s32.totalorder %s53, 0
      %p484 = por %p482, %p483
      %s486 = sadd.s32 %s485, 1
      %p489 = scmp.eq.s32.totalorder %s47, 1
      %p490 = scmp.ne.s32.totalorder %s485, %s487
      %p491 = scmp.eq.s32.totalorder %s47, 0
      %p492 = por %p490, %p491
      %p493 = scmp.ne.s32.totalorder %s485, %s487
      %p494 = scmp.eq.s32.totalorder %s52, 1
      %p495 = por %p493, %p494
      %p496 = scmp.ne.s32.totalorder %s487, %s488
      %p497 = scmp.eq.s32.totalorder %s52, 0
      %p498 = por %p496, %p497
      %p499 = scmp.ne.s32.totalorder %s487, %s488
      %p500 = scmp.eq.s32.totalorder %s53, 1
      %p501 = por %p499, %p500
      %p503 = scmp.ne.s32.totalorder %s488, %s502
      %p504 = scmp.eq.s32.totalorder %s53, 0
      %p505 = por %p503, %p504
      %s507 = sadd.s32 %s506, 1
      %p510 = scmp.eq.s32.totalorder %s47, 1
      %p511 = scmp.ne.s32.totalorder %s506, %s508
      %p512 = scmp.eq.s32.totalorder %s47, 0
      %p513 = por %p511, %p512
      %p514 = scmp.ne.s32.totalorder %s506, %s508
      %p515 = scmp.eq.s32.totalorder %s52, 1
      %p516 = por %p514, %p515
      %p517 = scmp.ne.s32.totalorder %s508, %s509
      %p518 = scmp.eq.s32.totalorder %s52, 0
      %p519 = por %p517, %p518
      %p520 = scmp.ne.s32.totalorder %s508, %s509
      %p521 = scmp.eq.s32.totalorder %s53, 1
      %p522 = por %p520, %p521
      %p524 = scmp.ne.s32.totalorder %s509, %s523
      %p525 = scmp.eq.s32.totalorder %s53, 0
      %p526 = por %p524, %p525
      %s527 = ssub.s32 %s47, %s54
      %p528 = scmp.eq.s32.totalorder %s527, 0
      %s530 = sadd.s32 %s529, 1
      %s531 = scalar_select %p528, %s529, %s530
      %p534 = pneg %p528
      %p535 = scmp.eq.s32.totalorder %s47, 1
      %p536 = por %p534, %p535
      %p537 = scmp.ne.s32.totalorder %s529, %s532
      %p538 = scmp.eq.s32.totalorder %s47, 0
      %p539 = por %p537, %p538
      %p540 = scmp.ne.s32.totalorder %s529, %s532
      %p541 = scmp.eq.s32.totalorder %s52, 1
      %p542 = por %p540, %p541
      %p543 = scmp.ne.s32.totalorder %s532, %s533
      %p544 = scmp.eq.s32.totalorder %s52, 0
      %p545 = por %p543, %p544
      %p546 = scmp.ne.s32.totalorder %s532, %s533
      %p547 = scmp.eq.s32.totalorder %s53, 1
      %p548 = por %p546, %p547
      %p550 = scmp.ne.s32.totalorder %s533, %s549
      %p551 = scmp.eq.s32.totalorder %s53, 0
      %p552 = por %p550, %p551
      %p553 = scmp.le.s32.totalorder 1, %s47
      %p554 = scmp.lt.s32.totalorder %s47, 3
      %p555 = pnand %p553, %p554
      %p556 = pneg %p555
      // Predicated region
      $region9: #{bruno_forward.1} parent=5 // pred_check
        _
      $region10: #{bruno_forward.1} parent=5 // pred_check_branch
        %558 = sbr.rel (%p555) target = $region12
      $region11: #{bruno_forward.1} parent=5 // pred_region
        %s559 = ssub.s32 %s47, 1
        // Predicated region
        $region13: #{bruno_forward.1} parent=11 // pred_check
          %p560 = pneg %p120
        $region14: #{bruno_forward.1} parent=11 // pred_check_branch
          %562 = sbr.rel (%p560) target = $region16
        $region15: #{bruno_forward.1} parent=11 // pred_region
          %s564 = ssub.s32 128, 128
          %565 = vsyncadd [#allocation6], %s564
          %s566 = sshll.u32 [#allocation7], 4
          %s567 = int_to_ptr.vmem [resolvable:$true] %s566
          %572 = dma.hbm_to_vmem [thread:$0]  %s2, 128, %s567, [#allocation6], 64, 64, 4
        $region16: #{bruno_forward.1} parent=11 // pred_fallthru
          _
        // Predicated region
        $region17: #{bruno_forward.1} parent=11 // pred_check
          %p573 = pneg %p141
        $region18: #{bruno_forward.1} parent=11 // pred_check_branch
          %575 = sbr.rel (%p573) target = $region20
        $region19: #{bruno_forward.1} parent=11 // pred_region
          %s577 = ssub.s32 16, 16
          %578 = vsyncadd [#allocation9], %s577
          %s580 = sshll.u32 [#allocation8], 4
          %s581 = int_to_ptr.vmem [resolvable:$true] %s580
          %583 = dma.hbm_to_vmem [thread:$0]  %s3, 16, %s581, [#allocation9]
        $region20: #{bruno_forward.1} parent=11 // pred_fallthru
          _
        // Predicated region
        $region21: #{bruno_forward.1} parent=11 // pred_check
          %p584 = pneg %p162
        $region22: #{bruno_forward.1} parent=11 // pred_check_branch
          %586 = sbr.rel (%p584) target = $region24
        $region23: #{bruno_forward.1} parent=11 // pred_region
          %s588 = ssub.s32 192, 192
          %589 = vsyncadd [#allocation9], %s588
          %s590 = sshll.u32 [#allocation10], 4
          %s591 = int_to_ptr.vmem [resolvable:$true] %s590
          %596 = dma.hbm_to_vmem [thread:$0]  %s4, 192, %s591, [#allocation9], 64, 64, 4
        $region24: #{bruno_forward.1} parent=11 // pred_fallthru
          _
        // Predicated region
        $region25: #{bruno_forward.1} parent=11 // pred_check
          %p597 = pneg %p183
        $region26: #{bruno_forward.1} parent=11 // pred_check_branch
          %599 = sbr.rel (%p597) target = $region28
        $region27: #{bruno_forward.1} parent=11 // pred_region
          %s601 = ssub.s32 16, 16
          %602 = vsyncadd [#allocation12], %s601
          %s604 = sshll.u32 [#allocation11], 4
          %s605 = int_to_ptr.vmem [resolvable:$true] %s604
          %607 = dma.hbm_to_vmem [thread:$0]  %s5, 16, %s605, [#allocation12]
        $region28: #{bruno_forward.1} parent=11 // pred_fallthru
          _
        // Predicated region
        $region29: #{bruno_forward.1} parent=11 // pred_check
          %p608 = pneg %p204
        $region30: #{bruno_forward.1} parent=11 // pred_check_branch
          %610 = sbr.rel (%p608) target = $region32
        $region31: #{bruno_forward.1} parent=11 // pred_region
          %s612 = ssub.s32 256, 256
          %613 = vsyncadd [#allocation12], %s612
          %s614 = sshll.u32 [#allocation13], 4
          %s615 = int_to_ptr.vmem [resolvable:$true] %s614
          %620 = dma.hbm_to_vmem [thread:$0]  %s6, 256, %s615, [#allocation12], 64, 64, 4
        $region32: #{bruno_forward.1} parent=11 // pred_fallthru
          _
        // Predicated region
        $region33: #{bruno_forward.1} parent=11 // pred_check
          %p621 = pneg %p225
        $region34: #{bruno_forward.1} parent=11 // pred_check_branch
          %623 = sbr.rel (%p621) target = $region36
        $region35: #{bruno_forward.1} parent=11 // pred_region
          %s625 = ssub.s32 16, 16
          %626 = vsyncadd [#allocation15], %s625
          %s628 = sshll.u32 [#allocation14], 4
          %s629 = int_to_ptr.vmem [resolvable:$true] %s628
          %631 = dma.hbm_to_vmem [thread:$0]  %s7, 16, %s629, [#allocation15]
        $region36: #{bruno_forward.1} parent=11 // pred_fallthru
          _
        // Predicated region
        $region37: #{bruno_forward.1} parent=11 // pred_check
          %p632 = pneg %p246
        $region38: #{bruno_forward.1} parent=11 // pred_check_branch
          %634 = sbr.rel (%p632) target = $region40
        $region39: #{bruno_forward.1} parent=11 // pred_region
          %s636 = ssub.s32 256, 256
          %637 = vsyncadd [#allocation15], %s636
          %s638 = sshll.u32 [#allocation16], 4
          %s639 = int_to_ptr.vmem [resolvable:$true] %s638
          %644 = dma.hbm_to_vmem [thread:$0]  %s8, 256, %s639, [#allocation15], 64, 64, 4
        $region40: #{bruno_forward.1} parent=11 // pred_fallthru
          _
        // Predicated region
        $region41: #{bruno_forward.1} parent=11 // pred_check
          %p645 = pneg %p267
        $region42: #{bruno_forward.1} parent=11 // pred_check_branch
          %647 = sbr.rel (%p645) target = $region44
        $region43: #{bruno_forward.1} parent=11 // pred_region
          %s649 = ssub.s32 16, 16
          %650 = vsyncadd [#allocation18], %s649
          %s652 = sshll.u32 [#allocation17], 4
          %s653 = int_to_ptr.vmem [resolvable:$true] %s652
          %655 = dma.hbm_to_vmem [thread:$0]  %s9, 16, %s653, [#allocation18]
        $region44: #{bruno_forward.1} parent=11 // pred_fallthru
          _
        // Predicated region
        $region45: #{bruno_forward.1} parent=11 // pred_check
          %p656 = pneg %p288
        $region46: #{bruno_forward.1} parent=11 // pred_check_branch
          %658 = sbr.rel (%p656) target = $region48
        $region47: #{bruno_forward.1} parent=11 // pred_region
          %s660 = ssub.s32 16, 16
          %661 = vsyncadd [#allocation18], %s660
          %s663 = sshll.u32 [#allocation19], 4
          %s664 = int_to_ptr.vmem [resolvable:$true] %s663
          %666 = dma.hbm_to_vmem [thread:$0]  %s10, 16, %s664, [#allocation18]
        $region48: #{bruno_forward.1} parent=11 // pred_fallthru
          _
        // Predicated region
        $region49: #{bruno_forward.1} parent=11 // pred_check
          %p667 = pneg %p309
        $region50: #{bruno_forward.1} parent=11 // pred_check_branch
          %669 = sbr.rel (%p667) target = $region52
        $region51: #{bruno_forward.1} parent=11 // pred_region
          %s671 = ssub.s32 16, 16
          %672 = vsyncadd [#allocation21], %s671
          %s674 = sshll.u32 [#allocation20], 4
          %s675 = int_to_ptr.vmem [resolvable:$true] %s674
          %677 = dma.hbm_to_vmem [thread:$0]  %s11, 16, %s675, [#allocation21]
        $region52: #{bruno_forward.1} parent=11 // pred_fallthru
          _
        // Predicated region
        $region53: #{bruno_forward.1} parent=11 // pred_check
          %p678 = pneg %p330
        $region54: #{bruno_forward.1} parent=11 // pred_check_branch
          %680 = sbr.rel (%p678) target = $region56
        $region55: #{bruno_forward.1} parent=11 // pred_region
          %s682 = ssub.s32 256, 256
          %683 = vsyncadd [#allocation21], %s682
          %s684 = sshll.u32 [#allocation22], 4
          %s685 = int_to_ptr.vmem [resolvable:$true] %s684
          %690 = dma.hbm_to_vmem [thread:$0]  %s12, 256, %s685, [#allocation21], 64, 64, 4
        $region56: #{bruno_forward.1} parent=11 // pred_fallthru
          _
        // Predicated region
        $region57: #{bruno_forward.1} parent=11 // pred_check
          %p691 = pneg %p351
        $region58: #{bruno_forward.1} parent=11 // pred_check_branch
          %693 = sbr.rel (%p691) target = $region60
        $region59: #{bruno_forward.1} parent=11 // pred_region
          %s695 = ssub.s32 16, 16
          %696 = vsyncadd [#allocation24], %s695
          %s698 = sshll.u32 [#allocation23], 4
          %s699 = int_to_ptr.vmem [resolvable:$true] %s698
          %701 = dma.hbm_to_vmem [thread:$0]  %s13, 16, %s699, [#allocation24]
        $region60: #{bruno_forward.1} parent=11 // pred_fallthru
          _
        // Predicated region
        $region61: #{bruno_forward.1} parent=11 // pred_check
          %p702 = pneg %p372
        $region62: #{bruno_forward.1} parent=11 // pred_check_branch
          %704 = sbr.rel (%p702) target = $region64
        $region63: #{bruno_forward.1} parent=11 // pred_region
          %s706 = ssub.s32 512, 512
          %707 = vsyncadd [#allocation24], %s706
          %s708 = sshll.u32 [#allocation25], 4
          %s709 = int_to_ptr.vmem [resolvable:$true] %s708
          %714 = dma.hbm_to_vmem [thread:$0]  %s14, 512, %s709, [#allocation24], 64, 64, 4
        $region64: #{bruno_forward.1} parent=11 // pred_fallthru
          _
        // Predicated region
        $region65: #{bruno_forward.1} parent=11 // pred_check
          %p715 = pneg %p393
        $region66: #{bruno_forward.1} parent=11 // pred_check_branch
          %717 = sbr.rel (%p715) target = $region68
        $region67: #{bruno_forward.1} parent=11 // pred_region
          %s719 = ssub.s32 16, 16
          %720 = vsyncadd [#allocation27], %s719
          %s722 = sshll.u32 [#allocation26], 4
          %s723 = int_to_ptr.vmem [resolvable:$true] %s722
          %725 = dma.hbm_to_vmem [thread:$0]  %s15, 16, %s723, [#allocation27]
        $region68: #{bruno_forward.1} parent=11 // pred_fallthru
          _
        // Predicated region
        $region69: #{bruno_forward.1} parent=11 // pred_check
          %p726 = pneg %p414
        $region70: #{bruno_forward.1} parent=11 // pred_check_branch
          %728 = sbr.rel (%p726) target = $region72
        $region71: #{bruno_forward.1} parent=11 // pred_region
          %s730 = ssub.s32 16, 16
          %731 = vsyncadd [#allocation27], %s730
          %s733 = sshll.u32 [#allocation28], 4
          %s734 = int_to_ptr.vmem [resolvable:$true] %s733
          %736 = dma.hbm_to_vmem [thread:$0]  %s16, 16, %s734, [#allocation27]
        $region72: #{bruno_forward.1} parent=11 // pred_fallthru
          _
        // Predicated region
        $region73: #{bruno_forward.1} parent=11 // pred_check
          %p737 = pneg %p435
        $region74: #{bruno_forward.1} parent=11 // pred_check_branch
          %739 = sbr.rel (%p737) target = $region76
        $region75: #{bruno_forward.1} parent=11 // pred_region
          %s741 = ssub.s32 16, 16
          %742 = vsyncadd [#allocation30], %s741
          %s744 = sshll.u32 [#allocation29], 4
          %s745 = int_to_ptr.vmem [resolvable:$true] %s744
          %747 = dma.hbm_to_vmem [thread:$0]  %s17, 16, %s745, [#allocation30]
        $region76: #{bruno_forward.1} parent=11 // pred_fallthru
          _
        // Predicated region
        $region77: #{bruno_forward.1} parent=11 // pred_check
          %p748 = pneg %p456
        $region78: #{bruno_forward.1} parent=11 // pred_check_branch
          %750 = sbr.rel (%p748) target = $region80
        $region79: #{bruno_forward.1} parent=11 // pred_region
          %s752 = ssub.s32 256, 256
          %753 = vsyncadd [#allocation30], %s752
          %s754 = sshll.u32 [#allocation31], 4
          %s755 = int_to_ptr.vmem [resolvable:$true] %s754
          %760 = dma.hbm_to_vmem [thread:$0]  %s18, 256, %s755, [#allocation30], 64, 64, 4
        $region80: #{bruno_forward.1} parent=11 // pred_fallthru
          _
        // Predicated region
        $region81: #{bruno_forward.1} parent=11 // pred_check
          %p761 = pneg %p477
        $region82: #{bruno_forward.1} parent=11 // pred_check_branch
          %763 = sbr.rel (%p761) target = $region84
        $region83: #{bruno_forward.1} parent=11 // pred_region
          %s765 = ssub.s32 16, 16
          %766 = vsyncadd [#allocation33], %s765
          %s768 = sshll.u32 [#allocation32], 4
          %s769 = int_to_ptr.vmem [resolvable:$true] %s768
          %771 = dma.hbm_to_vmem [thread:$0]  %s19, 16, %s769, [#allocation33]
        $region84: #{bruno_forward.1} parent=11 // pred_fallthru
          _
        // Predicated region
        $region85: #{bruno_forward.1} parent=11 // pred_check
          %p772 = pneg %p498
        $region86: #{bruno_forward.1} parent=11 // pred_check_branch
          %774 = sbr.rel (%p772) target = $region88
        $region87: #{bruno_forward.1} parent=11 // pred_region
          %s776 = ssub.s32 256, 256
          %777 = vsyncadd [#allocation33], %s776
          %s778 = sshll.u32 [#allocation34], 4
          %s779 = int_to_ptr.vmem [resolvable:$true] %s778
          %784 = dma.hbm_to_vmem [thread:$0]  %s20, 256, %s779, [#allocation33], 64, 64, 4
        $region88: #{bruno_forward.1} parent=11 // pred_fallthru
          _
        // Predicated region
        $region89: #{bruno_forward.1} parent=11 // pred_check
          %p785 = pneg %p519
        $region90: #{bruno_forward.1} parent=11 // pred_check_branch
          %787 = sbr.rel (%p785) target = $region92
        $region91: #{bruno_forward.1} parent=11 // pred_region
          %s789 = ssub.s32 16, 16
          %790 = vsyncadd [#allocation36], %s789
          %s792 = sshll.u32 [#allocation35], 4
          %s793 = int_to_ptr.vmem [resolvable:$true] %s792
          %795 = dma.hbm_to_vmem [thread:$0]  %s21, 16, %s793, [#allocation36]
        $region92: #{bruno_forward.1} parent=11 // pred_fallthru
          _
      $region12: #{bruno_forward.1} parent=5 // pred_fallthru
        _
      %p796 = scmp.lt.s32.totalorder %s47, 2
      // Predicated region
      $region93: #{bruno_forward.1} parent=5 // pred_check
        %p797 = pneg %p796
      $region94: #{bruno_forward.1} parent=5 // pred_check_branch
        %799 = sbr.rel (%p797) target = $region96
      $region95: #{bruno_forward.1} parent=5 // pred_region
        // Predicated region
        $region97: #{bruno_forward.1} parent=95 // pred_check
          %p800 = pneg %p67
        $region98: #{bruno_forward.1} parent=95 // pred_check_branch
          %802 = sbr.rel (%p800) target = $region100
        $region99: #{bruno_forward.1} parent=95 // pred_region
          %s803 = sand.u32 %s57, 1
          %s804 = scalar_lea.sflag [#allocation3], %s803
          %s805 = sand.u32 %s57, 1
          %s806 = smul.addr %s805, 8
          %s807 = scalar_lea.vmem [#allocation2], %s806
          %s809 = ssub.s32 128, 128
          %810 = vsyncadd %s804, %s809
          %s811 = smul.addr %s47, 128
          %s812 = scalar_lea.hbm %s0, %s811
          %s814 = sshll.u32 %s807, 4
          %s815 = int_to_ptr.vmem [resolvable:$true] %s814
          %817 = dma.hbm_to_vmem [thread:$0]  %s812, 128, %s815, %s804
        $region100: #{bruno_forward.1} parent=95 // pred_fallthru
          _
        // Predicated region
        $region101: #{bruno_forward.1} parent=95 // pred_check
          %p818 = pneg %p93
        $region102: #{bruno_forward.1} parent=95 // pred_check_branch
          %820 = sbr.rel (%p818) target = $region104
        $region103: #{bruno_forward.1} parent=95 // pred_region
          %s821 = sand.u32 %s47, 1
          %s822 = scalar_lea.sflag [#allocation6], %s821
          %s823 = sand.u32 %s83, 1
          %s824 = scalar_lea.vmem [#allocation5], %s823
          %s826 = ssub.s32 16, 16
          %827 = vsyncadd %s822, %s826
          %s828 = smul.addr %s47, 16
          %s829 = scalar_lea.hbm %s1, %s828
          %s831 = sshll.u32 %s824, 4
          %s832 = int_to_ptr.vmem [resolvable:$true] %s831
          %834 = dma.hbm_to_vmem [thread:$0]  %s829, 16, %s832, %s822
        $region104: #{bruno_forward.1} parent=95 // pred_fallthru
          _
      $region96: #{bruno_forward.1} parent=5 // pred_fallthru
        _
      %p835 = scmp.le.s32.totalorder 1, %s47
      %p836 = scmp.lt.s32.totalorder %s47, 3
      %p837 = pnand %p835, %p836
      %p838 = pneg %p837
      // Predicated region
      $region105: #{bruno_forward.1} parent=5 // pred_check
        _
      $region106: #{bruno_forward.1} parent=5 // pred_check_branch
        %840 = sbr.rel (%p837) target = $region108
      $region107: #{bruno_forward.1} parent=5 // pred_region
        %s841 = ssub.s32 %s47, 1
        %s842 = sand.u32 %s60, 1
        %s843 = scalar_lea.sflag [#allocation3], %s842
        %s844 = sand.u32 %s60, 1
        %s845 = smul.addr %s844, 8
        %s846 = scalar_lea.vmem [#allocation2], %s845
        // Predicated region
        $region109: #{bruno_forward.1} parent=107 // pred_check
          %p847 = pneg %p73
        $region110: #{bruno_forward.1} parent=107 // pred_check_branch
          %849 = sbr.rel (%p847) target = $region112
        $region111: #{bruno_forward.1} parent=107 // pred_region
          %850 = dma.done %s843, 128
        $region112: #{bruno_forward.1} parent=107 // pred_fallthru
          _
        %s851 = sand.u32 %s52, 1
        %s852 = scalar_lea.sflag [#allocation6], %s851
        %s853 = sand.u32 %s86, 1
        %s854 = scalar_lea.vmem [#allocation5], %s853
        // Predicated region
        $region113: #{bruno_forward.1} parent=107 // pred_check
          %p855 = pneg %p99
        $region114: #{bruno_forward.1} parent=107 // pred_check_branch
          %857 = sbr.rel (%p855) target = $region116
        $region115: #{bruno_forward.1} parent=107 // pred_region
          %858 = dma.done %s852, 16
        $region116: #{bruno_forward.1} parent=107 // pred_fallthru
          _
        // Predicated region
        $region117: #{bruno_forward.1} parent=107 // pred_check
          %p859 = pneg %p120
        $region118: #{bruno_forward.1} parent=107 // pred_check_branch
          %861 = sbr.rel (%p859) target = $region120
        $region119: #{bruno_forward.1} parent=107 // pred_region
          %862 = dma.done [#allocation6], 128
        $region120: #{bruno_forward.1} parent=107 // pred_fallthru
          _
        // Predicated region
        $region121: #{bruno_forward.1} parent=107 // pred_check
          %p863 = pneg %p141
        $region122: #{bruno_forward.1} parent=107 // pred_check_branch
          %865 = sbr.rel (%p863) target = $region124
        $region123: #{bruno_forward.1} parent=107 // pred_region
          %866 = dma.done [#allocation9], 16
        $region124: #{bruno_forward.1} parent=107 // pred_fallthru
          _
        // Predicated region
        $region125: #{bruno_forward.1} parent=107 // pred_check
          %p867 = pneg %p162
        $region126: #{bruno_forward.1} parent=107 // pred_check_branch
          %869 = sbr.rel (%p867) target = $region128
        $region127: #{bruno_forward.1} parent=107 // pred_region
          %870 = dma.done [#allocation9], 192
        $region128: #{bruno_forward.1} parent=107 // pred_fallthru
          _
        // Predicated region
        $region129: #{bruno_forward.1} parent=107 // pred_check
          %p871 = pneg %p183
        $region130: #{bruno_forward.1} parent=107 // pred_check_branch
          %873 = sbr.rel (%p871) target = $region132
        $region131: #{bruno_forward.1} parent=107 // pred_region
          %874 = dma.done [#allocation12], 16
        $region132: #{bruno_forward.1} parent=107 // pred_fallthru
          _
        // Predicated region
        $region133: #{bruno_forward.1} parent=107 // pred_check
          %p875 = pneg %p204
        $region134: #{bruno_forward.1} parent=107 // pred_check_branch
          %877 = sbr.rel (%p875) target = $region136
        $region135: #{bruno_forward.1} parent=107 // pred_region
          %878 = dma.done [#allocation12], 256
        $region136: #{bruno_forward.1} parent=107 // pred_fallthru
          _
        // Predicated region
        $region137: #{bruno_forward.1} parent=107 // pred_check
          %p879 = pneg %p225
        $region138: #{bruno_forward.1} parent=107 // pred_check_branch
          %881 = sbr.rel (%p879) target = $region140
        $region139: #{bruno_forward.1} parent=107 // pred_region
          %882 = dma.done [#allocation15], 16
        $region140: #{bruno_forward.1} parent=107 // pred_fallthru
          _
        // Predicated region
        $region141: #{bruno_forward.1} parent=107 // pred_check
          %p883 = pneg %p246
        $region142: #{bruno_forward.1} parent=107 // pred_check_branch
          %885 = sbr.rel (%p883) target = $region144
        $region143: #{bruno_forward.1} parent=107 // pred_region
          %886 = dma.done [#allocation15], 256
        $region144: #{bruno_forward.1} parent=107 // pred_fallthru
          _
        // Predicated region
        $region145: #{bruno_forward.1} parent=107 // pred_check
          %p887 = pneg %p267
        $region146: #{bruno_forward.1} parent=107 // pred_check_branch
          %889 = sbr.rel (%p887) target = $region148
        $region147: #{bruno_forward.1} parent=107 // pred_region
          %890 = dma.done [#allocation18], 16
        $region148: #{bruno_forward.1} parent=107 // pred_fallthru
          _
        // Predicated region
        $region149: #{bruno_forward.1} parent=107 // pred_check
          %p891 = pneg %p288
        $region150: #{bruno_forward.1} parent=107 // pred_check_branch
          %893 = sbr.rel (%p891) target = $region152
        $region151: #{bruno_forward.1} parent=107 // pred_region
          %894 = dma.done [#allocation18], 16
        $region152: #{bruno_forward.1} parent=107 // pred_fallthru
          _
        // Predicated region
        $region153: #{bruno_forward.1} parent=107 // pred_check
          %p895 = pneg %p309
        $region154: #{bruno_forward.1} parent=107 // pred_check_branch
          %897 = sbr.rel (%p895) target = $region156
        $region155: #{bruno_forward.1} parent=107 // pred_region
          %898 = dma.done [#allocation21], 16
        $region156: #{bruno_forward.1} parent=107 // pred_fallthru
          _
        // Predicated region
        $region157: #{bruno_forward.1} parent=107 // pred_check
          %p899 = pneg %p330
        $region158: #{bruno_forward.1} parent=107 // pred_check_branch
          %901 = sbr.rel (%p899) target = $region160
        $region159: #{bruno_forward.1} parent=107 // pred_region
          %902 = dma.done [#allocation21], 256
        $region160: #{bruno_forward.1} parent=107 // pred_fallthru
          _
        // Predicated region
        $region161: #{bruno_forward.1} parent=107 // pred_check
          %p903 = pneg %p351
        $region162: #{bruno_forward.1} parent=107 // pred_check_branch
          %905 = sbr.rel (%p903) target = $region164
        $region163: #{bruno_forward.1} parent=107 // pred_region
          %906 = dma.done [#allocation24], 16
        $region164: #{bruno_forward.1} parent=107 // pred_fallthru
          _
        // Predicated region
        $region165: #{bruno_forward.1} parent=107 // pred_check
          %p907 = pneg %p372
        $region166: #{bruno_forward.1} parent=107 // pred_check_branch
          %909 = sbr.rel (%p907) target = $region168
        $region167: #{bruno_forward.1} parent=107 // pred_region
          %910 = dma.done [#allocation24], 512
        $region168: #{bruno_forward.1} parent=107 // pred_fallthru
          _
        // Predicated region
        $region169: #{bruno_forward.1} parent=107 // pred_check
          %p911 = pneg %p393
        $region170: #{bruno_forward.1} parent=107 // pred_check_branch
          %913 = sbr.rel (%p911) target = $region172
        $region171: #{bruno_forward.1} parent=107 // pred_region
          %914 = dma.done [#allocation27], 16
        $region172: #{bruno_forward.1} parent=107 // pred_fallthru
          _
        // Predicated region
        $region173: #{bruno_forward.1} parent=107 // pred_check
          %p915 = pneg %p414
        $region174: #{bruno_forward.1} parent=107 // pred_check_branch
          %917 = sbr.rel (%p915) target = $region176
        $region175: #{bruno_forward.1} parent=107 // pred_region
          %918 = dma.done [#allocation27], 16
        $region176: #{bruno_forward.1} parent=107 // pred_fallthru
          _
        // Predicated region
        $region177: #{bruno_forward.1} parent=107 // pred_check
          %p919 = pneg %p435
        $region178: #{bruno_forward.1} parent=107 // pred_check_branch
          %921 = sbr.rel (%p919) target = $region180
        $region179: #{bruno_forward.1} parent=107 // pred_region
          %922 = dma.done [#allocation30], 16
        $region180: #{bruno_forward.1} parent=107 // pred_fallthru
          _
        // Predicated region
        $region181: #{bruno_forward.1} parent=107 // pred_check
          %p923 = pneg %p456
        $region182: #{bruno_forward.1} parent=107 // pred_check_branch
          %925 = sbr.rel (%p923) target = $region184
        $region183: #{bruno_forward.1} parent=107 // pred_region
          %926 = dma.done [#allocation30], 256
        $region184: #{bruno_forward.1} parent=107 // pred_fallthru
          _
        // Predicated region
        $region185: #{bruno_forward.1} parent=107 // pred_check
          %p927 = pneg %p477
        $region186: #{bruno_forward.1} parent=107 // pred_check_branch
          %929 = sbr.rel (%p927) target = $region188
        $region187: #{bruno_forward.1} parent=107 // pred_region
          %930 = dma.done [#allocation33], 16
        $region188: #{bruno_forward.1} parent=107 // pred_fallthru
          _
        // Predicated region
        $region189: #{bruno_forward.1} parent=107 // pred_check
          %p931 = pneg %p498
        $region190: #{bruno_forward.1} parent=107 // pred_check_branch
          %933 = sbr.rel (%p931) target = $region192
        $region191: #{bruno_forward.1} parent=107 // pred_region
          %934 = dma.done [#allocation33], 256
        $region192: #{bruno_forward.1} parent=107 // pred_fallthru
          _
        // Predicated region
        $region193: #{bruno_forward.1} parent=107 // pred_check
          %p935 = pneg %p519
        $region194: #{bruno_forward.1} parent=107 // pred_check_branch
          %937 = sbr.rel (%p935) target = $region196
        $region195: #{bruno_forward.1} parent=107 // pred_region
          %938 = dma.done [#allocation36], 16
        $region196: #{bruno_forward.1} parent=107 // pred_fallthru
          _
        %s939 = sand.u32 %s60, 1
        %s940 = scalar_lea.sflag [#allocation3], %s939
        %s941 = sand.u32 %s60, 1
        %s942 = smul.addr %s941, 8
        %s943 = scalar_lea.vmem [#allocation2], %s942
        %p944 = pneg %p73
        %p945 = pneg %p70
        %s946 = sand.u32 %s52, 1
        %s947 = scalar_lea.sflag [#allocation6], %s946
        %s948 = sand.u32 %s86, 1
        %s949 = scalar_lea.vmem [#allocation5], %s948
        %p950 = pneg %p99
        %p951 = pneg %p96
        %p952 = pneg %p120
        %p953 = pneg %p117
        %p954 = pneg %p141
        %p955 = pneg %p138
        %p956 = pneg %p162
        %p957 = pneg %p159
        %p958 = pneg %p183
        %p959 = pneg %p180
        %p960 = pneg %p204
        %p961 = pneg %p201
        %p962 = pneg %p225
        %p963 = pneg %p222
        %p964 = pneg %p246
        %p965 = pneg %p243
        %p966 = pneg %p267
        %p967 = pneg %p264
        %p968 = pneg %p288
        %p969 = pneg %p285
        %p970 = pneg %p309
        %p971 = pneg %p306
        %p972 = pneg %p330
        %p973 = pneg %p327
        %p974 = pneg %p351
        %p975 = pneg %p348
        %p976 = pneg %p372
        %p977 = pneg %p369
        %p978 = pneg %p393
        %p979 = pneg %p390
        %p980 = pneg %p414
        %p981 = pneg %p411
        %p982 = pneg %p435
        %p983 = pneg %p432
        %p984 = pneg %p456
        %p985 = pneg %p453
        %p986 = pneg %p477
        %p987 = pneg %p474
        %p988 = pneg %p498
        %p989 = pneg %p495
        %p990 = pneg %p519
        %p991 = pneg %p516
        %p992 = pneg %p545
        %p993 = pneg %p542
        %s994 = sand.u32 %s532, 1
        %s995 = scalar_lea.sflag [#allocation4], %s994
        %s996 = sand.u32 %s532, 1
        %s997 = smul.addr %s996, 8
        %s998 = scalar_lea.vmem [#allocation37], %s997
        %v1000 = vld [vmem:[%s846] sm:$0xff]
        %v1001 = vld [vmem:[%s854] sm:$0x1]
        %vm1002 = vcmp.gt.f32.partialorder %v1001, 0.5
        %v1003 = vsel %vm1002, 0.0, -1e+09
        %v1004 = vld [vmem:[#allocation7] sm:$0xf]
        %v1005 = vld [vmem:[#allocation7 + $0x4] sm:$0xf]
        %v1006 = vpack.c.bf16 %v1000, %v1000
        %v1007 = vld [vmem:[#allocation8] sm:$0x1]
        %v1009 = vlaneseq
        %v1010 = vshrl.u32 %v1009, 7
        %v1011 = vsub.s32 0, %v1010
        %v1012 = vrot.slane %v1007, %v1011
        %v1016 = vunpack.c.l.b16 %v1004
        %v1017 = vunpack.c.l.b16 %v1005
        %v1018 = vpack.c.b16 %v1017, %v1016
        %vm1020 = vcmask 130048
        %v1022 = vsel %vm1020, %v1006, 0
        %1024 = vmatprep.subr.bf16.mxu0 0
        %1025 = vmatpush1.bf16.msra.mxu0 %v1018
        %1026 = vmatprep.subr.bf16.mxu0 0
        %1027 = vmatpush1.bf16.msra.mxu0 0
        %1028 = vmatprep.subr.bf16.mxu0 0
        %1029 = vmatpush1.bf16.msra.mxu0 0
        %1030 = vmatprep.subr.bf16.mxu0 0
        %1031 = vmatpush1.bf16.msra.mxu0 0
        %1032 = vmatprep.subr.bf16.mxu0 0
        %1033 = vmatpush1.bf16.msra.mxu0 0
        %1034 = vmatprep.subr.bf16.mxu0 0
        %1035 = vmatpush1.bf16.msra.mxu0 0
        %1036 = vmatprep.subr.bf16.mxu0 0
        %1037 = vmatpush1.bf16.msra.mxu0 0
        %1038 = vmatprep.subr.bf16.mxu0 0
        %1039 = vmatpush1.bf16.msra.mxu0 0
        %1040 = vmatprep.subr.bf16.mxu0 0
        %1041 = vmatpush1.bf16.msra.mxu0 0
        %1042 = vmatprep.subr.bf16.mxu0 0
        %1043 = vmatpush1.bf16.msra.mxu0 0
        %1044 = vmatprep.subr.bf16.mxu0 0
        %1045 = vmatpush1.bf16.msra.mxu0 0
        %1046 = vmatprep.subr.bf16.mxu0 0
        %1047 = vmatpush1.bf16.msra.mxu0 0
        %1048 = vmatprep.subr.bf16.mxu0 0
        %1049 = vmatpush1.bf16.msra.mxu0 0
        %1050 = vmatprep.subr.bf16.mxu0 0
        %1051 = vmatpush1.bf16.msra.mxu0 0
        %1052 = vmatprep.subr.bf16.mxu0 0
        %1053 = vmatpush1.bf16.msra.mxu0 0
        %1054 = vmatprep.subr.bf16.mxu0 0
        %1055 = vmatpush1.bf16.msra.mxu0 0
        %1056 = vmatprep.mubr.bf16.mxu0 0
        %1057 = vmatmul.mubr.bf16.gmra.mrb[0].mxu0 %v1022
        %v1058 = vpop.f32.mrb[0].mxu0
        %v1059 = vadd.f32 %v1012, %v1058
        %v1060 = vpop.f32.mrb[0].mxu0
        %v1061 = vpop.f32.mrb[0].mxu0
        %v1062 = vpop.f32.mrb[0].mxu0
        %1063 = vdwg.mxu0
        %v1064 = vtanh.pop %v1059
        %v1065 = vld [vmem:[#allocation13] sm:$0xf]
        %v1066 = vld [vmem:[#allocation13 + $0x4] sm:$0xf]
        %v1067 = vld [vmem:[#allocation13 + $0x8] sm:$0xf]
        %v1068 = vld [vmem:[#allocation13 + $0xc] sm:$0xf]
        %v1069 = vld [vmem:[#allocation14] sm:$0x1]
        %v1070 = vld [vmem:[#allocation16] sm:$0xf]
        %v1071 = vld [vmem:[#allocation16 + $0x4] sm:$0xf]
        %v1072 = vld [vmem:[#allocation16 + $0x8] sm:$0xf]
        %v1073 = vld [vmem:[#allocation16 + $0xc] sm:$0xf]
        %v1074 = vld [vmem:[#allocation17] sm:$0x1]
        %v1075 = vld [vmem:[#allocation19] sm:$0x1]
        %v1076 = vld [vmem:[#allocation20] sm:$0x1]
        %v1077 = vld [vmem:[#allocation22] sm:$0xf]
        %v1078 = vld [vmem:[#allocation22 + $0x4] sm:$0xf]
        %v1079 = vld [vmem:[#allocation22 + $0x8] sm:$0xf]
        %v1080 = vld [vmem:[#allocation22 + $0xc] sm:$0xf]
        %v1081 = vld [vmem:[#allocation23] sm:$0x1]
        %v1082 = vld [vmem:[#allocation25] sm:$0xf]
        %v1083 = vld [vmem:[#allocation25 + $0x4] sm:$0xf]
        %v1084 = vld [vmem:[#allocation25 + $0x8] sm:$0xf]
        %v1085 = vld [vmem:[#allocation25 + $0xc] sm:$0xf]
        %v1086 = vld [vmem:[#allocation25 + $0x10] sm:$0xf]
        %v1087 = vld [vmem:[#allocation25 + $0x14] sm:$0xf]
        %v1088 = vld [vmem:[#allocation25 + $0x18] sm:$0xf]
        %v1089 = vld [vmem:[#allocation25 + $0x1c] sm:$0xf]
        %v1090 = vld [vmem:[#allocation26] sm:$0x1]
        %v1091 = vld [vmem:[#allocation28] sm:$0x1]
        %v1092 = vld [vmem:[#allocation29] sm:$0x1]
        %v1093 = vld [vmem:[#allocation10] sm:$0xf]
        %v1094 = vld [vmem:[#allocation10 + $0x4] sm:$0xf]
        %v1095 = vld [vmem:[#allocation10 + $0x8] sm:$0xf]
        %v1096 = vpack.c.bf16 %v1064, %v1064
        %v1097 = vld [vmem:[#allocation11] sm:$0x1]
        %v1099 = vlaneseq
        %v1100 = vshrl.u32 %v1099, 7
        %v1101 = vsub.s32 0, %v1100
        %v1102 = vrot.slane %v1097, %v1101
        %v1107 = vunpack.c.l.b16 %v1093
        %v1108 = vunpack.c.l.b16 %v1094
        %v1109 = vunpack.c.l.b16 %v1095
        %v1110 = vpack.c.b16 %v1108, %v1107
        %v1111 = vpack.c.b16 %v1109, %v1109
        %vm1113 = vcmask 195584
        %v1115 = vsel %vm1113, %v1096, 0
        %vm1117 = vcmask 1043456
        %v1119 = vsel %vm1117, %v1111, 0
        %1121 = vmatprep.subr.bf16.mxu0 0
        %1122 = vmatpush1.bf16.msra.mxu0 %v1110
        %1123 = vmatprep.subr.bf16.mxu0 0
        %1124 = vmatpush1.bf16.msra.mxu0 %v1119
        %1125 = vmatprep.subr.bf16.mxu0 0
        %1126 = vmatpush1.bf16.msra.mxu0 0
        %1127 = vmatprep.subr.bf16.mxu0 0
        %1128 = vmatpush1.bf16.msra.mxu0 0
        %1129 = vmatprep.subr.bf16.mxu0 0
        %1130 = vmatpush1.bf16.msra.mxu0 0
        %1131 = vmatprep.subr.bf16.mxu0 0
        %1132 = vmatpush1.bf16.msra.mxu0 0
        %1133 = vmatprep.subr.bf16.mxu0 0
        %1134 = vmatpush1.bf16.msra.mxu0 0
        %1135 = vmatprep.subr.bf16.mxu0 0
        %1136 = vmatpush1.bf16.msra.mxu0 0
        %1137 = vmatprep.subr.bf16.mxu0 0
        %1138 = vmatpush1.bf16.msra.mxu0 0
        %1139 = vmatprep.subr.bf16.mxu0 0
        %1140 = vmatpush1.bf16.msra.mxu0 0
        %1141 = vmatprep.subr.bf16.mxu0 0
        %1142 = vmatpush1.bf16.msra.mxu0 0
        %1143 = vmatprep.subr.bf16.mxu0 0
        %1144 = vmatpush1.bf16.msra.mxu0 0
        %1145 = vmatprep.subr.bf16.mxu0 0
        %1146 = vmatpush1.bf16.msra.mxu0 0
        %1147 = vmatprep.subr.bf16.mxu0 0
        %1148 = vmatpush1.bf16.msra.mxu0 0
        %1149 = vmatprep.subr.bf16.mxu0 0
        %1150 = vmatpush1.bf16.msra.mxu0 0
        %1151 = vmatprep.subr.bf16.mxu0 0
        %1152 = vmatpush1.bf16.msra.mxu0 0
        %1153 = vmatprep.mubr.bf16.mxu0 0
        %1154 = vmatmul.mubr.bf16.gmra.mrb[0].mxu0 %v1115
        %v1155 = vpop.f32.mrb[0].mxu0
        %v1156 = vadd.f32 %v1102, %v1155
        %v1157 = vpop.f32.mrb[0].mxu0
        %v1158 = vpop.f32.mrb[0].mxu0
        %v1159 = vpop.f32.mrb[0].mxu0
        %1160 = vdwg.mxu0
        %v1161 = vpack.c.bf16 %v1156, %v1156
        %v1163 = vlaneseq
        %v1164 = vshrl.u32 %v1163, 7
        %v1165 = vsub.s32 0, %v1164
        %v1166 = vrot.slane %v1069, %v1165
        %v1172 = vunpack.c.l.b16 %v1065
        %v1173 = vunpack.c.l.b16 %v1066
        %v1174 = vunpack.c.l.b16 %v1067
        %v1175 = vunpack.c.l.b16 %v1068
        %v1176 = vpack.c.b16 %v1173, %v1172
        %v1177 = vpack.c.b16 %v1175, %v1174
        %vm1180 = vcmask 261120
        %v1182 = vsel %vm1180, %v1161, 0
        %1184 = vmatprep.subr.bf16.mxu0 0
        %1185 = vmatpush1.bf16.msra.mxu0 %v1176
        %1186 = vmatprep.subr.bf16.mxu0 0
        %1187 = vmatpush1.bf16.msra.mxu0 %v1177
        %1188 = vmatprep.subr.bf16.mxu0 0
        %1189 = vmatpush1.bf16.msra.mxu0 0
        %1190 = vmatprep.subr.bf16.mxu0 0
        %1191 = vmatpush1.bf16.msra.mxu0 0
        %1192 = vmatprep.subr.bf16.mxu0 0
        %1193 = vmatpush1.bf16.msra.mxu0 0
        %1194 = vmatprep.subr.bf16.mxu0 0
        %1195 = vmatpush1.bf16.msra.mxu0 0
        %1196 = vmatprep.subr.bf16.mxu0 0
        %1197 = vmatpush1.bf16.msra.mxu0 0
        %1198 = vmatprep.subr.bf16.mxu0 0
        %1199 = vmatpush1.bf16.msra.mxu0 0
        %1200 = vmatprep.subr.bf16.mxu0 0
        %1201 = vmatpush1.bf16.msra.mxu0 0
        %1202 = vmatprep.subr.bf16.mxu0 0
        %1203 = vmatpush1.bf16.msra.mxu0 0
        %1204 = vmatprep.subr.bf16.mxu0 0
        %1205 = vmatpush1.bf16.msra.mxu0 0
        %1206 = vmatprep.subr.bf16.mxu0 0
        %1207 = vmatpush1.bf16.msra.mxu0 0
        %1208 = vmatprep.subr.bf16.mxu0 0
        %1209 = vmatpush1.bf16.msra.mxu0 0
        %1210 = vmatprep.subr.bf16.mxu0 0
        %1211 = vmatpush1.bf16.msra.mxu0 0
        %1212 = vmatprep.subr.bf16.mxu0 0
        %1213 = vmatpush1.bf16.msra.mxu0 0
        %1214 = vmatprep.subr.bf16.mxu0 0
        %1215 = vmatpush1.bf16.msra.mxu0 0
        %1216 = vmatprep.mubr.bf16.mxu0 0
        %1217 = vmatmul.mubr.bf16.gmra.mrb[0].mxu0 %v1182
        %v1218 = vpop.f32.mrb[0].mxu0
        %v1219 = vadd.f32 %v1166, %v1218
        %v1220 = vpop.f32.mrb[0].mxu0
        %v1221 = vpop.f32.mrb[0].mxu0
        %v1222 = vpop.f32.mrb[0].mxu0
        %1223 = vdwg.mxu0
        %v1224 = vpack.c.bf16 %v1219, %v1219
        %1226 = vrot.lane.b32.xlu0 %v1224, 96
        %v1227 = vpop.permute.xlu0 %1226
        %vm1228 = vcmask 64512
        %v1230 = vsel %vm1228, %v1224, 0
        %v1233 = vsel %vm1228, %v1227, 0
        %1235 = vmatprep.subr.bf16.mxu0 0
        %1236 = vmatpush1.bf16.xpose.msra.mxu0 %v1233
        %1237 = vmatprep.subr.bf16.mxu0 0
        %1238 = vmatpush1.bf16.xpose.msra.mxu0 0
        %1239 = vmatprep.subr.bf16.mxu0 0
        %1240 = vmatpush1.bf16.xpose.msra.mxu0 0
        %1241 = vmatprep.subr.bf16.mxu0 0
        %1242 = vmatpush1.bf16.xpose.msra.mxu0 0
        %1243 = vmatprep.subr.bf16.mxu0 0
        %1244 = vmatpush1.bf16.xpose.msra.mxu0 0
        %1245 = vmatprep.subr.bf16.mxu0 0
        %1246 = vmatpush1.bf16.xpose.msra.mxu0 0
        %1247 = vmatprep.subr.bf16.mxu0 0
        %1248 = vmatpush1.bf16.xpose.msra.mxu0 0
        %1249 = vmatprep.subr.bf16.mxu0 0
        %1250 = vmatpush1.bf16.xpose.msra.mxu0 0
        %1251 = vmatprep.subr.bf16.mxu0 0
        %1252 = vmatpush1.bf16.xpose.msra.mxu0 0
        %1253 = vmatprep.subr.bf16.mxu0 0
        %1254 = vmatpush1.bf16.xpose.msra.mxu0 0
        %1255 = vmatprep.subr.bf16.mxu0 0
        %1256 = vmatpush1.bf16.xpose.msra.mxu0 0
        %1257 = vmatprep.subr.bf16.mxu0 0
        %1258 = vmatpush1.bf16.xpose.msra.mxu0 0
        %1259 = vmatprep.subr.bf16.mxu0 0
        %1260 = vmatpush1.bf16.xpose.msra.mxu0 0
        %1261 = vmatprep.subr.bf16.mxu0 0
        %1262 = vmatpush1.bf16.xpose.msra.mxu0 0
        %1263 = vmatprep.subr.bf16.mxu0 0
        %1264 = vmatpush1.bf16.xpose.msra.mxu0 0
        %1265 = vmatprep.subr.bf16.mxu0 0
        %1266 = vmatpush1.bf16.xpose.msra.mxu0 0
        %1267 = vmatprep.mubr.bf16.mxu0 0
        %1268 = vmatmul.mubr.bf16.gmra.mrb[0].mxu0 %v1230
        %v1269 = vpop.f32.mrb[0].mxu0
        %v1270 = vadd.f32 0.0, %v1269
        %v1271 = vpop.f32.mrb[0].mxu0
        %v1272 = vpop.f32.mrb[0].mxu0
        %v1273 = vpop.f32.mrb[0].mxu0
        %1274 = vdwg.mxu0
        %v1275 = vmul.f32 %v1270, 0.35355338
        %v1277 = vlaneseq
        %v1278 = vshrl.u32 %v1277, 7
        %v1279 = vsub.s32 0, %v1278
        %v1280 = vrot.slane %v1003, %v1279
        %v1282 = vadd.f32 %v1275, %v1280
        %v1283 = vsel %vm1228, %v1282, -inf
        %1284 = vmax.xlane.f32.xlu0 %v1283
        %v1285 = vpop.xlane.xlu0 %1284
        %v1286 = vsub.f32 %v1282, %v1285
        %v1287 = vmul.f32 %v1286, 1.442695
        %v1288 = vpow.pop %v1287
        %v1289 = vsel %vm1228, %v1288, 0.0
        %1290 = vadd.xlane.f32.xlu0 %v1289
        %v1291 = vpop.xlane.xlu0 %1290
        %v1292 = vrcp.pop %v1291
        %v1293 = vmul.f32 %v1288, %v1292
        %v1294 = vpack.c.bf16 %v1293, %v1293
        %1295 = vrot.lane.b32.xlu0 %v1224, 64
        %v1296 = vpop.permute.xlu0 %1295
        %v1298 = vsel %vm1228, %v1294, 0
        %v1301 = vsel %vm1117, %v1296, 0
        %1303 = vmatprep.subr.bf16.mxu0 0
        %1304 = vmatpush1.bf16.msra.mxu0 %v1301
        %1305 = vmatprep.subr.bf16.mxu0 0
        %1306 = vmatpush1.bf16.msra.mxu0 0
        %1307 = vmatprep.subr.bf16.mxu0 0
        %1308 = vmatpush1.bf16.msra.mxu0 0
        %1309 = vmatprep.subr.bf16.mxu0 0
        %1310 = vmatpush1.bf16.msra.mxu0 0
        %1311 = vmatprep.subr.bf16.mxu0 0
        %1312 = vmatpush1.bf16.msra.mxu0 0
        %1313 = vmatprep.subr.bf16.mxu0 0
        %1314 = vmatpush1.bf16.msra.mxu0 0
        %1315 = vmatprep.subr.bf16.mxu0 0
        %1316 = vmatpush1.bf16.msra.mxu0 0
        %1317 = vmatprep.subr.bf16.mxu0 0
        %1318 = vmatpush1.bf16.msra.mxu0 0
        %1319 = vmatprep.subr.bf16.mxu0 0
        %1320 = vmatpush1.bf16.msra.mxu0 0
        %1321 = vmatprep.subr.bf16.mxu0 0
        %1322 = vmatpush1.bf16.msra.mxu0 0
        %1323 = vmatprep.subr.bf16.mxu0 0
        %1324 = vmatpush1.bf16.msra.mxu0 0
        %1325 = vmatprep.subr.bf16.mxu0 0
        %1326 = vmatpush1.bf16.msra.mxu0 0
        %1327 = vmatprep.subr.bf16.mxu0 0
        %1328 = vmatpush1.bf16.msra.mxu0 0
        %1329 = vmatprep.subr.bf16.mxu0 0
        %1330 = vmatpush1.bf16.msra.mxu0 0
        %1331 = vmatprep.subr.bf16.mxu0 0
        %1332 = vmatpush1.bf16.msra.mxu0 0
        %1333 = vmatprep.subr.bf16.mxu0 0
        %1334 = vmatpush1.bf16.msra.mxu0 0
        %1335 = vmatprep.mubr.bf16.mxu0 0
        %1336 = vmatmul.mubr.bf16.gmra.mrb[0].mxu0 %v1298
        %v1337 = vpop.f32.mrb[0].mxu0
        %v1338 = vadd.f32 0.0, %v1337
        %v1339 = vpop.f32.mrb[0].mxu0
        %v1340 = vpop.f32.mrb[0].mxu0
        %v1341 = vpop.f32.mrb[0].mxu0
        %1342 = vdwg.mxu0
        %v1343 = vpack.c.bf16 %v1338, %v1338
        %v1345 = vsel %vm1228, %v1343, 0
        %v1348 = vsel %vm1117, %v1070, 0
        %1350 = vmatprep.subr.bf16.mxu0 0
        %1351 = vmatpush1.bf16.msra.mxu0 %v1348
        %1352 = vmatprep.subr.bf16.mxu0 0
        %1353 = vmatpush1.bf16.msra.mxu0 0
        %1354 = vmatprep.subr.bf16.mxu0 0
        %1355 = vmatpush1.bf16.msra.mxu0 0
        %1356 = vmatprep.subr.bf16.mxu0 0
        %1357 = vmatpush1.bf16.msra.mxu0 0
        %1358 = vmatprep.subr.bf16.mxu0 0
        %1359 = vmatpush1.bf16.msra.mxu0 0
        %1360 = vmatprep.subr.bf16.mxu0 0
        %1361 = vmatpush1.bf16.msra.mxu0 0
        %1362 = vmatprep.subr.bf16.mxu0 0
        %1363 = vmatpush1.bf16.msra.mxu0 0
        %1364 = vmatprep.subr.bf16.mxu0 0
        %1365 = vmatpush1.bf16.msra.mxu0 0
        %1366 = vmatprep.subr.bf16.mxu0 0
        %1367 = vmatpush1.bf16.msra.mxu0 0
        %1368 = vmatprep.subr.bf16.mxu0 0
        %1369 = vmatpush1.bf16.msra.mxu0 0
        %1370 = vmatprep.subr.bf16.mxu0 0
        %1371 = vmatpush1.bf16.msra.mxu0 0
        %1372 = vmatprep.subr.bf16.mxu0 0
        %1373 = vmatpush1.bf16.msra.mxu0 0
        %1374 = vmatprep.subr.bf16.mxu0 0
        %1375 = vmatpush1.bf16.msra.mxu0 0
        %1376 = vmatprep.subr.bf16.mxu0 0
        %1377 = vmatpush1.bf16.msra.mxu0 0
        %1378 = vmatprep.subr.bf16.mxu0 0
        %1379 = vmatpush1.bf16.msra.mxu0 0
        %1380 = vmatprep.subr.bf16.mxu0 0
        %1381 = vmatpush1.bf16.msra.mxu0 0
        %1382 = vmatprep.mubr.bf16.mxu0 0
        %1383 = vmatmul.mubr.bf16.gmra.mrb[0].mxu0 %v1345
        %v1384 = vpop.f32.mrb[0].mxu0
        %v1385 = vadd.f32 0.0, %v1384
        %v1386 = vpop.f32.mrb[0].mxu0
        %v1387 = vpop.f32.mrb[0].mxu0
        %v1388 = vpop.f32.mrb[0].mxu0
        %1389 = vdwg.mxu0
        %v1391 = vlaneseq
        %v1392 = vshrl.u32 %v1391, 7
        %v1393 = vsub.s32 0, %v1392
        %v1394 = vrot.slane %v1074, %v1393
        %v1396 = vadd.f32 %v1394, %v1385
        %1397 = vrot.lane.b32.xlu0 %v1224, 120
        %v1398 = vpop.permute.xlu0 %1397
        %1399 = vrot.lane.b32.xlu0 %v1224, 88
        %v1400 = vpop.permute.xlu0 %1399
        %v1402 = vsel %vm1228, %v1398, 0
        %v1405 = vsel %vm1228, %v1400, 0
        %1407 = vmatprep.subr.bf16.mxu0 0
        %1408 = vmatpush1.bf16.xpose.msra.mxu0 %v1405
        %1409 = vmatprep.subr.bf16.mxu0 0
        %1410 = vmatpush1.bf16.xpose.msra.mxu0 0
        %1411 = vmatprep.subr.bf16.mxu0 0
        %1412 = vmatpush1.bf16.xpose.msra.mxu0 0
        %1413 = vmatprep.subr.bf16.mxu0 0
        %1414 = vmatpush1.bf16.xpose.msra.mxu0 0
        %1415 = vmatprep.subr.bf16.mxu0 0
        %1416 = vmatpush1.bf16.xpose.msra.mxu0 0
        %1417 = vmatprep.subr.bf16.mxu0 0
        %1418 = vmatpush1.bf16.xpose.msra.mxu0 0
        %1419 = vmatprep.subr.bf16.mxu0 0
        %1420 = vmatpush1.bf16.xpose.msra.mxu0 0
        %1421 = vmatprep.subr.bf16.mxu0 0
        %1422 = vmatpush1.bf16.xpose.msra.mxu0 0
        %1423 = vmatprep.subr.bf16.mxu0 0
        %1424 = vmatpush1.bf16.xpose.msra.mxu0 0
        %1425 = vmatprep.subr.bf16.mxu0 0
        %1426 = vmatpush1.bf16.xpose.msra.mxu0 0
        %1427 = vmatprep.subr.bf16.mxu0 0
        %1428 = vmatpush1.bf16.xpose.msra.mxu0 0
        %1429 = vmatprep.subr.bf16.mxu0 0
        %1430 = vmatpush1.bf16.xpose.msra.mxu0 0
        %1431 = vmatprep.subr.bf16.mxu0 0
        %1432 = vmatpush1.bf16.xpose.msra.mxu0 0
        %1433 = vmatprep.subr.bf16.mxu0 0
        %1434 = vmatpush1.bf16.xpose.msra.mxu0 0
        %1435 = vmatprep.subr.bf16.mxu0 0
        %1436 = vmatpush1.bf16.xpose.msra.mxu0 0
        %1437 = vmatprep.subr.bf16.mxu0 0
        %1438 = vmatpush1.bf16.xpose.msra.mxu0 0
        %1439 = vmatprep.mubr.bf16.mxu0 0
        %1440 = vmatmul.mubr.bf16.gmra.mrb[0].mxu0 %v1402
        %v1441 = vpop.f32.mrb[0].mxu0
        %v1442 = vadd.f32 0.0, %v1441
        %v1443 = vpop.f32.mrb[0].mxu0
        %v1444 = vpop.f32.mrb[0].mxu0
        %v1445 = vpop.f32.mrb[0].mxu0
        %1446 = vdwg.mxu0
        %v1447 = vmul.f32 %v1442, 0.35355338
        %v1448 = vadd.f32 %v1447, %v1280
        %v1449 = vsel %vm1228, %v1448, -inf
        %1450 = vmax.xlane.f32.xlu0 %v1449
        %v1451 = vpop.xlane.xlu0 %1450
        %v1452 = vsub.f32 %v1448, %v1451
        %v1453 = vmul.f32 %v1452, 1.442695
        %v1454 = vpow.pop %v1453
        %v1455 = vsel %vm1228, %v1454, 0.0
        %1456 = vadd.xlane.f32.xlu0 %v1455
        %v1457 = vpop.xlane.xlu0 %1456
        %v1458 = vrcp.pop %v1457
        %v1459 = vmul.f32 %v1454, %v1458
        %v1460 = vpack.c.bf16 %v1459, %v1459
        %1461 = vrot.lane.b32.xlu0 %v1224, 56
        %v1462 = vpop.permute.xlu0 %1461
        %v1464 = vsel %vm1228, %v1460, 0
        %v1467 = vsel %vm1117, %v1462, 0
        %1469 = vmatprep.subr.bf16.mxu0 0
        %1470 = vmatpush1.bf16.msra.mxu0 %v1467
        %1471 = vmatprep.subr.bf16.mxu0 0
        %1472 = vmatpush1.bf16.msra.mxu0 0
        %1473 = vmatprep.subr.bf16.mxu0 0
        %1474 = vmatpush1.bf16.msra.mxu0 0
        %1475 = vmatprep.subr.bf16.mxu0 0
        %1476 = vmatpush1.bf16.msra.mxu0 0
        %1477 = vmatprep.subr.bf16.mxu0 0
        %1478 = vmatpush1.bf16.msra.mxu0 0
        %1479 = vmatprep.subr.bf16.mxu0 0
        %1480 = vmatpush1.bf16.msra.mxu0 0
        %1481 = vmatprep.subr.bf16.mxu0 0
        %1482 = vmatpush1.bf16.msra.mxu0 0
        %1483 = vmatprep.subr.bf16.mxu0 0
        %1484 = vmatpush1.bf16.msra.mxu0 0
        %1485 = vmatprep.subr.bf16.mxu0 0
        %1486 = vmatpush1.bf16.msra.mxu0 0
        %1487 = vmatprep.subr.bf16.mxu0 0
        %1488 = vmatpush1.bf16.msra.mxu0 0
        %1489 = vmatprep.subr.bf16.mxu0 0
        %1490 = vmatpush1.bf16.msra.mxu0 0
        %1491 = vmatprep.subr.bf16.mxu0 0
        %1492 = vmatpush1.bf16.msra.mxu0 0
        %1493 = vmatprep.subr.bf16.mxu0 0
        %1494 = vmatpush1.bf16.msra.mxu0 0
        %1495 = vmatprep.subr.bf16.mxu0 0
        %1496 = vmatpush1.bf16.msra.mxu0 0
        %1497 = vmatprep.subr.bf16.mxu0 0
        %1498 = vmatpush1.bf16.msra.mxu0 0
        %1499 = vmatprep.subr.bf16.mxu0 0
        %1500 = vmatpush1.bf16.msra.mxu0 0
        %1501 = vmatprep.mubr.bf16.mxu0 0
        %1502 = vmatmul.mubr.bf16.gmra.mrb[0].mxu0 %v1464
        %v1503 = vpop.f32.mrb[0].mxu0
        %v1504 = vadd.f32 0.0, %v1503
        %v1505 = vpop.f32.mrb[0].mxu0
        %v1506 = vpop.f32.mrb[0].mxu0
        %v1507 = vpop.f32.mrb[0].mxu0
        %1508 = vdwg.mxu0
        %v1509 = vpack.c.bf16 %v1504, %v1504
        %v1511 = vsel %vm1228, %v1509, 0
        %v1514 = vsel %vm1117, %v1071, 0
        %1516 = vmatprep.subr.bf16.mxu0 0
        %1517 = vmatpush1.bf16.msra.mxu0 %v1514
        %1518 = vmatprep.subr.bf16.mxu0 0
        %1519 = vmatpush1.bf16.msra.mxu0 0
        %1520 = vmatprep.subr.bf16.mxu0 0
        %1521 = vmatpush1.bf16.msra.mxu0 0
        %1522 = vmatprep.subr.bf16.mxu0 0
        %1523 = vmatpush1.bf16.msra.mxu0 0
        %1524 = vmatprep.subr.bf16.mxu0 0
        %1525 = vmatpush1.bf16.msra.mxu0 0
        %1526 = vmatprep.subr.bf16.mxu0 0
        %1527 = vmatpush1.bf16.msra.mxu0 0
        %1528 = vmatprep.subr.bf16.mxu0 0
        %1529 = vmatpush1.bf16.msra.mxu0 0
        %1530 = vmatprep.subr.bf16.mxu0 0
        %1531 = vmatpush1.bf16.msra.mxu0 0
        %1532 = vmatprep.subr.bf16.mxu0 0
        %1533 = vmatpush1.bf16.msra.mxu0 0
        %1534 = vmatprep.subr.bf16.mxu0 0
        %1535 = vmatpush1.bf16.msra.mxu0 0
        %1536 = vmatprep.subr.bf16.mxu0 0
        %1537 = vmatpush1.bf16.msra.mxu0 0
        %1538 = vmatprep.subr.bf16.mxu0 0
        %1539 = vmatpush1.bf16.msra.mxu0 0
        %1540 = vmatprep.subr.bf16.mxu0 0
        %1541 = vmatpush1.bf16.msra.mxu0 0
        %1542 = vmatprep.subr.bf16.mxu0 0
        %1543 = vmatpush1.bf16.msra.mxu0 0
        %1544 = vmatprep.subr.bf16.mxu0 0
        %1545 = vmatpush1.bf16.msra.mxu0 0
        %1546 = vmatprep.subr.bf16.mxu0 0
        %1547 = vmatpush1.bf16.msra.mxu0 0
        %1548 = vmatprep.mubr.bf16.mxu0 0
        %1549 = vmatmul.mubr.bf16.gmra.mrb[0].mxu0 %v1511
        %v1550 = vpop.f32.mrb[0].mxu0
        %v1551 = vadd.f32 0.0, %v1550
        %v1552 = vpop.f32.mrb[0].mxu0
        %v1553 = vpop.f32.mrb[0].mxu0
        %v1554 = vpop.f32.mrb[0].mxu0
        %1555 = vdwg.mxu0
        %v1556 = vadd.f32 %v1396, %v1551
        %1557 = vrot.lane.b32.xlu0 %v1224, 112
        %v1558 = vpop.permute.xlu0 %1557
        %1559 = vrot.lane.b32.xlu0 %v1224, 80
        %v1560 = vpop.permute.xlu0 %1559
        %v1562 = vsel %vm1228, %v1558, 0
        %v1565 = vsel %vm1228, %v1560, 0
        %1567 = vmatprep.subr.bf16.mxu0 0
        %1568 = vmatpush1.bf16.xpose.msra.mxu0 %v1565
        %1569 = vmatprep.subr.bf16.mxu0 0
        %1570 = vmatpush1.bf16.xpose.msra.mxu0 0
        %1571 = vmatprep.subr.bf16.mxu0 0
        %1572 = vmatpush1.bf16.xpose.msra.mxu0 0
        %1573 = vmatprep.subr.bf16.mxu0 0
        %1574 = vmatpush1.bf16.xpose.msra.mxu0 0
        %1575 = vmatprep.subr.bf16.mxu0 0
        %1576 = vmatpush1.bf16.xpose.msra.mxu0 0
        %1577 = vmatprep.subr.bf16.mxu0 0
        %1578 = vmatpush1.bf16.xpose.msra.mxu0 0
        %1579 = vmatprep.subr.bf16.mxu0 0
        %1580 = vmatpush1.bf16.xpose.msra.mxu0 0
        %1581 = vmatprep.subr.bf16.mxu0 0
        %1582 = vmatpush1.bf16.xpose.msra.mxu0 0
        %1583 = vmatprep.subr.bf16.mxu0 0
        %1584 = vmatpush1.bf16.xpose.msra.mxu0 0
        %1585 = vmatprep.subr.bf16.mxu0 0
        %1586 = vmatpush1.bf16.xpose.msra.mxu0 0
        %1587 = vmatprep.subr.bf16.mxu0 0
        %1588 = vmatpush1.bf16.xpose.msra.mxu0 0
        %1589 = vmatprep.subr.bf16.mxu0 0
        %1590 = vmatpush1.bf16.xpose.msra.mxu0 0
        %1591 = vmatprep.subr.bf16.mxu0 0
        %1592 = vmatpush1.bf16.xpose.msra.mxu0 0
        %1593 = vmatprep.subr.bf16.mxu0 0
        %1594 = vmatpush1.bf16.xpose.msra.mxu0 0
        %1595 = vmatprep.subr.bf16.mxu0 0
        %1596 = vmatpush1.bf16.xpose.msra.mxu0 0
        %1597 = vmatprep.subr.bf16.mxu0 0
        %1598 = vmatpush1.bf16.xpose.msra.mxu0 0
        %1599 = vmatprep.mubr.bf16.mxu0 0
        %1600 = vmatmul.mubr.bf16.gmra.mrb[0].mxu0 %v1562
        %v1601 = vpop.f32.mrb[0].mxu0
        %v1602 = vadd.f32 0.0, %v1601
        %v1603 = vpop.f32.mrb[0].mxu0
        %v1604 = vpop.f32.mrb[0].mxu0
        %v1605 = vpop.f32.mrb[0].mxu0
        %1606 = vdwg.mxu0
        %v1607 = vmul.f32 %v1602, 0.35355338
        %v1608 = vadd.f32 %v1607, %v1280
        %v1609 = vsel %vm1228, %v1608, -inf
        %1610 = vmax.xlane.f32.xlu0 %v1609
        %v1611 = vpop.xlane.xlu0 %1610
        %v1612 = vsub.f32 %v1608, %v1611
        %v1613 = vmul.f32 %v1612, 1.442695
        %v1614 = vpow.pop %v1613
        %v1615 = vsel %vm1228, %v1614, 0.0
        %1616 = vadd.xlane.f32.xlu0 %v1615
        %v1617 = vpop.xlane.xlu0 %1616
        %v1618 = vrcp.pop %v1617
        %v1619 = vmul.f32 %v1614, %v1618
        %v1620 = vpack.c.bf16 %v1619, %v1619
        %1621 = vrot.lane.b32.xlu0 %v1224, 48
        %v1622 = vpop.permute.xlu0 %1621
        %v1624 = vsel %vm1228, %v1620, 0
        %v1627 = vsel %vm1117, %v1622, 0
        %1629 = vmatprep.subr.bf16.mxu0 0
        %1630 = vmatpush1.bf16.msra.mxu0 %v1627
        %1631 = vmatprep.subr.bf16.mxu0 0
        %1632 = vmatpush1.bf16.msra.mxu0 0
        %1633 = vmatprep.subr.bf16.mxu0 0
        %1634 = vmatpush1.bf16.msra.mxu0 0
        %1635 = vmatprep.subr.bf16.mxu0 0
        %1636 = vmatpush1.bf16.msra.mxu0 0
        %1637 = vmatprep.subr.bf16.mxu0 0
        %1638 = vmatpush1.bf16.msra.mxu0 0
        %1639 = vmatprep.subr.bf16.mxu0 0
        %1640 = vmatpush1.bf16.msra.mxu0 0
        %1641 = vmatprep.subr.bf16.mxu0 0
        %1642 = vmatpush1.bf16.msra.mxu0 0
        %1643 = vmatprep.subr.bf16.mxu0 0
        %1644 = vmatpush1.bf16.msra.mxu0 0
        %1645 = vmatprep.subr.bf16.mxu0 0
        %1646 = vmatpush1.bf16.msra.mxu0 0
        %1647 = vmatprep.subr.bf16.mxu0 0
        %1648 = vmatpush1.bf16.msra.mxu0 0
        %1649 = vmatprep.subr.bf16.mxu0 0
        %1650 = vmatpush1.bf16.msra.mxu0 0
        %1651 = vmatprep.subr.bf16.mxu0 0
        %1652 = vmatpush1.bf16.msra.mxu0 0
        %1653 = vmatprep.subr.bf16.mxu0 0
        %1654 = vmatpush1.bf16.msra.mxu0 0
        %1655 = vmatprep.subr.bf16.mxu0 0
        %1656 = vmatpush1.bf16.msra.mxu0 0
        %1657 = vmatprep.subr.bf16.mxu0 0
        %1658 = vmatpush1.bf16.msra.mxu0 0
        %1659 = vmatprep.subr.bf16.mxu0 0
        %1660 = vmatpush1.bf16.msra.mxu0 0
        %1661 = vmatprep.mubr.bf16.mxu0 0
        %1662 = vmatmul.mubr.bf16.gmra.mrb[0].mxu0 %v1624
        %v1663 = vpop.f32.mrb[0].mxu0
        %v1664 = vadd.f32 0.0, %v1663
        %v1665 = vpop.f32.mrb[0].mxu0
        %v1666 = vpop.f32.mrb[0].mxu0
        %v1667 = vpop.f32.mrb[0].mxu0
        %1668 = vdwg.mxu0
        %v1669 = vpack.c.bf16 %v1664, %v1664
        %v1671 = vsel %vm1228, %v1669, 0
        %v1674 = vsel %vm1117, %v1072, 0
        %1676 = vmatprep.subr.bf16.mxu0 0
        %1677 = vmatpush1.bf16.msra.mxu0 %v1674
        %1678 = vmatprep.subr.bf16.mxu0 0
        %1679 = vmatpush1.bf16.msra.mxu0 0
        %1680 = vmatprep.subr.bf16.mxu0 0
        %1681 = vmatpush1.bf16.msra.mxu0 0
        %1682 = vmatprep.subr.bf16.mxu0 0
        %1683 = vmatpush1.bf16.msra.mxu0 0
        %1684 = vmatprep.subr.bf16.mxu0 0
        %1685 = vmatpush1.bf16.msra.mxu0 0
        %1686 = vmatprep.subr.bf16.mxu0 0
        %1687 = vmatpush1.bf16.msra.mxu0 0
        %1688 = vmatprep.subr.bf16.mxu0 0
        %1689 = vmatpush1.bf16.msra.mxu0 0
        %1690 = vmatprep.subr.bf16.mxu0 0
        %1691 = vmatpush1.bf16.msra.mxu0 0
        %1692 = vmatprep.subr.bf16.mxu0 0
        %1693 = vmatpush1.bf16.msra.mxu0 0
        %1694 = vmatprep.subr.bf16.mxu0 0
        %1695 = vmatpush1.bf16.msra.mxu0 0
        %1696 = vmatprep.subr.bf16.mxu0 0
        %1697 = vmatpush1.bf16.msra.mxu0 0
        %1698 = vmatprep.subr.bf16.mxu0 0
        %1699 = vmatpush1.bf16.msra.mxu0 0
        %1700 = vmatprep.subr.bf16.mxu0 0
        %1701 = vmatpush1.bf16.msra.mxu0 0
        %1702 = vmatprep.subr.bf16.mxu0 0
        %1703 = vmatpush1.bf16.msra.mxu0 0
        %1704 = vmatprep.subr.bf16.mxu0 0
        %1705 = vmatpush1.bf16.msra.mxu0 0
        %1706 = vmatprep.subr.bf16.mxu0 0
        %1707 = vmatpush1.bf16.msra.mxu0 0
        %1708 = vmatprep.mubr.bf16.mxu0 0
        %1709 = vmatmul.mubr.bf16.gmra.mrb[0].mxu0 %v1671
        %v1710 = vpop.f32.mrb[0].mxu0
        %v1711 = vadd.f32 0.0, %v1710
        %v1712 = vpop.f32.mrb[0].mxu0
        %v1713 = vpop.f32.mrb[0].mxu0
        %v1714 = vpop.f32.mrb[0].mxu0
        %1715 = vdwg.mxu0
        %v1716 = vadd.f32 %v1556, %v1711
        %1717 = vrot.lane.b32.xlu0 %v1224, 104
        %v1718 = vpop.permute.xlu0 %1717
        %1719 = vrot.lane.b32.xlu0 %v1224, 72
        %v1720 = vpop.permute.xlu0 %1719
        %v1722 = vsel %vm1228, %v1718, 0
        %v1725 = vsel %vm1228, %v1720, 0
        %1727 = vmatprep.subr.bf16.mxu0 0
        %1728 = vmatpush1.bf16.xpose.msra.mxu0 %v1725
        %1729 = vmatprep.subr.bf16.mxu0 0
        %1730 = vmatpush1.bf16.xpose.msra.mxu0 0
        %1731 = vmatprep.subr.bf16.mxu0 0
        %1732 = vmatpush1.bf16.xpose.msra.mxu0 0
        %1733 = vmatprep.subr.bf16.mxu0 0
        %1734 = vmatpush1.bf16.xpose.msra.mxu0 0
        %1735 = vmatprep.subr.bf16.mxu0 0
        %1736 = vmatpush1.bf16.xpose.msra.mxu0 0
        %1737 = vmatprep.subr.bf16.mxu0 0
        %1738 = vmatpush1.bf16.xpose.msra.mxu0 0
        %1739 = vmatprep.subr.bf16.mxu0 0
        %1740 = vmatpush1.bf16.xpose.msra.mxu0 0
        %1741 = vmatprep.subr.bf16.mxu0 0
        %1742 = vmatpush1.bf16.xpose.msra.mxu0 0
        %1743 = vmatprep.subr.bf16.mxu0 0
        %1744 = vmatpush1.bf16.xpose.msra.mxu0 0
        %1745 = vmatprep.subr.bf16.mxu0 0
        %1746 = vmatpush1.bf16.xpose.msra.mxu0 0
        %1747 = vmatprep.subr.bf16.mxu0 0
        %1748 = vmatpush1.bf16.xpose.msra.mxu0 0
        %1749 = vmatprep.subr.bf16.mxu0 0
        %1750 = vmatpush1.bf16.xpose.msra.mxu0 0
        %1751 = vmatprep.subr.bf16.mxu0 0
        %1752 = vmatpush1.bf16.xpose.msra.mxu0 0
        %1753 = vmatprep.subr.bf16.mxu0 0
        %1754 = vmatpush1.bf16.xpose.msra.mxu0 0
        %1755 = vmatprep.subr.bf16.mxu0 0
        %1756 = vmatpush1.bf16.xpose.msra.mxu0 0
        %1757 = vmatprep.subr.bf16.mxu0 0
        %1758 = vmatpush1.bf16.xpose.msra.mxu0 0
        %1759 = vmatprep.mubr.bf16.mxu0 0
        %1760 = vmatmul.mubr.bf16.gmra.mrb[0].mxu0 %v1722
        %v1761 = vpop.f32.mrb[0].mxu0
        %v1762 = vadd.f32 0.0, %v1761
        %v1763 = vpop.f32.mrb[0].mxu0
        %v1764 = vpop.f32.mrb[0].mxu0
        %v1765 = vpop.f32.mrb[0].mxu0
        %1766 = vdwg.mxu0
        %v1767 = vmul.f32 %v1762, 0.35355338
        %v1768 = vadd.f32 %v1767, %v1280
        %v1769 = vsel %vm1228, %v1768, -inf
        %1770 = vmax.xlane.f32.xlu0 %v1769
        %v1771 = vpop.xlane.xlu0 %1770
        %v1772 = vsub.f32 %v1768, %v1771
        %v1773 = vmul.f32 %v1772, 1.442695
        %v1774 = vpow.pop %v1773
        %v1775 = vsel %vm1228, %v1774, 0.0
        %1776 = vadd.xlane.f32.xlu0 %v1775
        %v1777 = vpop.xlane.xlu0 %1776
        %v1778 = vrcp.pop %v1777
        %v1779 = vmul.f32 %v1774, %v1778
        %v1780 = vpack.c.bf16 %v1779, %v1779
        %1781 = vrot.lane.b32.xlu0 %v1224, 40
        %v1782 = vpop.permute.xlu0 %1781
        %v1784 = vsel %vm1228, %v1780, 0
        %v1787 = vsel %vm1117, %v1782, 0
        %1789 = vmatprep.subr.bf16.mxu0 0
        %1790 = vmatpush1.bf16.msra.mxu0 %v1787
        %1791 = vmatprep.subr.bf16.mxu0 0
        %1792 = vmatpush1.bf16.msra.mxu0 0
        %1793 = vmatprep.subr.bf16.mxu0 0
        %1794 = vmatpush1.bf16.msra.mxu0 0
        %1795 = vmatprep.subr.bf16.mxu0 0
        %1796 = vmatpush1.bf16.msra.mxu0 0
        %1797 = vmatprep.subr.bf16.mxu0 0
        %1798 = vmatpush1.bf16.msra.mxu0 0
        %1799 = vmatprep.subr.bf16.mxu0 0
        %1800 = vmatpush1.bf16.msra.mxu0 0
        %1801 = vmatprep.subr.bf16.mxu0 0
        %1802 = vmatpush1.bf16.msra.mxu0 0
        %1803 = vmatprep.subr.bf16.mxu0 0
        %1804 = vmatpush1.bf16.msra.mxu0 0
        %1805 = vmatprep.subr.bf16.mxu0 0
        %1806 = vmatpush1.bf16.msra.mxu0 0
        %1807 = vmatprep.subr.bf16.mxu0 0
        %1808 = vmatpush1.bf16.msra.mxu0 0
        %1809 = vmatprep.subr.bf16.mxu0 0
        %1810 = vmatpush1.bf16.msra.mxu0 0
        %1811 = vmatprep.subr.bf16.mxu0 0
        %1812 = vmatpush1.bf16.msra.mxu0 0
        %1813 = vmatprep.subr.bf16.mxu0 0
        %1814 = vmatpush1.bf16.msra.mxu0 0
        %1815 = vmatprep.subr.bf16.mxu0 0
        %1816 = vmatpush1.bf16.msra.mxu0 0
        %1817 = vmatprep.subr.bf16.mxu0 0
        %1818 = vmatpush1.bf16.msra.mxu0 0
        %1819 = vmatprep.subr.bf16.mxu0 0
        %1820 = vmatpush1.bf16.msra.mxu0 0
        %1821 = vmatprep.mubr.bf16.mxu0 0
        %1822 = vmatmul.mubr.bf16.gmra.mrb[0].mxu0 %v1784
        %v1823 = vpop.f32.mrb[0].mxu0
        %v1824 = vadd.f32 0.0, %v1823
        %v1825 = vpop.f32.mrb[0].mxu0
        %v1826 = vpop.f32.mrb[0].mxu0
        %v1827 = vpop.f32.mrb[0].mxu0
        %1828 = vdwg.mxu0
        %v1829 = vpack.c.bf16 %v1824, %v1824
        %v1831 = vsel %vm1228, %v1829, 0
        %v1834 = vsel %vm1117, %v1073, 0
        %1836 = vmatprep.subr.bf16.mxu0 0
        %1837 = vmatpush1.bf16.msra.mxu0 %v1834
        %1838 = vmatprep.subr.bf16.mxu0 0
        %1839 = vmatpush1.bf16.msra.mxu0 0
        %1840 = vmatprep.subr.bf16.mxu0 0
        %1841 = vmatpush1.bf16.msra.mxu0 0
        %1842 = vmatprep.subr.bf16.mxu0 0
        %1843 = vmatpush1.bf16.msra.mxu0 0
        %1844 = vmatprep.subr.bf16.mxu0 0
        %1845 = vmatpush1.bf16.msra.mxu0 0
        %1846 = vmatprep.subr.bf16.mxu0 0
        %1847 = vmatpush1.bf16.msra.mxu0 0
        %1848 = vmatprep.subr.bf16.mxu0 0
        %1849 = vmatpush1.bf16.msra.mxu0 0
        %1850 = vmatprep.subr.bf16.mxu0 0
        %1851 = vmatpush1.bf16.msra.mxu0 0
        %1852 = vmatprep.subr.bf16.mxu0 0
        %1853 = vmatpush1.bf16.msra.mxu0 0
        %1854 = vmatprep.subr.bf16.mxu0 0
        %1855 = vmatpush1.bf16.msra.mxu0 0
        %1856 = vmatprep.subr.bf16.mxu0 0
        %1857 = vmatpush1.bf16.msra.mxu0 0
        %1858 = vmatprep.subr.bf16.mxu0 0
        %1859 = vmatpush1.bf16.msra.mxu0 0
        %1860 = vmatprep.subr.bf16.mxu0 0
        %1861 = vmatpush1.bf16.msra.mxu0 0
        %1862 = vmatprep.subr.bf16.mxu0 0
        %1863 = vmatpush1.bf16.msra.mxu0 0
        %1864 = vmatprep.subr.bf16.mxu0 0
        %1865 = vmatpush1.bf16.msra.mxu0 0
        %1866 = vmatprep.subr.bf16.mxu0 0
        %1867 = vmatpush1.bf16.msra.mxu0 0
        %1868 = vmatprep.mubr.bf16.mxu0 0
        %1869 = vmatmul.mubr.bf16.gmra.mrb[0].mxu0 %v1831
        %v1870 = vpop.f32.mrb[0].mxu0
        %v1871 = vadd.f32 0.0, %v1870
        %v1872 = vpop.f32.mrb[0].mxu0
        %v1873 = vpop.f32.mrb[0].mxu0
        %v1874 = vpop.f32.mrb[0].mxu0
        %1875 = vdwg.mxu0
        %v1876 = vadd.f32 %v1716, %v1871
        %v1877 = vadd.f32 %v1156, %v1876
        %v1878 = vsel %vm1180, %v1877, 0.0
        %1879 = vadd.xlane.f32.xlu0 %v1878
        %v1880 = vpop.xlane.xlu0 %1879
        %v1881 = vrcp.pop 32.0
        %v1882 = vmul.f32 %v1880, %v1881
        %v1883 = vsub.f32 %v1877, %v1882
        %v1884 = vmul.f32 %v1883, %v1883
        %v1885 = vsel %vm1180, %v1884, 0.0
        %1886 = vadd.xlane.f32.xlu0 %v1885
        %v1887 = vpop.xlane.xlu0 %1886
        %v1888 = vmul.f32 %v1887, %v1881
        %v1889 = vadd.f32 %v1888, 1e-12
        %v1890 = vrsqrt.pop %v1889
        %v1891 = vmul.f32 %v1883, %v1890
        %v1893 = vlaneseq
        %v1894 = vshrl.u32 %v1893, 7
        %v1895 = vsub.s32 0, %v1894
        %v1896 = vrot.slane %v1075, %v1895
        %v1898 = vmul.f32 %v1891, %v1896
        %v1900 = vlaneseq
        %v1901 = vshrl.u32 %v1900, 7
        %v1902 = vsub.s32 0, %v1901
        %v1903 = vrot.slane %v1076, %v1902
        %v1905 = vadd.f32 %v1898, %v1903
        %v1906 = vpack.c.bf16 %v1905, %v1905
        %v1908 = vlaneseq
        %v1909 = vshrl.u32 %v1908, 7
        %v1910 = vsub.s32 0, %v1909
        %v1911 = vrot.slane %v1081, %v1910
        %v1917 = vunpack.c.l.b16 %v1077
        %v1918 = vunpack.c.l.b16 %v1078
        %v1919 = vunpack.c.l.b16 %v1079
        %v1920 = vunpack.c.l.b16 %v1080
        %v1921 = vpack.c.b16 %v1918, %v1917
        %v1922 = vpack.c.b16 %v1920, %v1919
        %v1926 = vsel %vm1180, %v1906, 0
        %1928 = vmatprep.subr.bf16.mxu0 0
        %1929 = vmatpush1.bf16.msra.mxu0 %v1921
        %1930 = vmatprep.subr.bf16.mxu0 0
        %1931 = vmatpush1.bf16.msra.mxu0 %v1922
        %1932 = vmatprep.subr.bf16.mxu0 0
        %1933 = vmatpush1.bf16.msra.mxu0 0
        %1934 = vmatprep.subr.bf16.mxu0 0
        %1935 = vmatpush1.bf16.msra.mxu0 0
        %1936 = vmatprep.subr.bf16.mxu0 0
        %1937 = vmatpush1.bf16.msra.mxu0 0
        %1938 = vmatprep.subr.bf16.mxu0 0
        %1939 = vmatpush1.bf16.msra.mxu0 0
        %1940 = vmatprep.subr.bf16.mxu0 0
        %1941 = vmatpush1.bf16.msra.mxu0 0
        %1942 = vmatprep.subr.bf16.mxu0 0
        %1943 = vmatpush1.bf16.msra.mxu0 0
        %1944 = vmatprep.subr.bf16.mxu0 0
        %1945 = vmatpush1.bf16.msra.mxu0 0
        %1946 = vmatprep.subr.bf16.mxu0 0
        %1947 = vmatpush1.bf16.msra.mxu0 0
        %1948 = vmatprep.subr.bf16.mxu0 0
        %1949 = vmatpush1.bf16.msra.mxu0 0
        %1950 = vmatprep.subr.bf16.mxu0 0
        %1951 = vmatpush1.bf16.msra.mxu0 0
        %1952 = vmatprep.subr.bf16.mxu0 0
        %1953 = vmatpush1.bf16.msra.mxu0 0
        %1954 = vmatprep.subr.bf16.mxu0 0
        %1955 = vmatpush1.bf16.msra.mxu0 0
        %1956 = vmatprep.subr.bf16.mxu0 0
        %1957 = vmatpush1.bf16.msra.mxu0 0
        %1958 = vmatprep.subr.bf16.mxu0 0
        %1959 = vmatpush1.bf16.msra.mxu0 0
        %1960 = vmatprep.mubr.bf16.mxu0 0
        %1961 = vmatmul.mubr.bf16.gmra.mrb[0].mxu0 %v1926
        %v1962 = vpop.f32.mrb[0].mxu0
        %v1963 = vadd.f32 %v1911, %v1962
        %v1964 = vpop.f32.mrb[0].mxu0
        %v1965 = vpop.f32.mrb[0].mxu0
        %v1966 = vpop.f32.mrb[0].mxu0
        %1967 = vdwg.mxu0
        %v1968 = vmul.f32 %v1963, 0.5
        %v1969 = vmul.f32 %v1963, %v1963
        %v1970 = vmul.f32 %v1963, %v1969
        %v1971 = vmul.f32 %v1970, 0.044715
        %v1972 = vadd.f32 %v1963, %v1971
        %v1973 = vmul.f32 %v1972, 0.7978846
        %v1974 = vtanh.pop %v1973
        %v1975 = vadd.f32 %v1974, 1.0
        %v1976 = vmul.f32 %v1968, %v1975
        %v1977 = vpack.c.bf16 %v1976, %v1976
        %v1979 = vlaneseq
        %v1980 = vshrl.u32 %v1979, 7
        %v1981 = vsub.s32 0, %v1980
        %v1982 = vrot.slane %v1090, %v1981
        %v1992 = vunpack.c.l.b16 %v1082
        %v1993 = vunpack.c.l.b16 %v1083
        %v1994 = vunpack.c.l.b16 %v1084
        %v1995 = vunpack.c.l.b16 %v1085
        %v1996 = vunpack.c.l.b16 %v1086
        %v1997 = vunpack.c.l.b16 %v1087
        %v1998 = vunpack.c.l.b16 %v1088
        %v1999 = vunpack.c.l.b16 %v1089
        %v2000 = vpack.c.b16 %v1993, %v1992
        %v2001 = vpack.c.b16 %v1995, %v1994
        %v2002 = vpack.c.b16 %v1997, %v1996
        %v2003 = vpack.c.b16 %v1999, %v1998
        %vm2008 = vcmask 523264
        %v2010 = vsel %vm2008, %v1977, 0
        %2012 = vmatprep.subr.bf16.mxu0 0
        %2013 = vmatpush1.bf16.msra.mxu0 %v2000
        %2014 = vmatprep.subr.bf16.mxu0 0
        %2015 = vmatpush1.bf16.msra.mxu0 %v2001
        %2016 = vmatprep.subr.bf16.mxu0 0
        %2017 = vmatpush1.bf16.msra.mxu0 %v2002
        %2018 = vmatprep.subr.bf16.mxu0 0
        %2019 = vmatpush1.bf16.msra.mxu0 %v2003
        %2020 = vmatprep.subr.bf16.mxu0 0
        %2021 = vmatpush1.bf16.msra.mxu0 0
        %2022 = vmatprep.subr.bf16.mxu0 0
        %2023 = vmatpush1.bf16.msra.mxu0 0
        %2024 = vmatprep.subr.bf16.mxu0 0
        %2025 = vmatpush1.bf16.msra.mxu0 0
        %2026 = vmatprep.subr.bf16.mxu0 0
        %2027 = vmatpush1.bf16.msra.mxu0 0
        %2028 = vmatprep.subr.bf16.mxu0 0
        %2029 = vmatpush1.bf16.msra.mxu0 0
        %2030 = vmatprep.subr.bf16.mxu0 0
        %2031 = vmatpush1.bf16.msra.mxu0 0
        %2032 = vmatprep.subr.bf16.mxu0 0
        %2033 = vmatpush1.bf16.msra.mxu0 0
        %2034 = vmatprep.subr.bf16.mxu0 0
        %2035 = vmatpush1.bf16.msra.mxu0 0
        %2036 = vmatprep.subr.bf16.mxu0 0
        %2037 = vmatpush1.bf16.msra.mxu0 0
        %2038 = vmatprep.subr.bf16.mxu0 0
        %2039 = vmatpush1.bf16.msra.mxu0 0
        %2040 = vmatprep.subr.bf16.mxu0 0
        %2041 = vmatpush1.bf16.msra.mxu0 0
        %2042 = vmatprep.subr.bf16.mxu0 0
        %2043 = vmatpush1.bf16.msra.mxu0 0
        %2044 = vmatprep.mubr.bf16.mxu0 0
        %2045 = vmatmul.mubr.bf16.gmra.mrb[0].mxu0 %v2010
        %v2046 = vpop.f32.mrb[0].mxu0
        %v2047 = vadd.f32 %v1982, %v2046
        %v2048 = vpop.f32.mrb[0].mxu0
        %v2049 = vpop.f32.mrb[0].mxu0
        %v2050 = vpop.f32.mrb[0].mxu0
        %2051 = vdwg.mxu0
        %v2052 = vadd.f32 %v2047, %v1905
        %v2053 = vsel %vm1180, %v2052, 0.0
        %2054 = vadd.xlane.f32.xlu0 %v2053
        %v2055 = vpop.xlane.xlu0 %2054
        %v2056 = vmul.f32 %v2055, %v1881
        %v2057 = vsub.f32 %v2052, %v2056
        %v2058 = vmul.f32 %v2057, %v2057
        %v2059 = vsel %vm1180, %v2058, 0.0
        %2060 = vadd.xlane.f32.xlu0 %v2059
        %v2061 = vpop.xlane.xlu0 %2060
        %v2062 = vmul.f32 %v2061, %v1881
        %v2063 = vadd.f32 %v2062, 1e-12
        %v2064 = vrsqrt.pop %v2063
        %v2065 = vmul.f32 %v2057, %v2064
        %v2067 = vlaneseq
        %v2068 = vshrl.u32 %v2067, 7
        %v2069 = vsub.s32 0, %v2068
        %v2070 = vrot.slane %v1091, %v2069
        %v2072 = vmul.f32 %v2065, %v2070
        %v2074 = vlaneseq
        %v2075 = vshrl.u32 %v2074, 7
        %v2076 = vsub.s32 0, %v2075
        %v2077 = vrot.slane %v1092, %v2076
        %v2079 = vadd.f32 %v2072, %v2077
        %v2080 = vpack.c.bf16 %v2079, %v2079
        %v2082 = vsel %vm1180, %v2080, 0
        %2084 = vmatprep.subr.bf16.mxu0 0
        %2085 = vmatpush1.bf16.msra.mxu0 %v1176
        %2086 = vmatprep.subr.bf16.mxu0 0
        %2087 = vmatpush1.bf16.msra.mxu0 %v1177
        %2088 = vmatprep.subr.bf16.mxu0 0
        %2089 = vmatpush1.bf16.msra.mxu0 0
        %2090 = vmatprep.subr.bf16.mxu0 0
        %2091 = vmatpush1.bf16.msra.mxu0 0
        %2092 = vmatprep.subr.bf16.mxu0 0
        %2093 = vmatpush1.bf16.msra.mxu0 0
        %2094 = vmatprep.subr.bf16.mxu0 0
        %2095 = vmatpush1.bf16.msra.mxu0 0
        %2096 = vmatprep.subr.bf16.mxu0 0
        %2097 = vmatpush1.bf16.msra.mxu0 0
        %2098 = vmatprep.subr.bf16.mxu0 0
        %2099 = vmatpush1.bf16.msra.mxu0 0
        %2100 = vmatprep.subr.bf16.mxu0 0
        %2101 = vmatpush1.bf16.msra.mxu0 0
        %2102 = vmatprep.subr.bf16.mxu0 0
        %2103 = vmatpush1.bf16.msra.mxu0 0
        %2104 = vmatprep.subr.bf16.mxu0 0
        %2105 = vmatpush1.bf16.msra.mxu0 0
        %2106 = vmatprep.subr.bf16.mxu0 0
        %2107 = vmatpush1.bf16.msra.mxu0 0
        %2108 = vmatprep.subr.bf16.mxu0 0
        %2109 = vmatpush1.bf16.msra.mxu0 0
        %2110 = vmatprep.subr.bf16.mxu0 0
        %2111 = vmatpush1.bf16.msra.mxu0 0
        %2112 = vmatprep.subr.bf16.mxu0 0
        %2113 = vmatpush1.bf16.msra.mxu0 0
        %2114 = vmatprep.subr.bf16.mxu0 0
        %2115 = vmatpush1.bf16.msra.mxu0 0
        %2116 = vmatprep.mubr.bf16.mxu0 0
        %2117 = vmatmul.mubr.bf16.gmra.mrb[0].mxu0 %v2082
        %v2118 = vpop.f32.mrb[0].mxu0
        %v2119 = vadd.f32 %v1166, %v2118
        %v2120 = vpop.f32.mrb[0].mxu0
        %v2121 = vpop.f32.mrb[0].mxu0
        %v2122 = vpop.f32.mrb[0].mxu0
        %2123 = vdwg.mxu0
        %v2124 = vpack.c.bf16 %v2119, %v2119
        %2126 = vrot.lane.b32.xlu0 %v2124, 96
        %v2127 = vpop.permute.xlu0 %2126
        %v2129 = vsel %vm1228, %v2124, 0
        %v2132 = vsel %vm1228, %v2127, 0
        %2134 = vmatprep.subr.bf16.mxu0 0
        %2135 = vmatpush1.bf16.xpose.msra.mxu0 %v2132
        %2136 = vmatprep.subr.bf16.mxu0 0
        %2137 = vmatpush1.bf16.xpose.msra.mxu0 0
        %2138 = vmatprep.subr.bf16.mxu0 0
        %2139 = vmatpush1.bf16.xpose.msra.mxu0 0
        %2140 = vmatprep.subr.bf16.mxu0 0
        %2141 = vmatpush1.bf16.xpose.msra.mxu0 0
        %2142 = vmatprep.subr.bf16.mxu0 0
        %2143 = vmatpush1.bf16.xpose.msra.mxu0 0
        %2144 = vmatprep.subr.bf16.mxu0 0
        %2145 = vmatpush1.bf16.xpose.msra.mxu0 0
        %2146 = vmatprep.subr.bf16.mxu0 0
        %2147 = vmatpush1.bf16.xpose.msra.mxu0 0
        %2148 = vmatprep.subr.bf16.mxu0 0
        %2149 = vmatpush1.bf16.xpose.msra.mxu0 0
        %2150 = vmatprep.subr.bf16.mxu0 0
        %2151 = vmatpush1.bf16.xpose.msra.mxu0 0
        %2152 = vmatprep.subr.bf16.mxu0 0
        %2153 = vmatpush1.bf16.xpose.msra.mxu0 0
        %2154 = vmatprep.subr.bf16.mxu0 0
        %2155 = vmatpush1.bf16.xpose.msra.mxu0 0
        %2156 = vmatprep.subr.bf16.mxu0 0
        %2157 = vmatpush1.bf16.xpose.msra.mxu0 0
        %2158 = vmatprep.subr.bf16.mxu0 0
        %2159 = vmatpush1.bf16.xpose.msra.mxu0 0
        %2160 = vmatprep.subr.bf16.mxu0 0
        %2161 = vmatpush1.bf16.xpose.msra.mxu0 0
        %2162 = vmatprep.subr.bf16.mxu0 0
        %2163 = vmatpush1.bf16.xpose.msra.mxu0 0
        %2164 = vmatprep.subr.bf16.mxu0 0
        %2165 = vmatpush1.bf16.xpose.msra.mxu0 0
        %2166 = vmatprep.mubr.bf16.mxu0 0
        %2167 = vmatmul.mubr.bf16.gmra.mrb[0].mxu0 %v2129
        %v2168 = vpop.f32.mrb[0].mxu0
        %v2169 = vadd.f32 0.0, %v2168
        %v2170 = vpop.f32.mrb[0].mxu0
        %v2171 = vpop.f32.mrb[0].mxu0
        %v2172 = vpop.f32.mrb[0].mxu0
        %2173 = vdwg.mxu0
        %v2174 = vmul.f32 %v2169, 0.35355338
        %v2175 = vadd.f32 %v2174, %v1280
        %v2176 = vsel %vm1228, %v2175, -inf
        %2177 = vmax.xlane.f32.xlu0 %v2176
        %v2178 = vpop.xlane.xlu0 %2177
        %v2179 = vsub.f32 %v2175, %v2178
        %v2180 = vmul.f32 %v2179, 1.442695
        %v2181 = vpow.pop %v2180
        %v2182 = vsel %vm1228, %v2181, 0.0
        %2183 = vadd.xlane.f32.xlu0 %v2182
        %v2184 = vpop.xlane.xlu0 %2183
        %v2185 = vrcp.pop %v2184
        %v2186 = vmul.f32 %v2181, %v2185
        %v2187 = vpack.c.bf16 %v2186, %v2186
        %2188 = vrot.lane.b32.xlu0 %v2124, 64
        %v2189 = vpop.permute.xlu0 %2188
        %v2191 = vsel %vm1228, %v2187, 0
        %v2194 = vsel %vm1117, %v2189, 0
        %2196 = vmatprep.subr.bf16.mxu0 0
        %2197 = vmatpush1.bf16.msra.mxu0 %v2194
        %2198 = vmatprep.subr.bf16.mxu0 0
        %2199 = vmatpush1.bf16.msra.mxu0 0
        %2200 = vmatprep.subr.bf16.mxu0 0
        %2201 = vmatpush1.bf16.msra.mxu0 0
        %2202 = vmatprep.subr.bf16.mxu0 0
        %2203 = vmatpush1.bf16.msra.mxu0 0
        %2204 = vmatprep.subr.bf16.mxu0 0
        %2205 = vmatpush1.bf16.msra.mxu0 0
        %2206 = vmatprep.subr.bf16.mxu0 0
        %2207 = vmatpush1.bf16.msra.mxu0 0
        %2208 = vmatprep.subr.bf16.mxu0 0
        %2209 = vmatpush1.bf16.msra.mxu0 0
        %2210 = vmatprep.subr.bf16.mxu0 0
        %2211 = vmatpush1.bf16.msra.mxu0 0
        %2212 = vmatprep.subr.bf16.mxu0 0
        %2213 = vmatpush1.bf16.msra.mxu0 0
        %2214 = vmatprep.subr.bf16.mxu0 0
        %2215 = vmatpush1.bf16.msra.mxu0 0
        %2216 = vmatprep.subr.bf16.mxu0 0
        %2217 = vmatpush1.bf16.msra.mxu0 0
        %2218 = vmatprep.subr.bf16.mxu0 0
        %2219 = vmatpush1.bf16.msra.mxu0 0
        %2220 = vmatprep.subr.bf16.mxu0 0
        %2221 = vmatpush1.bf16.msra.mxu0 0
        %2222 = vmatprep.subr.bf16.mxu0 0
        %2223 = vmatpush1.bf16.msra.mxu0 0
        %2224 = vmatprep.subr.bf16.mxu0 0
        %2225 = vmatpush1.bf16.msra.mxu0 0
        %2226 = vmatprep.subr.bf16.mxu0 0
        %2227 = vmatpush1.bf16.msra.mxu0 0
        %2228 = vmatprep.mubr.bf16.mxu0 0
        %2229 = vmatmul.mubr.bf16.gmra.mrb[0].mxu0 %v2191
        %v2230 = vpop.f32.mrb[0].mxu0
        %v2231 = vadd.f32 0.0, %v2230
        %v2232 = vpop.f32.mrb[0].mxu0
        %v2233 = vpop.f32.mrb[0].mxu0
        %v2234 = vpop.f32.mrb[0].mxu0
        %2235 = vdwg.mxu0
        %v2236 = vpack.c.bf16 %v2231, %v2231
        %v2238 = vsel %vm1228, %v2236, 0
        %2240 = vmatprep.subr.bf16.mxu0 0
        %2241 = vmatpush1.bf16.msra.mxu0 %v1348
        %2242 = vmatprep.subr.bf16.mxu0 0
        %2243 = vmatpush1.bf16.msra.mxu0 0
        %2244 = vmatprep.subr.bf16.mxu0 0
        %2245 = vmatpush1.bf16.msra.mxu0 0
        %2246 = vmatprep.subr.bf16.mxu0 0
        %2247 = vmatpush1.bf16.msra.mxu0 0
        %2248 = vmatprep.subr.bf16.mxu0 0
        %2249 = vmatpush1.bf16.msra.mxu0 0
        %2250 = vmatprep.subr.bf16.mxu0 0
        %2251 = vmatpush1.bf16.msra.mxu0 0
        %2252 = vmatprep.subr.bf16.mxu0 0
        %2253 = vmatpush1.bf16.msra.mxu0 0
        %2254 = vmatprep.subr.bf16.mxu0 0
        %2255 = vmatpush1.bf16.msra.mxu0 0
        %2256 = vmatprep.subr.bf16.mxu0 0
        %2257 = vmatpush1.bf16.msra.mxu0 0
        %2258 = vmatprep.subr.bf16.mxu0 0
        %2259 = vmatpush1.bf16.msra.mxu0 0
        %2260 = vmatprep.subr.bf16.mxu0 0
        %2261 = vmatpush1.bf16.msra.mxu0 0
        %2262 = vmatprep.subr.bf16.mxu0 0
        %2263 = vmatpush1.bf16.msra.mxu0 0
        %2264 = vmatprep.subr.bf16.mxu0 0
        %2265 = vmatpush1.bf16.msra.mxu0 0
        %2266 = vmatprep.subr.bf16.mxu0 0
        %2267 = vmatpush1.bf16.msra.mxu0 0
        %2268 = vmatprep.subr.bf16.mxu0 0
        %2269 = vmatpush1.bf16.msra.mxu0 0
        %2270 = vmatprep.subr.bf16.mxu0 0
        %2271 = vmatpush1.bf16.msra.mxu0 0
        %2272 = vmatprep.mubr.bf16.mxu0 0
        %2273 = vmatmul.mubr.bf16.gmra.mrb[0].mxu0 %v2238
        %v2274 = vpop.f32.mrb[0].mxu0
        %v2275 = vadd.f32 0.0, %v2274
        %v2276 = vpop.f32.mrb[0].mxu0
        %v2277 = vpop.f32.mrb[0].mxu0
        %v2278 = vpop.f32.mrb[0].mxu0
        %2279 = vdwg.mxu0
        %v2280 = vadd.f32 %v1394, %v2275
        %2281 = vrot.lane.b32.xlu0 %v2124, 120
        %v2282 = vpop.permute.xlu0 %2281
        %2283 = vrot.lane.b32.xlu0 %v2124, 88
        %v2284 = vpop.permute.xlu0 %2283
        %v2286 = vsel %vm1228, %v2282, 0
        %v2289 = vsel %vm1228, %v2284, 0
        %2291 = vmatprep.subr.bf16.mxu0 0
        %2292 = vmatpush1.bf16.xpose.msra.mxu0 %v2289
        %2293 = vmatprep.subr.bf16.mxu0 0
        %2294 = vmatpush1.bf16.xpose.msra.mxu0 0
        %2295 = vmatprep.subr.bf16.mxu0 0
        %2296 = vmatpush1.bf16.xpose.msra.mxu0 0
        %2297 = vmatprep.subr.bf16.mxu0 0
        %2298 = vmatpush1.bf16.xpose.msra.mxu0 0
        %2299 = vmatprep.subr.bf16.mxu0 0
        %2300 = vmatpush1.bf16.xpose.msra.mxu0 0
        %2301 = vmatprep.subr.bf16.mxu0 0
        %2302 = vmatpush1.bf16.xpose.msra.mxu0 0
        %2303 = vmatprep.subr.bf16.mxu0 0
        %2304 = vmatpush1.bf16.xpose.msra.mxu0 0
        %2305 = vmatprep.subr.bf16.mxu0 0
        %2306 = vmatpush1.bf16.xpose.msra.mxu0 0
        %2307 = vmatprep.subr.bf16.mxu0 0
        %2308 = vmatpush1.bf16.xpose.msra.mxu0 0
        %2309 = vmatprep.subr.bf16.mxu0 0
        %2310 = vmatpush1.bf16.xpose.msra.mxu0 0
        %2311 = vmatprep.subr.bf16.mxu0 0
        %2312 = vmatpush1.bf16.xpose.msra.mxu0 0
        %2313 = vmatprep.subr.bf16.mxu0 0
        %2314 = vmatpush1.bf16.xpose.msra.mxu0 0
        %2315 = vmatprep.subr.bf16.mxu0 0
        %2316 = vmatpush1.bf16.xpose.msra.mxu0 0
        %2317 = vmatprep.subr.bf16.mxu0 0
        %2318 = vmatpush1.bf16.xpose.msra.mxu0 0
        %2319 = vmatprep.subr.bf16.mxu0 0
        %2320 = vmatpush1.bf16.xpose.msra.mxu0 0
        %2321 = vmatprep.subr.bf16.mxu0 0
        %2322 = vmatpush1.bf16.xpose.msra.mxu0 0
        %2323 = vmatprep.mubr.bf16.mxu0 0
        %2324 = vmatmul.mubr.bf16.gmra.mrb[0].mxu0 %v2286
        %v2325 = vpop.f32.mrb[0].mxu0
        %v2326 = vadd.f32 0.0, %v2325
        %v2327 = vpop.f32.mrb[0].mxu0
        %v2328 = vpop.f32.mrb[0].mxu0
        %v2329 = vpop.f32.mrb[0].mxu0
        %2330 = vdwg.mxu0
        %v2331 = vmul.f32 %v2326, 0.35355338
        %v2332 = vadd.f32 %v2331, %v1280
        %v2333 = vsel %vm1228, %v2332, -inf
        %2334 = vmax.xlane.f32.xlu0 %v2333
        %v2335 = vpop.xlane.xlu0 %2334
        %v2336 = vsub.f32 %v2332, %v2335
        %v2337 = vmul.f32 %v2336, 1.442695
        %v2338 = vpow.pop %v2337
        %v2339 = vsel %vm1228, %v2338, 0.0
        %2340 = vadd.xlane.f32.xlu0 %v2339
        %v2341 = vpop.xlane.xlu0 %2340
        %v2342 = vrcp.pop %v2341
        %v2343 = vmul.f32 %v2338, %v2342
        %v2344 = vpack.c.bf16 %v2343, %v2343
        %2345 = vrot.lane.b32.xlu0 %v2124, 56
        %v2346 = vpop.permute.xlu0 %2345
        %v2348 = vsel %vm1228, %v2344, 0
        %v2351 = vsel %vm1117, %v2346, 0
        %2353 = vmatprep.subr.bf16.mxu0 0
        %2354 = vmatpush1.bf16.msra.mxu0 %v2351
        %2355 = vmatprep.subr.bf16.mxu0 0
        %2356 = vmatpush1.bf16.msra.mxu0 0
        %2357 = vmatprep.subr.bf16.mxu0 0
        %2358 = vmatpush1.bf16.msra.mxu0 0
        %2359 = vmatprep.subr.bf16.mxu0 0
        %2360 = vmatpush1.bf16.msra.mxu0 0
        %2361 = vmatprep.subr.bf16.mxu0 0
        %2362 = vmatpush1.bf16.msra.mxu0 0
        %2363 = vmatprep.subr.bf16.mxu0 0
        %2364 = vmatpush1.bf16.msra.mxu0 0
        %2365 = vmatprep.subr.bf16.mxu0 0
        %2366 = vmatpush1.bf16.msra.mxu0 0
        %2367 = vmatprep.subr.bf16.mxu0 0
        %2368 = vmatpush1.bf16.msra.mxu0 0
        %2369 = vmatprep.subr.bf16.mxu0 0
        %2370 = vmatpush1.bf16.msra.mxu0 0
        %2371 = vmatprep.subr.bf16.mxu0 0
        %2372 = vmatpush1.bf16.msra.mxu0 0
        %2373 = vmatprep.subr.bf16.mxu0 0
        %2374 = vmatpush1.bf16.msra.mxu0 0
        %2375 = vmatprep.subr.bf16.mxu0 0
        %2376 = vmatpush1.bf16.msra.mxu0 0
        %2377 = vmatprep.subr.bf16.mxu0 0
        %2378 = vmatpush1.bf16.msra.mxu0 0
        %2379 = vmatprep.subr.bf16.mxu0 0
        %2380 = vmatpush1.bf16.msra.mxu0 0
        %2381 = vmatprep.subr.bf16.mxu0 0
        %2382 = vmatpush1.bf16.msra.mxu0 0
        %2383 = vmatprep.subr.bf16.mxu0 0
        %2384 = vmatpush1.bf16.msra.mxu0 0
        %2385 = vmatprep.mubr.bf16.mxu0 0
        %2386 = vmatmul.mubr.bf16.gmra.mrb[0].mxu0 %v2348
        %v2387 = vpop.f32.mrb[0].mxu0
        %v2388 = vadd.f32 0.0, %v2387
        %v2389 = vpop.f32.mrb[0].mxu0
        %v2390 = vpop.f32.mrb[0].mxu0
        %v2391 = vpop.f32.mrb[0].mxu0
        %2392 = vdwg.mxu0
        %v2393 = vpack.c.bf16 %v2388, %v2388
        %v2395 = vsel %vm1228, %v2393, 0
        %2397 = vmatprep.subr.bf16.mxu0 0
        %2398 = vmatpush1.bf16.msra.mxu0 %v1514
        %2399 = vmatprep.subr.bf16.mxu0 0
        %2400 = vmatpush1.bf16.msra.mxu0 0
        %2401 = vmatprep.subr.bf16.mxu0 0
        %2402 = vmatpush1.bf16.msra.mxu0 0
        %2403 = vmatprep.subr.bf16.mxu0 0
        %2404 = vmatpush1.bf16.msra.mxu0 0
        %2405 = vmatprep.subr.bf16.mxu0 0
        %2406 = vmatpush1.bf16.msra.mxu0 0
        %2407 = vmatprep.subr.bf16.mxu0 0
        %2408 = vmatpush1.bf16.msra.mxu0 0
        %2409 = vmatprep.subr.bf16.mxu0 0
        %2410 = vmatpush1.bf16.msra.mxu0 0
        %2411 = vmatprep.subr.bf16.mxu0 0
        %2412 = vmatpush1.bf16.msra.mxu0 0
        %2413 = vmatprep.subr.bf16.mxu0 0
        %2414 = vmatpush1.bf16.msra.mxu0 0
        %2415 = vmatprep.subr.bf16.mxu0 0
        %2416 = vmatpush1.bf16.msra.mxu0 0
        %2417 = vmatprep.subr.bf16.mxu0 0
        %2418 = vmatpush1.bf16.msra.mxu0 0
        %2419 = vmatprep.subr.bf16.mxu0 0
        %2420 = vmatpush1.bf16.msra.mxu0 0
        %2421 = vmatprep.subr.bf16.mxu0 0
        %2422 = vmatpush1.bf16.msra.mxu0 0
        %2423 = vmatprep.subr.bf16.mxu0 0
        %2424 = vmatpush1.bf16.msra.mxu0 0
        %2425 = vmatprep.subr.bf16.mxu0 0
        %2426 = vmatpush1.bf16.msra.mxu0 0
        %2427 = vmatprep.subr.bf16.mxu0 0
        %2428 = vmatpush1.bf16.msra.mxu0 0
        %2429 = vmatprep.mubr.bf16.mxu0 0
        %2430 = vmatmul.mubr.bf16.gmra.mrb[0].mxu0 %v2395
        %v2431 = vpop.f32.mrb[0].mxu0
        %v2432 = vadd.f32 0.0, %v2431
        %v2433 = vpop.f32.mrb[0].mxu0
        %v2434 = vpop.f32.mrb[0].mxu0
        %v2435 = vpop.f32.mrb[0].mxu0
        %2436 = vdwg.mxu0
        %v2437 = vadd.f32 %v2280, %v2432
        %2438 = vrot.lane.b32.xlu0 %v2124, 112
        %v2439 = vpop.permute.xlu0 %2438
        %2440 = vrot.lane.b32.xlu0 %v2124, 80
        %v2441 = vpop.permute.xlu0 %2440
        %v2443 = vsel %vm1228, %v2439, 0
        %v2446 = vsel %vm1228, %v2441, 0
        %2448 = vmatprep.subr.bf16.mxu0 0
        %2449 = vmatpush1.bf16.xpose.msra.mxu0 %v2446
        %2450 = vmatprep.subr.bf16.mxu0 0
        %2451 = vmatpush1.bf16.xpose.msra.mxu0 0
        %2452 = vmatprep.subr.bf16.mxu0 0
        %2453 = vmatpush1.bf16.xpose.msra.mxu0 0
        %2454 = vmatprep.subr.bf16.mxu0 0
        %2455 = vmatpush1.bf16.xpose.msra.mxu0 0
        %2456 = vmatprep.subr.bf16.mxu0 0
        %2457 = vmatpush1.bf16.xpose.msra.mxu0 0
        %2458 = vmatprep.subr.bf16.mxu0 0
        %2459 = vmatpush1.bf16.xpose.msra.mxu0 0
        %2460 = vmatprep.subr.bf16.mxu0 0
        %2461 = vmatpush1.bf16.xpose.msra.mxu0 0
        %2462 = vmatprep.subr.bf16.mxu0 0
        %2463 = vmatpush1.bf16.xpose.msra.mxu0 0
        %2464 = vmatprep.subr.bf16.mxu0 0
        %2465 = vmatpush1.bf16.xpose.msra.mxu0 0
        %2466 = vmatprep.subr.bf16.mxu0 0
        %2467 = vmatpush1.bf16.xpose.msra.mxu0 0
        %2468 = vmatprep.subr.bf16.mxu0 0
        %2469 = vmatpush1.bf16.xpose.msra.mxu0 0
        %2470 = vmatprep.subr.bf16.mxu0 0
        %2471 = vmatpush1.bf16.xpose.msra.mxu0 0
        %2472 = vmatprep.subr.bf16.mxu0 0
        %2473 = vmatpush1.bf16.xpose.msra.mxu0 0
        %2474 = vmatprep.subr.bf16.mxu0 0
        %2475 = vmatpush1.bf16.xpose.msra.mxu0 0
        %2476 = vmatprep.subr.bf16.mxu0 0
        %2477 = vmatpush1.bf16.xpose.msra.mxu0 0
        %2478 = vmatprep.subr.bf16.mxu0 0
        %2479 = vmatpush1.bf16.xpose.msra.mxu0 0
        %2480 = vmatprep.mubr.bf16.mxu0 0
        %2481 = vmatmul.mubr.bf16.gmra.mrb[0].mxu0 %v2443
        %v2482 = vpop.f32.mrb[0].mxu0
        %v2483 = vadd.f32 0.0, %v2482
        %v2484 = vpop.f32.mrb[0].mxu0
        %v2485 = vpop.f32.mrb[0].mxu0
        %v2486 = vpop.f32.mrb[0].mxu0
        %2487 = vdwg.mxu0
        %v2488 = vmul.f32 %v2483, 0.35355338
        %v2489 = vadd.f32 %v2488, %v1280
        %v2490 = vsel %vm1228, %v2489, -inf
        %2491 = vmax.xlane.f32.xlu0 %v2490
        %v2492 = vpop.xlane.xlu0 %2491
        %v2493 = vsub.f32 %v2489, %v2492
        %v2494 = vmul.f32 %v2493, 1.442695
        %v2495 = vpow.pop %v2494
        %v2496 = vsel %vm1228, %v2495, 0.0
        %2497 = vadd.xlane.f32.xlu0 %v2496
        %v2498 = vpop.xlane.xlu0 %2497
        %v2499 = vrcp.pop %v2498
        %v2500 = vmul.f32 %v2495, %v2499
        %v2501 = vpack.c.bf16 %v2500, %v2500
        %2502 = vrot.lane.b32.xlu0 %v2124, 48
        %v2503 = vpop.permute.xlu0 %2502
        %v2505 = vsel %vm1228, %v2501, 0
        %v2508 = vsel %vm1117, %v2503, 0
        %2510 = vmatprep.subr.bf16.mxu0 0
        %2511 = vmatpush1.bf16.msra.mxu0 %v2508
        %2512 = vmatprep.subr.bf16.mxu0 0
        %2513 = vmatpush1.bf16.msra.mxu0 0
        %2514 = vmatprep.subr.bf16.mxu0 0
        %2515 = vmatpush1.bf16.msra.mxu0 0
        %2516 = vmatprep.subr.bf16.mxu0 0
        %2517 = vmatpush1.bf16.msra.mxu0 0
        %2518 = vmatprep.subr.bf16.mxu0 0
        %2519 = vmatpush1.bf16.msra.mxu0 0
        %2520 = vmatprep.subr.bf16.mxu0 0
        %2521 = vmatpush1.bf16.msra.mxu0 0
        %2522 = vmatprep.subr.bf16.mxu0 0
        %2523 = vmatpush1.bf16.msra.mxu0 0
        %2524 = vmatprep.subr.bf16.mxu0 0
        %2525 = vmatpush1.bf16.msra.mxu0 0
        %2526 = vmatprep.subr.bf16.mxu0 0
        %2527 = vmatpush1.bf16.msra.mxu0 0
        %2528 = vmatprep.subr.bf16.mxu0 0
        %2529 = vmatpush1.bf16.msra.mxu0 0
        %2530 = vmatprep.subr.bf16.mxu0 0
        %2531 = vmatpush1.bf16.msra.mxu0 0
        %2532 = vmatprep.subr.bf16.mxu0 0
        %2533 = vmatpush1.bf16.msra.mxu0 0
        %2534 = vmatprep.subr.bf16.mxu0 0
        %2535 = vmatpush1.bf16.msra.mxu0 0
        %2536 = vmatprep.subr.bf16.mxu0 0
        %2537 = vmatpush1.bf16.msra.mxu0 0
        %2538 = vmatprep.subr.bf16.mxu0 0
        %2539 = vmatpush1.bf16.msra.mxu0 0
        %2540 = vmatprep.subr.bf16.mxu0 0
        %2541 = vmatpush1.bf16.msra.mxu0 0
        %2542 = vmatprep.mubr.bf16.mxu0 0
        %2543 = vmatmul.mubr.bf16.gmra.mrb[0].mxu0 %v2505
        %v2544 = vpop.f32.mrb[0].mxu0
        %v2545 = vadd.f32 0.0, %v2544
        %v2546 = vpop.f32.mrb[0].mxu0
        %v2547 = vpop.f32.mrb[0].mxu0
        %v2548 = vpop.f32.mrb[0].mxu0
        %2549 = vdwg.mxu0
        %v2550 = vpack.c.bf16 %v2545, %v2545
        %v2552 = vsel %vm1228, %v2550, 0
        %2554 = vmatprep.subr.bf16.mxu0 0
        %2555 = vmatpush1.bf16.msra.mxu0 %v1674
        %2556 = vmatprep.subr.bf16.mxu0 0
        %2557 = vmatpush1.bf16.msra.mxu0 0
        %2558 = vmatprep.subr.bf16.mxu0 0
        %2559 = vmatpush1.bf16.msra.mxu0 0
        %2560 = vmatprep.subr.bf16.mxu0 0
        %2561 = vmatpush1.bf16.msra.mxu0 0
        %2562 = vmatprep.subr.bf16.mxu0 0
        %2563 = vmatpush1.bf16.msra.mxu0 0
        %2564 = vmatprep.subr.bf16.mxu0 0
        %2565 = vmatpush1.bf16.msra.mxu0 0
        %2566 = vmatprep.subr.bf16.mxu0 0
        %2567 = vmatpush1.bf16.msra.mxu0 0
        %2568 = vmatprep.subr.bf16.mxu0 0
        %2569 = vmatpush1.bf16.msra.mxu0 0
        %2570 = vmatprep.subr.bf16.mxu0 0
        %2571 = vmatpush1.bf16.msra.mxu0 0
        %2572 = vmatprep.subr.bf16.mxu0 0
        %2573 = vmatpush1.bf16.msra.mxu0 0
        %2574 = vmatprep.subr.bf16.mxu0 0
        %2575 = vmatpush1.bf16.msra.mxu0 0
        %2576 = vmatprep.subr.bf16.mxu0 0
        %2577 = vmatpush1.bf16.msra.mxu0 0
        %2578 = vmatprep.subr.bf16.mxu0 0
        %2579 = vmatpush1.bf16.msra.mxu0 0
        %2580 = vmatprep.subr.bf16.mxu0 0
        %2581 = vmatpush1.bf16.msra.mxu0 0
        %2582 = vmatprep.subr.bf16.mxu0 0
        %2583 = vmatpush1.bf16.msra.mxu0 0
        %2584 = vmatprep.subr.bf16.mxu0 0
        %2585 = vmatpush1.bf16.msra.mxu0 0
        %2586 = vmatprep.mubr.bf16.mxu0 0
        %2587 = vmatmul.mubr.bf16.gmra.mrb[0].mxu0 %v2552
        %v2588 = vpop.f32.mrb[0].mxu0
        %v2589 = vadd.f32 0.0, %v2588
        %v2590 = vpop.f32.mrb[0].mxu0
        %v2591 = vpop.f32.mrb[0].mxu0
        %v2592 = vpop.f32.mrb[0].mxu0
        %2593 = vdwg.mxu0
        %v2594 = vadd.f32 %v2437, %v2589
        %2595 = vrot.lane.b32.xlu0 %v2124, 104
        %v2596 = vpop.permute.xlu0 %2595
        %2597 = vrot.lane.b32.xlu0 %v2124, 72
        %v2598 = vpop.permute.xlu0 %2597
        %v2600 = vsel %vm1228, %v2596, 0
        %v2603 = vsel %vm1228, %v2598, 0
        %2605 = vmatprep.subr.bf16.mxu0 0
        %2606 = vmatpush1.bf16.xpose.msra.mxu0 %v2603
        %2607 = vmatprep.subr.bf16.mxu0 0
        %2608 = vmatpush1.bf16.xpose.msra.mxu0 0
        %2609 = vmatprep.subr.bf16.mxu0 0
        %2610 = vmatpush1.bf16.xpose.msra.mxu0 0
        %2611 = vmatprep.subr.bf16.mxu0 0
        %2612 = vmatpush1.bf16.xpose.msra.mxu0 0
        %2613 = vmatprep.subr.bf16.mxu0 0
        %2614 = vmatpush1.bf16.xpose.msra.mxu0 0
        %2615 = vmatprep.subr.bf16.mxu0 0
        %2616 = vmatpush1.bf16.xpose.msra.mxu0 0
        %2617 = vmatprep.subr.bf16.mxu0 0
        %2618 = vmatpush1.bf16.xpose.msra.mxu0 0
        %2619 = vmatprep.subr.bf16.mxu0 0
        %2620 = vmatpush1.bf16.xpose.msra.mxu0 0
        %2621 = vmatprep.subr.bf16.mxu0 0
        %2622 = vmatpush1.bf16.xpose.msra.mxu0 0
        %2623 = vmatprep.subr.bf16.mxu0 0
        %2624 = vmatpush1.bf16.xpose.msra.mxu0 0
        %2625 = vmatprep.subr.bf16.mxu0 0
        %2626 = vmatpush1.bf16.xpose.msra.mxu0 0
        %2627 = vmatprep.subr.bf16.mxu0 0
        %2628 = vmatpush1.bf16.xpose.msra.mxu0 0
        %2629 = vmatprep.subr.bf16.mxu0 0
        %2630 = vmatpush1.bf16.xpose.msra.mxu0 0
        %2631 = vmatprep.subr.bf16.mxu0 0
        %2632 = vmatpush1.bf16.xpose.msra.mxu0 0
        %2633 = vmatprep.subr.bf16.mxu0 0
        %2634 = vmatpush1.bf16.xpose.msra.mxu0 0
        %2635 = vmatprep.subr.bf16.mxu0 0
        %2636 = vmatpush1.bf16.xpose.msra.mxu0 0
        %2637 = vmatprep.mubr.bf16.mxu0 0
        %2638 = vmatmul.mubr.bf16.gmra.mrb[0].mxu0 %v2600
        %v2639 = vpop.f32.mrb[0].mxu0
        %v2640 = vadd.f32 0.0, %v2639
        %v2641 = vpop.f32.mrb[0].mxu0
        %v2642 = vpop.f32.mrb[0].mxu0
        %v2643 = vpop.f32.mrb[0].mxu0
        %2644 = vdwg.mxu0
        %v2645 = vmul.f32 %v2640, 0.35355338
        %v2646 = vadd.f32 %v2645, %v1280
        %v2647 = vsel %vm1228, %v2646, -inf
        %2648 = vmax.xlane.f32.xlu0 %v2647
        %v2649 = vpop.xlane.xlu0 %2648
        %v2650 = vsub.f32 %v2646, %v2649
        %v2651 = vmul.f32 %v2650, 1.442695
        %v2652 = vpow.pop %v2651
        %v2653 = vsel %vm1228, %v2652, 0.0
        %2654 = vadd.xlane.f32.xlu0 %v2653
        %v2655 = vpop.xlane.xlu0 %2654
        %v2656 = vrcp.pop %v2655
        %v2657 = vmul.f32 %v2652, %v2656
        %v2658 = vpack.c.bf16 %v2657, %v2657
        %2659 = vrot.lane.b32.xlu0 %v2124, 40
        %v2660 = vpop.permute.xlu0 %2659
        %v2662 = vsel %vm1228, %v2658, 0
        %v2665 = vsel %vm1117, %v2660, 0
        %2667 = vmatprep.subr.bf16.mxu0 0
        %2668 = vmatpush1.bf16.msra.mxu0 %v2665
        %2669 = vmatprep.subr.bf16.mxu0 0
        %2670 = vmatpush1.bf16.msra.mxu0 0
        %2671 = vmatprep.subr.bf16.mxu0 0
        %2672 = vmatpush1.bf16.msra.mxu0 0
        %2673 = vmatprep.subr.bf16.mxu0 0
        %2674 = vmatpush1.bf16.msra.mxu0 0
        %2675 = vmatprep.subr.bf16.mxu0 0
        %2676 = vmatpush1.bf16.msra.mxu0 0
        %2677 = vmatprep.subr.bf16.mxu0 0
        %2678 = vmatpush1.bf16.msra.mxu0 0
        %2679 = vmatprep.subr.bf16.mxu0 0
        %2680 = vmatpush1.bf16.msra.mxu0 0
        %2681 = vmatprep.subr.bf16.mxu0 0
        %2682 = vmatpush1.bf16.msra.mxu0 0
        %2683 = vmatprep.subr.bf16.mxu0 0
        %2684 = vmatpush1.bf16.msra.mxu0 0
        %2685 = vmatprep.subr.bf16.mxu0 0
        %2686 = vmatpush1.bf16.msra.mxu0 0
        %2687 = vmatprep.subr.bf16.mxu0 0
        %2688 = vmatpush1.bf16.msra.mxu0 0
        %2689 = vmatprep.subr.bf16.mxu0 0
        %2690 = vmatpush1.bf16.msra.mxu0 0
        %2691 = vmatprep.subr.bf16.mxu0 0
        %2692 = vmatpush1.bf16.msra.mxu0 0
        %2693 = vmatprep.subr.bf16.mxu0 0
        %2694 = vmatpush1.bf16.msra.mxu0 0
        %2695 = vmatprep.subr.bf16.mxu0 0
        %2696 = vmatpush1.bf16.msra.mxu0 0
        %2697 = vmatprep.subr.bf16.mxu0 0
        %2698 = vmatpush1.bf16.msra.mxu0 0
        %2699 = vmatprep.mubr.bf16.mxu0 0
        %2700 = vmatmul.mubr.bf16.gmra.mrb[0].mxu0 %v2662
        %v2701 = vpop.f32.mrb[0].mxu0
        %v2702 = vadd.f32 0.0, %v2701
        %v2703 = vpop.f32.mrb[0].mxu0
        %v2704 = vpop.f32.mrb[0].mxu0
        %v2705 = vpop.f32.mrb[0].mxu0
        %2706 = vdwg.mxu0
        %v2707 = vpack.c.bf16 %v2702, %v2702
        %v2709 = vsel %vm1228, %v2707, 0
        %2711 = vmatprep.subr.bf16.mxu0 0
        %2712 = vmatpush1.bf16.msra.mxu0 %v1834
        %2713 = vmatprep.subr.bf16.mxu0 0
        %2714 = vmatpush1.bf16.msra.mxu0 0
        %2715 = vmatprep.subr.bf16.mxu0 0
        %2716 = vmatpush1.bf16.msra.mxu0 0
        %2717 = vmatprep.subr.bf16.mxu0 0
        %2718 = vmatpush1.bf16.msra.mxu0 0
        %2719 = vmatprep.subr.bf16.mxu0 0
        %2720 = vmatpush1.bf16.msra.mxu0 0
        %2721 = vmatprep.subr.bf16.mxu0 0
        %2722 = vmatpush1.bf16.msra.mxu0 0
        %2723 = vmatprep.subr.bf16.mxu0 0
        %2724 = vmatpush1.bf16.msra.mxu0 0
        %2725 = vmatprep.subr.bf16.mxu0 0
        %2726 = vmatpush1.bf16.msra.mxu0 0
        %2727 = vmatprep.subr.bf16.mxu0 0
        %2728 = vmatpush1.bf16.msra.mxu0 0
        %2729 = vmatprep.subr.bf16.mxu0 0
        %2730 = vmatpush1.bf16.msra.mxu0 0
        %2731 = vmatprep.subr.bf16.mxu0 0
        %2732 = vmatpush1.bf16.msra.mxu0 0
        %2733 = vmatprep.subr.bf16.mxu0 0
        %2734 = vmatpush1.bf16.msra.mxu0 0
        %2735 = vmatprep.subr.bf16.mxu0 0
        %2736 = vmatpush1.bf16.msra.mxu0 0
        %2737 = vmatprep.subr.bf16.mxu0 0
        %2738 = vmatpush1.bf16.msra.mxu0 0
        %2739 = vmatprep.subr.bf16.mxu0 0
        %2740 = vmatpush1.bf16.msra.mxu0 0
        %2741 = vmatprep.subr.bf16.mxu0 0
        %2742 = vmatpush1.bf16.msra.mxu0 0
        %2743 = vmatprep.mubr.bf16.mxu0 0
        %2744 = vmatmul.mubr.bf16.gmra.mrb[0].mxu0 %v2709
        %v2745 = vpop.f32.mrb[0].mxu0
        %v2746 = vadd.f32 0.0, %v2745
        %v2747 = vpop.f32.mrb[0].mxu0
        %v2748 = vpop.f32.mrb[0].mxu0
        %v2749 = vpop.f32.mrb[0].mxu0
        %2750 = vdwg.mxu0
        %v2751 = vadd.f32 %v2594, %v2746
        %v2752 = vadd.f32 %v2079, %v2751
        %v2753 = vsel %vm1180, %v2752, 0.0
        %2754 = vadd.xlane.f32.xlu0 %v2753
        %v2755 = vpop.xlane.xlu0 %2754
        %v2756 = vmul.f32 %v2755, %v1881
        %v2757 = vsub.f32 %v2752, %v2756
        %v2758 = vmul.f32 %v2757, %v2757
        %v2759 = vsel %vm1180, %v2758, 0.0
        %2760 = vadd.xlane.f32.xlu0 %v2759
        %v2761 = vpop.xlane.xlu0 %2760
        %v2762 = vmul.f32 %v2761, %v1881
        %v2763 = vadd.f32 %v2762, 1e-12
        %v2764 = vrsqrt.pop %v2763
        %v2765 = vmul.f32 %v2757, %v2764
        %v2766 = vmul.f32 %v2765, %v1896
        %v2767 = vadd.f32 %v2766, %v1903
        %v2768 = vpack.c.bf16 %v2767, %v2767
        %v2770 = vsel %vm1180, %v2768, 0
        %2772 = vmatprep.subr.bf16.mxu0 0
        %2773 = vmatpush1.bf16.msra.mxu0 %v1921
        %2774 = vmatprep.subr.bf16.mxu0 0
        %2775 = vmatpush1.bf16.msra.mxu0 %v1922
        %2776 = vmatprep.subr.bf16.mxu0 0
        %2777 = vmatpush1.bf16.msra.mxu0 0
        %2778 = vmatprep.subr.bf16.mxu0 0
        %2779 = vmatpush1.bf16.msra.mxu0 0
        %2780 = vmatprep.subr.bf16.mxu0 0
        %2781 = vmatpush1.bf16.msra.mxu0 0
        %2782 = vmatprep.subr.bf16.mxu0 0
        %2783 = vmatpush1.bf16.msra.mxu0 0
        %2784 = vmatprep.subr.bf16.mxu0 0
        %2785 = vmatpush1.bf16.msra.mxu0 0
        %2786 = vmatprep.subr.bf16.mxu0 0
        %2787 = vmatpush1.bf16.msra.mxu0 0
        %2788 = vmatprep.subr.bf16.mxu0 0
        %2789 = vmatpush1.bf16.msra.mxu0 0
        %2790 = vmatprep.subr.bf16.mxu0 0
        %2791 = vmatpush1.bf16.msra.mxu0 0
        %2792 = vmatprep.subr.bf16.mxu0 0
        %2793 = vmatpush1.bf16.msra.mxu0 0
        %2794 = vmatprep.subr.bf16.mxu0 0
        %2795 = vmatpush1.bf16.msra.mxu0 0
        %2796 = vmatprep.subr.bf16.mxu0 0
        %2797 = vmatpush1.bf16.msra.mxu0 0
        %2798 = vmatprep.subr.bf16.mxu0 0
        %2799 = vmatpush1.bf16.msra.mxu0 0
        %2800 = vmatprep.subr.bf16.mxu0 0
        %2801 = vmatpush1.bf16.msra.mxu0 0
        %2802 = vmatprep.subr.bf16.mxu0 0
        %2803 = vmatpush1.bf16.msra.mxu0 0
        %2804 = vmatprep.mubr.bf16.mxu0 0
        %2805 = vmatmul.mubr.bf16.gmra.mrb[0].mxu0 %v2770
        %v2806 = vpop.f32.mrb[0].mxu0
        %v2807 = vadd.f32 %v1911, %v2806
        %v2808 = vpop.f32.mrb[0].mxu0
        %v2809 = vpop.f32.mrb[0].mxu0
        %v2810 = vpop.f32.mrb[0].mxu0
        %2811 = vdwg.mxu0
        %v2812 = vmul.f32 %v2807, 0.5
        %v2813 = vmul.f32 %v2807, %v2807
        %v2814 = vmul.f32 %v2807, %v2813
        %v2815 = vmul.f32 %v2814, 0.044715
        %v2816 = vadd.f32 %v2807, %v2815
        %v2817 = vmul.f32 %v2816, 0.7978846
        %v2818 = vtanh.pop %v2817
        %v2819 = vadd.f32 %v2818, 1.0
        %v2820 = vmul.f32 %v2812, %v2819
        %v2821 = vpack.c.bf16 %v2820, %v2820
        %v2823 = vsel %vm2008, %v2821, 0
        %2825 = vmatprep.subr.bf16.mxu0 0
        %2826 = vmatpush1.bf16.msra.mxu0 %v2000
        %2827 = vmatprep.subr.bf16.mxu0 0
        %2828 = vmatpush1.bf16.msra.mxu0 %v2001
        %2829 = vmatprep.subr.bf16.mxu0 0
        %2830 = vmatpush1.bf16.msra.mxu0 %v2002
        %2831 = vmatprep.subr.bf16.mxu0 0
        %2832 = vmatpush1.bf16.msra.mxu0 %v2003
        %2833 = vmatprep.subr.bf16.mxu0 0
        %2834 = vmatpush1.bf16.msra.mxu0 0
        %2835 = vmatprep.subr.bf16.mxu0 0
        %2836 = vmatpush1.bf16.msra.mxu0 0
        %2837 = vmatprep.subr.bf16.mxu0 0
        %2838 = vmatpush1.bf16.msra.mxu0 0
        %2839 = vmatprep.subr.bf16.mxu0 0
        %2840 = vmatpush1.bf16.msra.mxu0 0
        %2841 = vmatprep.subr.bf16.mxu0 0
        %2842 = vmatpush1.bf16.msra.mxu0 0
        %2843 = vmatprep.subr.bf16.mxu0 0
        %2844 = vmatpush1.bf16.msra.mxu0 0
        %2845 = vmatprep.subr.bf16.mxu0 0
        %2846 = vmatpush1.bf16.msra.mxu0 0
        %2847 = vmatprep.subr.bf16.mxu0 0
        %2848 = vmatpush1.bf16.msra.mxu0 0
        %2849 = vmatprep.subr.bf16.mxu0 0
        %2850 = vmatpush1.bf16.msra.mxu0 0
        %2851 = vmatprep.subr.bf16.mxu0 0
        %2852 = vmatpush1.bf16.msra.mxu0 0
        %2853 = vmatprep.subr.bf16.mxu0 0
        %2854 = vmatpush1.bf16.msra.mxu0 0
        %2855 = vmatprep.subr.bf16.mxu0 0
        %2856 = vmatpush1.bf16.msra.mxu0 0
        %2857 = vmatprep.mubr.bf16.mxu0 0
        %2858 = vmatmul.mubr.bf16.gmra.mrb[0].mxu0 %v2823
        %v2859 = vpop.f32.mrb[0].mxu0
        %v2860 = vadd.f32 %v1982, %v2859
        %v2861 = vpop.f32.mrb[0].mxu0
        %v2862 = vpop.f32.mrb[0].mxu0
        %v2863 = vpop.f32.mrb[0].mxu0
        %2864 = vdwg.mxu0
        %v2865 = vadd.f32 %v2860, %v2767
        %v2866 = vsel %vm1180, %v2865, 0.0
        %2867 = vadd.xlane.f32.xlu0 %v2866
        %v2868 = vpop.xlane.xlu0 %2867
        %v2869 = vmul.f32 %v2868, %v1881
        %v2870 = vsub.f32 %v2865, %v2869
        %v2871 = vmul.f32 %v2870, %v2870
        %v2872 = vsel %vm1180, %v2871, 0.0
        %2873 = vadd.xlane.f32.xlu0 %v2872
        %v2874 = vpop.xlane.xlu0 %2873
        %v2875 = vmul.f32 %v2874, %v1881
        %v2876 = vadd.f32 %v2875, 1e-12
        %v2877 = vrsqrt.pop %v2876
        %v2878 = vmul.f32 %v2870, %v2877
        %v2879 = vmul.f32 %v2878, %v2070
        %v2880 = vadd.f32 %v2879, %v2077
        %v2881 = vld [vmem:[#allocation31] sm:$0xf]
        %v2882 = vld [vmem:[#allocation31 + $0x4] sm:$0xf]
        %v2883 = vld [vmem:[#allocation31 + $0x8] sm:$0xf]
        %v2884 = vld [vmem:[#allocation31 + $0xc] sm:$0xf]
        %v2885 = vpack.c.bf16 %v2880, %v2880
        %v2886 = vld [vmem:[#allocation32] sm:$0x1]
        %v2888 = vlaneseq
        %v2889 = vshrl.u32 %v2888, 7
        %v2890 = vsub.s32 0, %v2889
        %v2891 = vrot.slane %v2886, %v2890
        %v2897 = vunpack.c.l.b16 %v2881
        %v2898 = vunpack.c.l.b16 %v2882
        %v2899 = vunpack.c.l.b16 %v2883
        %v2900 = vunpack.c.l.b16 %v2884
        %v2901 = vpack.c.b16 %v2898, %v2897
        %v2902 = vpack.c.b16 %v2900, %v2899
        %v2906 = vsel %vm1180, %v2885, 0
        %2908 = vmatprep.subr.bf16.mxu0 0
        %2909 = vmatpush1.bf16.msra.mxu0 %v2901
        %2910 = vmatprep.subr.bf16.mxu0 0
        %2911 = vmatpush1.bf16.msra.mxu0 %v2902
        %2912 = vmatprep.subr.bf16.mxu0 0
        %2913 = vmatpush1.bf16.msra.mxu0 0
        %2914 = vmatprep.subr.bf16.mxu0 0
        %2915 = vmatpush1.bf16.msra.mxu0 0
        %2916 = vmatprep.subr.bf16.mxu0 0
        %2917 = vmatpush1.bf16.msra.mxu0 0
        %2918 = vmatprep.subr.bf16.mxu0 0
        %2919 = vmatpush1.bf16.msra.mxu0 0
        %2920 = vmatprep.subr.bf16.mxu0 0
        %2921 = vmatpush1.bf16.msra.mxu0 0
        %2922 = vmatprep.subr.bf16.mxu0 0
        %2923 = vmatpush1.bf16.msra.mxu0 0
        %2924 = vmatprep.subr.bf16.mxu0 0
        %2925 = vmatpush1.bf16.msra.mxu0 0
        %2926 = vmatprep.subr.bf16.mxu0 0
        %2927 = vmatpush1.bf16.msra.mxu0 0
        %2928 = vmatprep.subr.bf16.mxu0 0
        %2929 = vmatpush1.bf16.msra.mxu0 0
        %2930 = vmatprep.subr.bf16.mxu0 0
        %2931 = vmatpush1.bf16.msra.mxu0 0
        %2932 = vmatprep.subr.bf16.mxu0 0
        %2933 = vmatpush1.bf16.msra.mxu0 0
        %2934 = vmatprep.subr.bf16.mxu0 0
        %2935 = vmatpush1.bf16.msra.mxu0 0
        %2936 = vmatprep.subr.bf16.mxu0 0
        %2937 = vmatpush1.bf16.msra.mxu0 0
        %2938 = vmatprep.subr.bf16.mxu0 0
        %2939 = vmatpush1.bf16.msra.mxu0 0
        %2940 = vmatprep.mubr.bf16.mxu0 0
        %2941 = vmatmul.mubr.bf16.gmra.mrb[0].mxu0 %v2906
        %v2942 = vpop.f32.mrb[0].mxu0
        %v2943 = vadd.f32 %v2891, %v2942
        %v2944 = vpop.f32.mrb[0].mxu0
        %v2945 = vpop.f32.mrb[0].mxu0
        %v2946 = vpop.f32.mrb[0].mxu0
        %2947 = vdwg.mxu0
        %v2948 = vmax.f32 %v2943, 0.0
        %v2949 = vld [vmem:[#allocation34] sm:$0xf]
        %v2950 = vld [vmem:[#allocation34 + $0x4] sm:$0xf]
        %v2951 = vld [vmem:[#allocation34 + $0x8] sm:$0xf]
        %v2952 = vld [vmem:[#allocation34 + $0xc] sm:$0xf]
        %v2953 = vpack.c.bf16 %v2948, %v2948
        %v2954 = vld [vmem:[#allocation35] sm:$0x1]
        %v2956 = vlaneseq
        %v2957 = vshrl.u32 %v2956, 7
        %v2958 = vsub.s32 0, %v2957
        %v2959 = vrot.slane %v2954, %v2958
        %v2965 = vunpack.c.l.b16 %v2949
        %v2966 = vunpack.c.l.b16 %v2950
        %v2967 = vunpack.c.l.b16 %v2951
        %v2968 = vunpack.c.l.b16 %v2952
        %v2969 = vpack.c.b16 %v2966, %v2965
        %v2970 = vpack.c.b16 %v2968, %v2967
        %v2974 = vsel %vm1180, %v2953, 0
        %2976 = vmatprep.subr.bf16.mxu0 0
        %2977 = vmatpush1.bf16.msra.mxu0 %v2969
        %2978 = vmatprep.subr.bf16.mxu0 0
        %2979 = vmatpush1.bf16.msra.mxu0 %v2970
        %2980 = vmatprep.subr.bf16.mxu0 0
        %2981 = vmatpush1.bf16.msra.mxu0 0
        %2982 = vmatprep.subr.bf16.mxu0 0
        %2983 = vmatpush1.bf16.msra.mxu0 0
        %2984 = vmatprep.subr.bf16.mxu0 0
        %2985 = vmatpush1.bf16.msra.mxu0 0
        %2986 = vmatprep.subr.bf16.mxu0 0
        %2987 = vmatpush1.bf16.msra.mxu0 0
        %2988 = vmatprep.subr.bf16.mxu0 0
        %2989 = vmatpush1.bf16.msra.mxu0 0
        %2990 = vmatprep.subr.bf16.mxu0 0
        %2991 = vmatpush1.bf16.msra.mxu0 0
        %2992 = vmatprep.subr.bf16.mxu0 0
        %2993 = vmatpush1.bf16.msra.mxu0 0
        %2994 = vmatprep.subr.bf16.mxu0 0
        %2995 = vmatpush1.bf16.msra.mxu0 0
        %2996 = vmatprep.subr.bf16.mxu0 0
        %2997 = vmatpush1.bf16.msra.mxu0 0
        %2998 = vmatprep.subr.bf16.mxu0 0
        %2999 = vmatpush1.bf16.msra.mxu0 0
        %3000 = vmatprep.subr.bf16.mxu0 0
        %3001 = vmatpush1.bf16.msra.mxu0 0
        %3002 = vmatprep.subr.bf16.mxu0 0
        %3003 = vmatpush1.bf16.msra.mxu0 0
        %3004 = vmatprep.subr.bf16.mxu0 0
        %3005 = vmatpush1.bf16.msra.mxu0 0
        %3006 = vmatprep.subr.bf16.mxu0 0
        %3007 = vmatpush1.bf16.msra.mxu0 0
        %3008 = vmatprep.mubr.bf16.mxu0 0
        %3009 = vmatmul.mubr.bf16.gmra.mrb[0].mxu0 %v2974
        %v3010 = vpop.f32.mrb[0].mxu0
        %v3011 = vadd.f32 %v2959, %v3010
        %v3012 = vpop.f32.mrb[0].mxu0
        %v3013 = vpop.f32.mrb[0].mxu0
        %v3014 = vpop.f32.mrb[0].mxu0
        %3015 = vdwg.mxu0
        %3016 = vst [vmem:[%s998] sm:$0xff] %v3011
        %s3017 = sand.u32 %s532, 1
        %s3018 = scalar_lea.sflag [#allocation4], %s3017
        %s3019 = sand.u32 %s532, 1
        %s3020 = smul.addr %s3019, 8
        %s3021 = scalar_lea.vmem [#allocation37], %s3020
        // Predicated region
        $region197: #{bruno_forward.1} parent=107 // pred_check
          %p3022 = pneg %p542
        $region198: #{bruno_forward.1} parent=107 // pred_check_branch
          %3024 = sbr.rel (%p3022) target = $region200
        $region199: #{bruno_forward.1} parent=107 // pred_region
          %s3026 = ssub.s32 128, 128
          %3027 = vsyncadd %s3018, %s3026
          %s3028 = smul.addr %s52, 128
          %s3029 = scalar_lea.hbm %s22, %s3028
          %s3031 = sshll.u32 %s3021, 4
          %s3032 = int_to_ptr.vmem [resolvable:$true] %s3031
          %3034 = dma.vmem_to_hbm [thread:$0]  %s3032, 128, %s3029, %s3018
        $region200: #{bruno_forward.1} parent=107 // pred_fallthru
          _
      $region108: #{bruno_forward.1} parent=5 // pred_fallthru
        _
      %p3035 = scmp.le.s32.totalorder 2, %s47
      // Predicated region
      $region201: #{bruno_forward.1} parent=5 // pred_check
        %p3036 = pneg %p3035
      $region202: #{bruno_forward.1} parent=5 // pred_check_branch
        %3038 = sbr.rel (%p3036) target = $region204
      $region203: #{bruno_forward.1} parent=5 // pred_region
        %s3039 = ssub.s32 %s47, 2
        // Predicated region
        $region205: #{bruno_forward.1} parent=203 // pred_check
          %p3040 = pneg %p548
        $region206: #{bruno_forward.1} parent=203 // pred_check_branch
          %3042 = sbr.rel (%p3040) target = $region208
        $region207: #{bruno_forward.1} parent=203 // pred_region
          %s3043 = sand.u32 %s533, 1
          %s3044 = scalar_lea.sflag [#allocation4], %s3043
          %s3045 = sand.u32 %s533, 1
          %s3046 = smul.addr %s3045, 8
          %s3047 = scalar_lea.vmem [#allocation37], %s3046
          %3048 = dma.done %s3044, 128
        $region208: #{bruno_forward.1} parent=203 // pred_fallthru
          _
      $region204: #{bruno_forward.1} parent=5 // pred_fallthru
        _
    $region6: #{bruno_forward.1} parent=1 // loop_footer
      %s51 = sadd.s32 1, %s47
    $region7: #{bruno_forward.1} parent=1 // loop_footer_branch
      %46 = sbr.rel target = $region3
    $region8: #{bruno_forward.1} parent=1 // loop_exit
      _
    %3049 = vsyncpa [#allocation3], 1
    %s3050 = scalar_lea.sflag [#allocation3], 1
    %3051 = vsyncpa %s3050, 1
    %3052 = vsyncpa [#allocation6], 1
    %s3053 = scalar_lea.sflag [#allocation6], 1
    %3054 = vsyncpa %s3053, 1
    %3055 = vsyncpa [#allocation9], 1
    %3056 = vsyncpa [#allocation12], 1
    %3057 = vsyncpa [#allocation15], 1
    %3058 = vsyncpa [#allocation18], 1
    %3059 = vsyncpa [#allocation21], 1
    %3060 = vsyncpa [#allocation24], 1
    %3061 = vsyncpa [#allocation27], 1
    %3062 = vsyncpa [#allocation30], 1
    %3063 = vsyncpa [#allocation33], 1
    %3064 = vsyncpa [#allocation36], 1
    %3065 = vsyncpa [#allocation4], 1
    %s3066 = scalar_lea.sflag [#allocation4], 1
    %3067 = vsyncpa %s3066, 1

</llo_original>
